<compile_context>
chip_gen: v7x
topology: tpu7x:2x2x1
jax: 0.10.0
libtpu: 0.0.40
codegen_flags: <defaults>
</compile_context>

<pallas_src>
import functools
import math

import jax
import jax.numpy as jnp
from jax.experimental import pallas as pl
from jax.experimental.pallas import tpu as pltpu

_LANE = 128
_HI = jax.lax.Precision.HIGHEST


# ----------------------------------------------------------------------------
# Small helpers
# ----------------------------------------------------------------------------
def _pick_thw(hw, cap=4096):
    """Largest lane-aligned spatial tile that divides HW (full extent if HW is
    not 128-aligned; a full-extent block is always legal)."""
    if hw % _LANE != 0:
        return hw
    t = min(hw, cap)
    t -= t % _LANE
    while hw % t != 0:
        t -= _LANE
    return t


def _silu(y):
    return y * (1.0 / (1.0 + jnp.exp(-y)))


def _fold_bn(w, bn, eps):
    """Fold eval-mode BatchNorm into a per-out-channel weight scale + shift."""
    scale = bn["gamma"] / jnp.sqrt(bn["var"] + eps)
    shift = bn["beta"] - bn["mean"] * scale
    return w * scale.reshape(-1, *([1] * (w.ndim - 1))), shift


# ----------------------------------------------------------------------------
# Fused pointwise conv (+ BN shift) (+ SiLU) (+ residual) kernel
# ----------------------------------------------------------------------------
def _pw_kernel(x_ref, w_ref, b_ref, o_ref, *, act):
    y = jnp.dot(w_ref[...], x_ref[0], preferred_element_type=jnp.float32)
    y = y + b_ref[...]
    if act:
        y = _silu(y)
    o_ref[0] = y.astype(o_ref.dtype)


def _pw_res_kernel(x_ref, w_ref, b_ref, r_ref, o_ref, *, act):
    y = jnp.dot(w_ref[...], x_ref[0], preferred_element_type=jnp.float32)
    y = y + b_ref[...]
    if act:
        y = _silu(y)
    y = y + r_ref[0].astype(jnp.float32)
    o_ref[0] = y.astype(o_ref.dtype)


def fused_pointwise(x3, w, shift, *, act, residual=None):
    """y[n,:,hw] = (SiLU?)(w @ x3[n,:,hw] + shift) (+ residual).  x3: (N,Cin,HW)."""
    n, cin, hw = x3.shape
    cout = w.shape[0]
    t_hw = _pick_thw(hw)
    grid = (n, hw // t_hw)

    w2 = w.astype(jnp.float32)
    b2 = shift.reshape(cout, 1).astype(jnp.float32)

    x_spec = pl.BlockSpec((1, cin, t_hw), lambda i, j: (i, 0, j))
    w_spec = pl.BlockSpec((cout, cin), lambda i, j: (0, 0))
    b_spec = pl.BlockSpec((cout, 1), lambda i, j: (0, 0))
    o_spec = pl.BlockSpec((1, cout, t_hw), lambda i, j: (i, 0, j))

    itemsize = jnp.dtype(x3.dtype).itemsize
    bytes_accessed = (n * cin * hw + n * cout * hw) * itemsize + (cout * cin + cout) * 4
    if residual is None:
        kernel = functools.partial(_pw_kernel, act=act)
        in_specs = [x_spec, w_spec, b_spec]
        args = (x3, w2, b2)
    else:
        kernel = functools.partial(_pw_res_kernel, act=act)
        in_specs = [x_spec, w_spec, b_spec,
                    pl.BlockSpec((1, cout, t_hw), lambda i, j: (i, 0, j))]
        args = (x3, w2, b2, residual)
        bytes_accessed += n * cout * hw * itemsize

    return pl.pallas_call(
        kernel,
        out_shape=jax.ShapeDtypeStruct((n, cout, hw), x3.dtype),
        grid_spec=pltpu.PrefetchScalarGridSpec(
            num_scalar_prefetch=0,
            grid=grid,
            in_specs=in_specs,
            out_specs=o_spec),
        compiler_params=pltpu.CompilerParams(
            dimension_semantics=("parallel", "parallel")),
        cost_estimate=pl.CostEstimate(
            flops=int(2 * n * hw * cin * cout),
            transcendentals=int(n * hw * cout) if act else 0,
            bytes_accessed=int(bytes_accessed)),
    )(*args)


# ----------------------------------------------------------------------------
# MHSA attention core: energy = q^T k, softmax, out = v @ p^T   (per batch/head)
# ----------------------------------------------------------------------------
def _mhsa_kernel(q_ref, k_ref, v_ref, o_ref):
    q = q_ref[0, 0].astype(jnp.float32)                                 # (dp, HW)
    k = k_ref[0, 0].astype(jnp.float32)
    v = v_ref[0, 0].astype(jnp.float32)
    energy = jnp.dot(q.T, k, preferred_element_type=jnp.float32)        # (HW, HW)
    m = jnp.max(energy, axis=-1, keepdims=True)
    e = jnp.exp(energy - m)
    p = e / jnp.sum(e, axis=-1, keepdims=True)
    out = jnp.dot(v, p.T, preferred_element_type=jnp.float32)           # (dp, HW)
    o_ref[0, 0] = out.astype(o_ref.dtype)


def mhsa_attention(q4, k4, v4):
    """q4/k4/v4: (N, heads, dp, HW), dp a multiple of 8 (zero-padded head dim)."""
    n, nh, dp, hw = q4.shape
    itemsize = jnp.dtype(q4.dtype).itemsize

    def spec():
        return pl.BlockSpec((1, 1, dp, hw), lambda i, h: (i, h, 0, 0))

    return pl.pallas_call(
        _mhsa_kernel,
        out_shape=jax.ShapeDtypeStruct((n, nh, dp, hw), q4.dtype),
        grid_spec=pltpu.PrefetchScalarGridSpec(
            num_scalar_prefetch=0,
            grid=(n, nh),
            in_specs=[spec(), spec(), spec()],
            out_specs=spec()),
        compiler_params=pltpu.CompilerParams(
            dimension_semantics=("parallel", "parallel")),
        cost_estimate=pl.CostEstimate(
            flops=int(4 * n * nh * hw * hw * dp),
            transcendentals=int(n * nh * hw * hw),
            bytes_accessed=int(4 * n * nh * dp * hw * itemsize)),
    )(q4, k4, v4)


# ----------------------------------------------------------------------------
# ECA gate: sigmoid(banded_conv1d(mean_hw(x)))  -> (N, C, 1)
# ----------------------------------------------------------------------------
def _eca_kernel(x_ref, a_ref, s_ref, *, inv_hw):
    m = jnp.sum(x_ref[0].astype(jnp.float32), axis=-1, keepdims=True) * inv_hw
    z = jnp.dot(a_ref[...], m, preferred_element_type=jnp.float32)      # (C, 1)
    s_ref[0] = (1.0 / (1.0 + jnp.exp(-z))).astype(s_ref.dtype)


def eca_scale(x3, band):
    n, c, hw = x3.shape
    return pl.pallas_call(
        functools.partial(_eca_kernel, inv_hw=1.0 / hw),
        out_shape=jax.ShapeDtypeStruct((n, c, 1), jnp.float32),
        grid_spec=pltpu.PrefetchScalarGridSpec(
            num_scalar_prefetch=0,
            grid=(n,),
            in_specs=[pl.BlockSpec((1, c, hw), lambda i: (i, 0, 0)),
                      pl.BlockSpec((c, c), lambda i: (0, 0))],
            out_specs=pl.BlockSpec((1, c, 1), lambda i: (i, 0, 0))),
        compiler_params=pltpu.CompilerParams(
            dimension_semantics=("parallel",)),
        cost_estimate=pl.CostEstimate(
            flops=int(n * (c * hw + 2 * c * c)),
            transcendentals=int(n * c),
            bytes_accessed=int(n * c * hw * jnp.dtype(x3.dtype).itemsize)),
    )(x3, band)


# ----------------------------------------------------------------------------
# Final conv3 on cat(gate * x1, x2): concat + ECA gating fused into the kernel
# ----------------------------------------------------------------------------
def _conv3_kernel(x1_ref, x2_ref, s_ref, wa_ref, wb_ref, b_ref, o_ref):
    x1s = x1_ref[0].astype(jnp.float32) * s_ref[0]
    y = jnp.dot(wa_ref[...], x1s, preferred_element_type=jnp.float32)
    y = y + jnp.dot(wb_ref[...], x2_ref[0], preferred_element_type=jnp.float32)
    y = y + b_ref[...]
    y = _silu(y)
    o_ref[0] = y.astype(o_ref.dtype)


def fused_concat_conv3(x1, x2, gate, wa, wb, shift):
    n, ch, hw = x1.shape
    cout = wa.shape[0]
    t_hw = _pick_thw(hw)
    grid = (n, hw // t_hw)
    b2 = shift.reshape(cout, 1).astype(jnp.float32)
    itemsize = jnp.dtype(x1.dtype).itemsize

    def xspec():
        return pl.BlockSpec((1, ch, t_hw), lambda i, j: (i, 0, j))

    return pl.pallas_call(
        _conv3_kernel,
        out_shape=jax.ShapeDtypeStruct((n, cout, hw), x1.dtype),
        grid_spec=pltpu.PrefetchScalarGridSpec(
            num_scalar_prefetch=0,
            grid=grid,
            in_specs=[xspec(), xspec(),
                      pl.BlockSpec((1, ch, 1), lambda i, j: (i, 0, 0)),
                      pl.BlockSpec((cout, ch), lambda i, j: (0, 0)),
                      pl.BlockSpec((cout, ch), lambda i, j: (0, 0)),
                      pl.BlockSpec((cout, 1), lambda i, j: (0, 0))],
            out_specs=pl.BlockSpec((1, cout, t_hw), lambda i, j: (i, 0, j))),
        compiler_params=pltpu.CompilerParams(
            dimension_semantics=("parallel", "parallel")),
        cost_estimate=pl.CostEstimate(
            flops=int(4 * n * hw * ch * cout),
            transcendentals=int(n * hw * cout),
            bytes_accessed=int((2 * n * ch * hw + n * cout * hw) * itemsize)),
    )(x1, x2, gate.astype(jnp.float32), wa.astype(jnp.float32),
      wb.astype(jnp.float32), b2)


# ----------------------------------------------------------------------------
# Full CSPLayerMHSA1 forward (eval mode), n=1, shortcut=True, expansion=0.5
# ----------------------------------------------------------------------------
def csp_layer_mhsa1_forward(x, params, *, heads=4, eps=1e-5):
    n, cin, h, w = x.shape
    hw = h * w
    x3 = x.reshape(n, cin, hw)                       # NCHW kept; HW on lanes

    hidden = params["conv1"]["w"].shape[0]
    cout = params["conv3"]["w"].shape[0]

    # --- conv1 / conv2 branches (1x1 conv + BN + SiLU) ------------------------
    w1f, b1f = _fold_bn(params["conv1"]["w"], params["conv1"]["bn"], eps)
    x_1 = fused_pointwise(x3, w1f.reshape(hidden, cin), b1f, act=True)
    w2f, b2f = _fold_bn(params["conv2"]["w"], params["conv2"]["bn"], eps)
    x_2 = fused_pointwise(x3, w2f.reshape(hidden, cin), b2f, act=True)

    # --- BottleneckMHSA1 ------------------------------------------------------
    bp = params["bottleneck"]
    wb1, bb1 = _fold_bn(bp["conv1"]["w"], bp["conv1"]["bn"], eps)
    t1 = fused_pointwise(x_1, wb1.reshape(hidden, hidden), bb1, act=True)

    # q/k/v 1x1 convs (bias, no BN, no activation)
    q = fused_pointwise(t1, bp["mhsa"]["q"]["w"].reshape(hidden, hidden),
                        bp["mhsa"]["q"]["b"], act=False)
    k = fused_pointwise(t1, bp["mhsa"]["k"]["w"].reshape(hidden, hidden),
                        bp["mhsa"]["k"]["b"], act=False)
    v = fused_pointwise(t1, bp["mhsa"]["v"]["w"].reshape(hidden, hidden),
                        bp["mhsa"]["v"]["b"], act=False)

    d = hidden // heads
    dp = ((d + 7) // 8) * 8                          # pad head dim to a sublane tile

    def split_heads(a):
        a4 = a.reshape(n, heads, d, hw)
        if dp != d:
            a4 = jnp.pad(a4, ((0, 0), (0, 0), (0, dp - d), (0, 0)))
        return a4

    att = mhsa_attention(split_heads(q), split_heads(k), split_heads(v))
    att = att[:, :, :d, :].reshape(n, hidden, hw)

    # 3x3 conv + BN + SiLU (+ residual) via 9-tap im2col -> fused matmul kernel
    wc2, bc2 = _fold_bn(bp["conv2"]["w"], bp["conv2"]["bn"], eps)      # (Ch,Ch,3,3)
    wcol = jnp.transpose(wc2, (0, 2, 3, 1)).reshape(hidden, 9 * hidden)
    att4 = att.reshape(n, hidden, h, w)
    xp = jnp.pad(att4, ((0, 0), (0, 0), (1, 1), (1, 1)))
    cols = [xp[:, :, dy:dy + h, dx:dx + w] for dy in range(3) for dx in range(3)]
    xcol = jnp.concatenate(cols, axis=1).reshape(n, 9 * hidden, hw)
    x_1b = fused_pointwise(xcol, wcol, bc2, act=True, residual=x_1)

    # --- ECA gate (mean over HW -> 3-tap channel conv as a banded matrix) -----
    we = params["eca_w"].reshape(3)
    band = (jnp.diag(jnp.full((hidden - 1,), we[0]), k=-1)
            + jnp.diag(jnp.full((hidden,), we[1]), k=0)
            + jnp.diag(jnp.full((hidden - 1,), we[2]), k=1)).astype(jnp.float32)
    gate = eca_scale(x_1b, band)                                       # (N, Ch, 1)

    # --- conv3 on cat(gate*x_1b, x_2): concat + gating fused into the kernel --
    w3f, b3f = _fold_bn(params["conv3"]["w"], params["conv3"]["bn"], eps)
    w3f = w3f.reshape(cout, 2 * hidden)
    out3 = fused_concat_conv3(x_1b, x_2, gate, w3f[:, :hidden], w3f[:, hidden:], b3f)
    return out3.reshape(n, cout, h, w)


# ----------------------------------------------------------------------------
# Pure-JAX reference (follows the PyTorch module structure, eval mode)
# ----------------------------------------------------------------------------
def _base_conv_ref(x, w, bn, eps=1e-5):
    ks = w.shape[-1]
    pad = (ks - 1) // 2
    y = jax.lax.conv_general_dilated(
        x, w, window_strides=(1, 1), padding=[(pad, pad), (pad, pad)],
        dimension_numbers=("NCHW", "OIHW", "NCHW"), precision=_HI)
    scale = bn["gamma"] / jnp.sqrt(bn["var"] + eps)
    shift = bn["beta"] - bn["mean"] * scale
    y = y * scale.reshape(1, -1, 1, 1) + shift.reshape(1, -1, 1, 1)
    return _silu(y)


def _mhsa_ref(x, p, heads):
    n, c, h, w = x.shape

    def proj(pp):
        y = jax.lax.conv_general_dilated(
            x, pp["w"], window_strides=(1, 1), padding=[(0, 0), (0, 0)],
            dimension_numbers=("NCHW", "OIHW", "NCHW"), precision=_HI)
        return (y + pp["b"].reshape(1, -1, 1, 1)).reshape(n, heads, c // heads, h * w)

    q, k, v = proj(p["q"]), proj(p["k"]), proj(p["v"])
    energy = jnp.einsum("nhdi,nhdj->nhij", q, k, precision=_HI)
    att = jax.nn.softmax(energy, axis=-1)
    out = jnp.einsum("nhdj,nhij->nhdi", v, att, precision=_HI)
    return out.reshape(n, c, h, w)


def _eca_ref(x, w_eca):
    n, c, _, _ = x.shape
    m = jnp.mean(x, axis=(2, 3))                   # (N, C)
    we = w_eca.reshape(3)
    mp = jnp.pad(m, ((0, 0), (1, 1)))
    z = we[0] * mp[:, 0:c] + we[1] * mp[:, 1:c + 1] + we[2] * mp[:, 2:c + 2]
    s = 1.0 / (1.0 + jnp.exp(-z))
    return x * s.reshape(n, c, 1, 1)


def reference_forward(x, params, *, heads=4, eps=1e-5):
    x1 = _base_conv_ref(x, params["conv1"]["w"], params["conv1"]["bn"], eps)
    x2 = _base_conv_ref(x, params["conv2"]["w"], params["conv2"]["bn"], eps)
    bp = params["bottleneck"]
    t1 = _base_conv_ref(x1, bp["conv1"]["w"], bp["conv1"]["bn"], eps)
    att = _mhsa_ref(t1, bp["mhsa"], heads)
    y = _base_conv_ref(att, bp["conv2"]["w"], bp["conv2"]["bn"], eps)
    x1b = y + x1                                   # bottleneck shortcut
    x1e = _eca_ref(x1b, params["eca_w"])
    xc = jnp.concatenate([x1e, x2], axis=1)
    return _base_conv_ref(xc, params["conv3"]["w"], params["conv3"]["bn"], eps)


# ----------------------------------------------------------------------------
# Deterministic parameter construction
# ----------------------------------------------------------------------------
def _bf16_exact(a):
    # Round leaves to bf16-representable f32 so any bf16 MXU pass is lossless.
    return a.astype(jnp.bfloat16).astype(jnp.float32)


def make_params(key, cin, cout):
    ks = iter(jax.random.split(key, 40))

    def conv_w(c_out, c_in, k):
        return _bf16_exact(jax.random.normal(next(ks), (c_out, c_in, k, k),
                                             jnp.float32) / math.sqrt(c_in * k * k))

    def bn(c):
        return {
            "gamma": _bf16_exact(1.0 + 0.2 * jax.random.normal(next(ks), (c,), jnp.float32)),
            "beta": _bf16_exact(0.3 * jax.random.normal(next(ks), (c,), jnp.float32)),
            "mean": _bf16_exact(0.3 * jax.random.normal(next(ks), (c,), jnp.float32)),
            "var": _bf16_exact(jnp.abs(1.0 + 0.2 * jax.random.normal(next(ks), (c,), jnp.float32))),
        }

    def biased_conv(c):
        return {"w": conv_w(c, c, 1),
                "b": _bf16_exact(0.5 * jax.random.normal(next(ks), (c,), jnp.float32))}

    hidden = cout // 2                              # expansion = 0.5
    return {
        "conv1": {"w": conv_w(hidden, cin, 1), "bn": bn(hidden)},
        "conv2": {"w": conv_w(hidden, cin, 1), "bn": bn(hidden)},
        "conv3": {"w": conv_w(cout, 2 * hidden, 1), "bn": bn(cout)},
        "bottleneck": {
            "conv1": {"w": conv_w(hidden, hidden, 1), "bn": bn(hidden)},
            "mhsa": {"q": biased_conv(hidden), "k": biased_conv(hidden),
                     "v": biased_conv(hidden)},
            "conv2": {"w": conv_w(hidden, hidden, 3), "bn": bn(hidden)},
        },
        "eca_w": _bf16_exact(0.5 * jax.random.normal(next(ks), (1, 1, 3), jnp.float32)),
    }


if __name__ == "__main__":
    N, C_IN, C_OUT, H, W = 2, 16, 16, 16, 16        # hidden=8, heads=4, head_dim=2
    HEADS = 4

    key = jax.random.PRNGKey(0)
    kx, kp = jax.random.split(key)
    x = _bf16_exact(jax.random.normal(kx, (N, C_IN, H, W), dtype=jnp.float32))
    params = make_params(kp, C_IN, C_OUT)

    fwd = jax.jit(functools.partial(csp_layer_mhsa1_forward, heads=HEADS))
    out = jax.block_until_ready(fwd(x, params))

    ref = jax.block_until_ready(reference_forward(x, params, heads=HEADS))

    assert out.shape == (N, C_OUT, H, W), out.shape
    max_diff = float(jnp.max(jnp.abs(out - ref)))
    assert bool(jnp.allclose(out, ref, atol=5e-2, rtol=5e-2)), \
        f"mismatch vs reference, max |diff| = {max_diff}"
    print("KERNEL_OK")
</pallas_src>

<mosaic_0001>
module attributes {stable_mosaic.version = 11 : i64} {
  func.func @_pw_kernel(%arg0: i32, %arg1: i32, %arg2: memref<1x8x256xf32, #tpu.memory_space<vmem>>, %arg3: memref<8x8xf32, #tpu.memory_space<vmem>>, %arg4: memref<8x1xf32, #tpu.memory_space<vmem>>, %arg5: memref<1x8x256xf32, #tpu.memory_space<vmem>>) attributes {dimension_semantics = [#tpu.dimension_semantics<parallel>, #tpu.dimension_semantics<parallel>], iteration_bounds = array<i64: 2, 1>, scalar_prefetch = 0 : i64, scratch_operands = 0 : i64, tpu.core_type = #tpu.core_type<tc>, window_params = [{transform_indices = @transform_0, window_bounds = array<i64: 1, 8, 256>}, {pipeline_mode = #tpu.pipeline_mode<synchronous>, transform_indices = @transform_1, window_bounds = array<i64: 8, 8>}, {pipeline_mode = #tpu.pipeline_mode<synchronous>, transform_indices = @transform_2, window_bounds = array<i64: 8, 1>}, {transform_indices = @transform_3, window_bounds = array<i64: 1, 8, 256>}]} {
    %c0 = arith.constant 0 : index
    %c0_0 = arith.constant 0 : index
    %0 = vector.load %arg3[%c0, %c0_0] : memref<8x8xf32, #tpu.memory_space<vmem>>, vector<8x8xf32>
    %c0_1 = arith.constant 0 : index
    %c0_2 = arith.constant 0 : index
    %c0_3 = arith.constant 0 : index
    %1 = vector.load %arg2[%c0_1, %c0_2, %c0_3] : memref<1x8x256xf32, #tpu.memory_space<vmem>>, vector<1x8x256xf32>
    %2 = vector.shape_cast %1 : vector<1x8x256xf32> to vector<8x256xf32>
    %cst = arith.constant dense<0.000000e+00> : vector<8x256xf32>
    %3 = tpu.matmul %0, %2, %cst {dimension_numbers = #tpu.dot_dimension_numbers<[1], [0], [0], [1], [0, 0, 1, 1], [], []>} : vector<8x8xf32>, vector<8x256xf32>, vector<8x256xf32> -> vector<8x256xf32>
    %c0_4 = arith.constant 0 : index
    %c0_5 = arith.constant 0 : index
    %4 = vector.load %arg4[%c0_4, %c0_5] : memref<8x1xf32, #tpu.memory_space<vmem>>, vector<8x1xf32>
    %5 = vector.broadcast %4 : vector<8x1xf32> to vector<8x256xf32>
    %6 = arith.addf %3, %5 : vector<8x256xf32>
    %cst_6 = arith.constant 0.000000e+00 : f32
    %7 = vector.broadcast %cst_6 : f32 to vector<8x256xf32>
    %8 = arith.subf %7, %6 : vector<8x256xf32>
    %9 = math.exp %8 : vector<8x256xf32>
    %cst_7 = arith.constant 1.000000e+00 : f32
    %10 = vector.broadcast %cst_7 : f32 to vector<8x256xf32>
    %11 = arith.addf %10, %9 : vector<8x256xf32>
    %cst_8 = arith.constant 1.000000e+00 : f32
    %12 = vector.broadcast %cst_8 : f32 to vector<8x256xf32>
    %13 = arith.divf %12, %11 : vector<8x256xf32>
    %14 = arith.mulf %6, %13 : vector<8x256xf32>
    %c0_9 = arith.constant 0 : index
    %c0_10 = arith.constant 0 : index
    %c0_11 = arith.constant 0 : index
    %15 = vector.load %arg5[%c0_9, %c0_10, %c0_11] : memref<1x8x256xf32, #tpu.memory_space<vmem>>, vector<1x8x256xf32>
    %16 = vector.shape_cast %15 : vector<1x8x256xf32> to vector<8x256xf32>
    %17 = vector.shape_cast %14 : vector<8x256xf32> to vector<1x8x256xf32>
    tpu.vector_store %arg5[%c0_9, %c0_10, %c0_11], %17 {strides = array<i32>} : memref<1x8x256xf32, #tpu.memory_space<vmem>>, vector<1x8x256xf32>,
    return
  }
  func.func @transform_0(%arg0: i32, %arg1: i32) -> (i32, i32, i32) {
    %c0_i32 = arith.constant 0 : i32
    %c0_i32_0 = arith.constant 0 : i32
    return %arg0, %c0_i32, %arg1 : i32, i32, i32
  }
  func.func @transform_1(%arg0: i32, %arg1: i32) -> (i32, i32) {
    %c0_i32 = arith.constant 0 : i32
    %c0_i32_0 = arith.constant 0 : i32
    %c0_i32_1 = arith.constant 0 : i32
    return %c0_i32, %c0_i32_0 : i32, i32
  }
  func.func @transform_2(%arg0: i32, %arg1: i32) -> (i32, i32) {
    %c0_i32 = arith.constant 0 : i32
    %c0_i32_0 = arith.constant 0 : i32
    %c0_i32_1 = arith.constant 0 : i32
    return %c0_i32, %c0_i32_0 : i32, i32
  }
  func.func @transform_3(%arg0: i32, %arg1: i32) -> (i32, i32, i32) {
    %c0_i32 = arith.constant 0 : i32
    %c0_i32_0 = arith.constant 0 : i32
    return %arg0, %c0_i32, %arg1 : i32, i32, i32
  }
}

module attributes {stable_mosaic.version = 11 : i64} {
  func.func @_pw_kernel(%arg0: i32, %arg1: i32, %arg2: memref<1x8x256xf32, #tpu.memory_space<vmem>>, %arg3: memref<8x8xf32, #tpu.memory_space<vmem>>, %arg4: memref<8x1xf32, #tpu.memory_space<vmem>>, %arg5: memref<1x8x256xf32, #tpu.memory_space<vmem>>) attributes {dimension_semantics = [#tpu.dimension_semantics<parallel>, #tpu.dimension_semantics<parallel>], iteration_bounds = array<i64: 2, 1>, scalar_prefetch = 0 : i64, scratch_operands = 0 : i64, tpu.core_type = #tpu.core_type<tc>, window_params = [{transform_indices = @transform_0, window_bounds = array<i64: 1, 8, 256>}, {pipeline_mode = #tpu.pipeline_mode<synchronous>, transform_indices = @transform_1, window_bounds = array<i64: 8, 8>}, {pipeline_mode = #tpu.pipeline_mode<synchronous>, transform_indices = @transform_2, window_bounds = array<i64: 8, 1>}, {transform_indices = @transform_3, window_bounds = array<i64: 1, 8, 256>}]} {
    %c0 = arith.constant 0 : index
    %c0_0 = arith.constant 0 : index
    %0 = vector.load %arg3[%c0, %c0_0] : memref<8x8xf32, #tpu.memory_space<vmem>>, vector<8x8xf32>
    %c0_1 = arith.constant 0 : index
    %c0_2 = arith.constant 0 : index
    %c0_3 = arith.constant 0 : index
    %1 = vector.load %arg2[%c0_1, %c0_2, %c0_3] : memref<1x8x256xf32, #tpu.memory_space<vmem>>, vector<1x8x256xf32>
    %2 = vector.shape_cast %1 : vector<1x8x256xf32> to vector<8x256xf32>
    %cst = arith.constant dense<0.000000e+00> : vector<8x256xf32>
    %3 = tpu.matmul %0, %2, %cst {dimension_numbers = #tpu.dot_dimension_numbers<[1], [0], [0], [1], [0, 0, 1, 1], [], []>} : vector<8x8xf32>, vector<8x256xf32>, vector<8x256xf32> -> vector<8x256xf32>
    %c0_4 = arith.constant 0 : index
    %c0_5 = arith.constant 0 : index
    %4 = vector.load %arg4[%c0_4, %c0_5] : memref<8x1xf32, #tpu.memory_space<vmem>>, vector<8x1xf32>
    %5 = vector.broadcast %4 : vector<8x1xf32> to vector<8x256xf32>
    %6 = arith.addf %3, %5 : vector<8x256xf32>
    %c0_6 = arith.constant 0 : index
    %c0_7 = arith.constant 0 : index
    %c0_8 = arith.constant 0 : index
    %7 = vector.load %arg5[%c0_6, %c0_7, %c0_8] : memref<1x8x256xf32, #tpu.memory_space<vmem>>, vector<1x8x256xf32>
    %8 = vector.shape_cast %7 : vector<1x8x256xf32> to vector<8x256xf32>
    %9 = vector.shape_cast %6 : vector<8x256xf32> to vector<1x8x256xf32>
    tpu.vector_store %arg5[%c0_6, %c0_7, %c0_8], %9 {strides = array<i32>} : memref<1x8x256xf32, #tpu.memory_space<vmem>>, vector<1x8x256xf32>,
    return
  }
  func.func @transform_0(%arg0: i32, %arg1: i32) -> (i32, i32, i32) {
    %c0_i32 = arith.constant 0 : i32
    %c0_i32_0 = arith.constant 0 : i32
    return %arg0, %c0_i32, %arg1 : i32, i32, i32
  }
  func.func @transform_1(%arg0: i32, %arg1: i32) -> (i32, i32) {
    %c0_i32 = arith.constant 0 : i32
    %c0_i32_0 = arith.constant 0 : i32
    %c0_i32_1 = arith.constant 0 : i32
    return %c0_i32, %c0_i32_0 : i32, i32
  }
  func.func @transform_2(%arg0: i32, %arg1: i32) -> (i32, i32) {
    %c0_i32 = arith.constant 0 : i32
    %c0_i32_0 = arith.constant 0 : i32
    %c0_i32_1 = arith.constant 0 : i32
    return %c0_i32, %c0_i32_0 : i32, i32
  }
  func.func @transform_3(%arg0: i32, %arg1: i32) -> (i32, i32, i32) {
    %c0_i32 = arith.constant 0 : i32
    %c0_i32_0 = arith.constant 0 : i32
    return %arg0, %c0_i32, %arg1 : i32, i32, i32
  }
}

module attributes {stable_mosaic.version = 11 : i64} {
  func.func @_pw_kernel(%arg0: i32, %arg1: i32, %arg2: memref<1x16x256xf32, #tpu.memory_space<vmem>>, %arg3: memref<8x16xf32, #tpu.memory_space<vmem>>, %arg4: memref<8x1xf32, #tpu.memory_space<vmem>>, %arg5: memref<1x8x256xf32, #tpu.memory_space<vmem>>) attributes {dimension_semantics = [#tpu.dimension_semantics<parallel>, #tpu.dimension_semantics<parallel>], iteration_bounds = array<i64: 2, 1>, scalar_prefetch = 0 : i64, scratch_operands = 0 : i64, tpu.core_type = #tpu.core_type<tc>, window_params = [{transform_indices = @transform_0, window_bounds = array<i64: 1, 16, 256>}, {pipeline_mode = #tpu.pipeline_mode<synchronous>, transform_indices = @transform_1, window_bounds = array<i64: 8, 16>}, {pipeline_mode = #tpu.pipeline_mode<synchronous>, transform_indices = @transform_2, window_bounds = array<i64: 8, 1>}, {transform_indices = @transform_3, window_bounds = array<i64: 1, 8, 256>}]} {
    %c0 = arith.constant 0 : index
    %c0_0 = arith.constant 0 : index
    %0 = vector.load %arg3[%c0, %c0_0] : memref<8x16xf32, #tpu.memory_space<vmem>>, vector<8x16xf32>
    %c0_1 = arith.constant 0 : index
    %c0_2 = arith.constant 0 : index
    %c0_3 = arith.constant 0 : index
    %1 = vector.load %arg2[%c0_1, %c0_2, %c0_3] : memref<1x16x256xf32, #tpu.memory_space<vmem>>, vector<1x16x256xf32>
    %2 = vector.shape_cast %1 : vector<1x16x256xf32> to vector<16x256xf32>
    %cst = arith.constant dense<0.000000e+00> : vector<8x256xf32>
    %3 = tpu.matmul %0, %2, %cst {dimension_numbers = #tpu.dot_dimension_numbers<[1], [0], [0], [1], [0, 0, 1, 1], [], []>} : vector<8x16xf32>, vector<16x256xf32>, vector<8x256xf32> -> vector<8x256xf32>
    %c0_4 = arith.constant 0 : index
    %c0_5 = arith.constant 0 : index
    %4 = vector.load %arg4[%c0_4, %c0_5] : memref<8x1xf32, #tpu.memory_space<vmem>>, vector<8x1xf32>
    %5 = vector.broadcast %4 : vector<8x1xf32> to vector<8x256xf32>
    %6 = arith.addf %3, %5 : vector<8x256xf32>
    %cst_6 = arith.constant 0.000000e+00 : f32
    %7 = vector.broadcast %cst_6 : f32 to vector<8x256xf32>
    %8 = arith.subf %7, %6 : vector<8x256xf32>
    %9 = math.exp %8 : vector<8x256xf32>
    %cst_7 = arith.constant 1.000000e+00 : f32
    %10 = vector.broadcast %cst_7 : f32 to vector<8x256xf32>
    %11 = arith.addf %10, %9 : vector<8x256xf32>
    %cst_8 = arith.constant 1.000000e+00 : f32
    %12 = vector.broadcast %cst_8 : f32 to vector<8x256xf32>
    %13 = arith.divf %12, %11 : vector<8x256xf32>
    %14 = arith.mulf %6, %13 : vector<8x256xf32>
    %c0_9 = arith.constant 0 : index
    %c0_10 = arith.constant 0 : index
    %c0_11 = arith.constant 0 : index
    %15 = vector.load %arg5[%c0_9, %c0_10, %c0_11] : memref<1x8x256xf32, #tpu.memory_space<vmem>>, vector<1x8x256xf32>
    %16 = vector.shape_cast %15 : vector<1x8x256xf32> to vector<8x256xf32>
    %17 = vector.shape_cast %14 : vector<8x256xf32> to vector<1x8x256xf32>
    tpu.vector_store %arg5[%c0_9, %c0_10, %c0_11], %17 {strides = array<i32>} : memref<1x8x256xf32, #tpu.memory_space<vmem>>, vector<1x8x256xf32>,
    return
  }
  func.func @transform_0(%arg0: i32, %arg1: i32) -> (i32, i32, i32) {
    %c0_i32 = arith.constant 0 : i32
    %c0_i32_0 = arith.constant 0 : i32
    return %arg0, %c0_i32, %arg1 : i32, i32, i32
  }
  func.func @transform_1(%arg0: i32, %arg1: i32) -> (i32, i32) {
    %c0_i32 = arith.constant 0 : i32
    %c0_i32_0 = arith.constant 0 : i32
    %c0_i32_1 = arith.constant 0 : i32
    return %c0_i32, %c0_i32_0 : i32, i32
  }
  func.func @transform_2(%arg0: i32, %arg1: i32) -> (i32, i32) {
    %c0_i32 = arith.constant 0 : i32
    %c0_i32_0 = arith.constant 0 : i32
    %c0_i32_1 = arith.constant 0 : i32
    return %c0_i32, %c0_i32_0 : i32, i32
  }
  func.func @transform_3(%arg0: i32, %arg1: i32) -> (i32, i32, i32) {
    %c0_i32 = arith.constant 0 : i32
    %c0_i32_0 = arith.constant 0 : i32
    return %arg0, %c0_i32, %arg1 : i32, i32, i32
  }
}

module attributes {stable_mosaic.version = 11 : i64} {
  func.func @_mhsa_kernel(%arg0: i32, %arg1: i32, %arg2: memref<1x1x8x256xf32, #tpu.memory_space<vmem>>, %arg3: memref<1x1x8x256xf32, #tpu.memory_space<vmem>>, %arg4: memref<1x1x8x256xf32, #tpu.memory_space<vmem>>, %arg5: memref<1x1x8x256xf32, #tpu.memory_space<vmem>>) attributes {dimension_semantics = [#tpu.dimension_semantics<parallel>, #tpu.dimension_semantics<parallel>], iteration_bounds = array<i64: 2, 4>, scalar_prefetch = 0 : i64, scratch_operands = 0 : i64, tpu.core_type = #tpu.core_type<tc>, window_params = [{transform_indices = @transform_0, window_bounds = array<i64: 1, 1, 8, 256>}, {transform_indices = @transform_1, window_bounds = array<i64: 1, 1, 8, 256>}, {transform_indices = @transform_2, window_bounds = array<i64: 1, 1, 8, 256>}, {transform_indices = @transform_3, window_bounds = array<i64: 1, 1, 8, 256>}]} {
    %c0 = arith.constant 0 : index
    %c0_0 = arith.constant 0 : index
    %c0_1 = arith.constant 0 : index
    %c0_2 = arith.constant 0 : index
    %0 = vector.load %arg2[%c0, %c0_0, %c0_1, %c0_2] : memref<1x1x8x256xf32, #tpu.memory_space<vmem>>, vector<1x1x8x256xf32>
    %1 = vector.shape_cast %0 : vector<1x1x8x256xf32> to vector<8x256xf32>
    %c0_3 = arith.constant 0 : index
    %c0_4 = arith.constant 0 : index
    %c0_5 = arith.constant 0 : index
    %c0_6 = arith.constant 0 : index
    %2 = vector.load %arg3[%c0_3, %c0_4, %c0_5, %c0_6] : memref<1x1x8x256xf32, #tpu.memory_space<vmem>>, vector<1x1x8x256xf32>
    %3 = vector.shape_cast %2 : vector<1x1x8x256xf32> to vector<8x256xf32>
    %c0_7 = arith.constant 0 : index
    %c0_8 = arith.constant 0 : index
    %c0_9 = arith.constant 0 : index
    %c0_10 = arith.constant 0 : index
    %4 = vector.load %arg4[%c0_7, %c0_8, %c0_9, %c0_10] : memref<1x1x8x256xf32, #tpu.memory_space<vmem>>, vector<1x1x8x256xf32>
    %5 = vector.shape_cast %4 : vector<1x1x8x256xf32> to vector<8x256xf32>
    %6 = tpu.transpose %1, [1, 0] : vector<8x256xf32> -> vector<256x8xf32>
    %cst = arith.constant dense<0.000000e+00> : vector<256x256xf32>
    %7 = tpu.matmul %6, %3, %cst {dimension_numbers = #tpu.dot_dimension_numbers<[1], [0], [0], [1], [0, 0, 1, 1], [], []>} : vector<256x8xf32>, vector<8x256xf32>, vector<256x256xf32> -> vector<256x256xf32>
    %cst_11 = arith.constant dense<0xFF800000> : vector<256xf32>
    %8 = vector.multi_reduction <maximumf>, %7, %cst_11 [1] : vector<256x256xf32> to vector<256xf32>
    %9 = vector.shape_cast %8 : vector<256xf32> to vector<256x1xf32>
    %10 = vector.broadcast %9 : vector<256x1xf32> to vector<256x256xf32>
    %11 = arith.subf %7, %10 : vector<256x256xf32>
    %12 = math.exp %11 : vector<256x256xf32>
    %cst_12 = arith.constant dense<0.000000e+00> : vector<256xf32>
    %13 = vector.multi_reduction <add>, %12, %cst_12 [1] : vector<256x256xf32> to vector<256xf32>
    %14 = vector.shape_cast %13 : vector<256xf32> to vector<256x1xf32>
    %15 = vector.broadcast %14 : vector<256x1xf32> to vector<256x256xf32>
    %16 = arith.divf %12, %15 : vector<256x256xf32>
    %17 = tpu.transpose %16, [1, 0] : vector<256x256xf32> -> vector<256x256xf32>
    %cst_13 = arith.constant dense<0.000000e+00> : vector<8x256xf32>
    %18 = tpu.matmul %5, %17, %cst_13 {dimension_numbers = #tpu.dot_dimension_numbers<[1], [0], [0], [1], [0, 0, 1, 1], [], []>} : vector<8x256xf32>, vector<256x256xf32>, vector<8x256xf32> -> vector<8x256xf32>
    %c0_14 = arith.constant 0 : index
    %c0_15 = arith.constant 0 : index
    %c0_16 = arith.constant 0 : index
    %c0_17 = arith.constant 0 : index
    %19 = vector.load %arg5[%c0_14, %c0_15, %c0_16, %c0_17] : memref<1x1x8x256xf32, #tpu.memory_space<vmem>>, vector<1x1x8x256xf32>
    %20 = vector.shape_cast %19 : vector<1x1x8x256xf32> to vector<8x256xf32>
    %21 = vector.shape_cast %18 : vector<8x256xf32> to vector<1x1x8x256xf32>
    tpu.vector_store %arg5[%c0_14, %c0_15, %c0_16, %c0_17], %21 {strides = array<i32>} : memref<1x1x8x256xf32, #tpu.memory_space<vmem>>, vector<1x1x8x256xf32>,
    return
  }
  func.func @transform_0(%arg0: i32, %arg1: i32) -> (i32, i32, i32, i32) {
    %c0_i32 = arith.constant 0 : i32
    %c0_i32_0 = arith.constant 0 : i32
    %c0_i32_1 = arith.constant 0 : i32
    return %arg0, %arg1, %c0_i32, %c0_i32_0 : i32, i32, i32, i32
  }
  func.func @transform_1(%arg0: i32, %arg1: i32) -> (i32, i32, i32, i32) {
    %c0_i32 = arith.constant 0 : i32
    %c0_i32_0 = arith.constant 0 : i32
    %c0_i32_1 = arith.constant 0 : i32
    return %arg0, %arg1, %c0_i32, %c0_i32_0 : i32, i32, i32, i32
  }
  func.func @transform_2(%arg0: i32, %arg1: i32) -> (i32, i32, i32, i32) {
    %c0_i32 = arith.constant 0 : i32
    %c0_i32_0 = arith.constant 0 : i32
    %c0_i32_1 = arith.constant 0 : i32
    return %arg0, %arg1, %c0_i32, %c0_i32_0 : i32, i32, i32, i32
  }
  func.func @transform_3(%arg0: i32, %arg1: i32) -> (i32, i32, i32, i32) {
    %c0_i32 = arith.constant 0 : i32
    %c0_i32_0 = arith.constant 0 : i32
    %c0_i32_1 = arith.constant 0 : i32
    return %arg0, %arg1, %c0_i32, %c0_i32_0 : i32, i32, i32, i32
  }
}

module attributes {stable_mosaic.version = 11 : i64} {
  func.func @_pw_res_kernel(%arg0: i32, %arg1: i32, %arg2: memref<1x72x256xf32, #tpu.memory_space<vmem>>, %arg3: memref<8x72xf32, #tpu.memory_space<vmem>>, %arg4: memref<8x1xf32, #tpu.memory_space<vmem>>, %arg5: memref<1x8x256xf32, #tpu.memory_space<vmem>>, %arg6: memref<1x8x256xf32, #tpu.memory_space<vmem>>) attributes {dimension_semantics = [#tpu.dimension_semantics<parallel>, #tpu.dimension_semantics<parallel>], iteration_bounds = array<i64: 2, 1>, scalar_prefetch = 0 : i64, scratch_operands = 0 : i64, tpu.core_type = #tpu.core_type<tc>, window_params = [{transform_indices = @transform_0, window_bounds = array<i64: 1, 72, 256>}, {pipeline_mode = #tpu.pipeline_mode<synchronous>, transform_indices = @transform_1, window_bounds = array<i64: 8, 72>}, {pipeline_mode = #tpu.pipeline_mode<synchronous>, transform_indices = @transform_2, window_bounds = array<i64: 8, 1>}, {transform_indices = @transform_3, window_bounds = array<i64: 1, 8, 256>}, {transform_indices = @transform_4, window_bounds = array<i64: 1, 8, 256>}]} {
    %c0 = arith.constant 0 : index
    %c0_0 = arith.constant 0 : index
    %0 = vector.load %arg3[%c0, %c0_0] : memref<8x72xf32, #tpu.memory_space<vmem>>, vector<8x72xf32>
    %c0_1 = arith.constant 0 : index
    %c0_2 = arith.constant 0 : index
    %c0_3 = arith.constant 0 : index
    %1 = vector.load %arg2[%c0_1, %c0_2, %c0_3] : memref<1x72x256xf32, #tpu.memory_space<vmem>>, vector<1x72x256xf32>
    %2 = vector.shape_cast %1 : vector<1x72x256xf32> to vector<72x256xf32>
    %cst = arith.constant dense<0.000000e+00> : vector<8x256xf32>
    %3 = tpu.matmul %0, %2, %cst {dimension_numbers = #tpu.dot_dimension_numbers<[1], [0], [0], [1], [0, 0, 1, 1], [], []>} : vector<8x72xf32>, vector<72x256xf32>, vector<8x256xf32> -> vector<8x256xf32>
    %c0_4 = arith.constant 0 : index
    %c0_5 = arith.constant 0 : index
    %4 = vector.load %arg4[%c0_4, %c0_5] : memref<8x1xf32, #tpu.memory_space<vmem>>, vector<8x1xf32>
    %5 = vector.broadcast %4 : vector<8x1xf32> to vector<8x256xf32>
    %6 = arith.addf %3, %5 : vector<8x256xf32>
    %cst_6 = arith.constant 0.000000e+00 : f32
    %7 = vector.broadcast %cst_6 : f32 to vector<8x256xf32>
    %8 = arith.subf %7, %6 : vector<8x256xf32>
    %9 = math.exp %8 : vector<8x256xf32>
    %cst_7 = arith.constant 1.000000e+00 : f32
    %10 = vector.broadcast %cst_7 : f32 to vector<8x256xf32>
    %11 = arith.addf %10, %9 : vector<8x256xf32>
    %cst_8 = arith.constant 1.000000e+00 : f32
    %12 = vector.broadcast %cst_8 : f32 to vector<8x256xf32>
    %13 = arith.divf %12, %11 : vector<8x256xf32>
    %14 = arith.mulf %6, %13 : vector<8x256xf32>
    %c0_9 = arith.constant 0 : index
    %c0_10 = arith.constant 0 : index
    %c0_11 = arith.constant 0 : index
    %15 = vector.load %arg5[%c0_9, %c0_10, %c0_11] : memref<1x8x256xf32, #tpu.memory_space<vmem>>, vector<1x8x256xf32>
    %16 = vector.shape_cast %15 : vector<1x8x256xf32> to vector<8x256xf32>
    %17 = arith.addf %14, %16 : vector<8x256xf32>
    %c0_12 = arith.constant 0 : index
    %c0_13 = arith.constant 0 : index
    %c0_14 = arith.constant 0 : index
    %18 = vector.load %arg6[%c0_12, %c0_13, %c0_14] : memref<1x8x256xf32, #tpu.memory_space<vmem>>, vector<1x8x256xf32>
    %19 = vector.shape_cast %18 : vector<1x8x256xf32> to vector<8x256xf32>
    %20 = vector.shape_cast %17 : vector<8x256xf32> to vector<1x8x256xf32>
    tpu.vector_store %arg6[%c0_12, %c0_13, %c0_14], %20 {strides = array<i32>} : memref<1x8x256xf32, #tpu.memory_space<vmem>>, vector<1x8x256xf32>,
    return
  }
  func.func @transform_0(%arg0: i32, %arg1: i32) -> (i32, i32, i32) {
    %c0_i32 = arith.constant 0 : i32
    %c0_i32_0 = arith.constant 0 : i32
    return %arg0, %c0_i32, %arg1 : i32, i32, i32
  }
  func.func @transform_1(%arg0: i32, %arg1: i32) -> (i32, i32) {
    %c0_i32 = arith.constant 0 : i32
    %c0_i32_0 = arith.constant 0 : i32
    %c0_i32_1 = arith.constant 0 : i32
    return %c0_i32, %c0_i32_0 : i32, i32
  }
  func.func @transform_2(%arg0: i32, %arg1: i32) -> (i32, i32) {
    %c0_i32 = arith.constant 0 : i32
    %c0_i32_0 = arith.constant 0 : i32
    %c0_i32_1 = arith.constant 0 : i32
    return %c0_i32, %c0_i32_0 : i32, i32
  }
  func.func @transform_3(%arg0: i32, %arg1: i32) -> (i32, i32, i32) {
    %c0_i32 = arith.constant 0 : i32
    %c0_i32_0 = arith.constant 0 : i32
    return %arg0, %c0_i32, %arg1 : i32, i32, i32
  }
  func.func @transform_4(%arg0: i32, %arg1: i32) -> (i32, i32, i32) {
    %c0_i32 = arith.constant 0 : i32
    %c0_i32_0 = arith.constant 0 : i32
    return %arg0, %c0_i32, %arg1 : i32, i32, i32
  }
}

module attributes {stable_mosaic.version = 11 : i64} {
  func.func @_eca_kernel(%arg0: i32, %arg1: memref<1x8x256xf32, #tpu.memory_space<vmem>>, %arg2: memref<8x8xf32, #tpu.memory_space<vmem>>, %arg3: memref<1x8x1xf32, #tpu.memory_space<vmem>>) attributes {dimension_semantics = [#tpu.dimension_semantics<parallel>], iteration_bounds = array<i64: 2>, scalar_prefetch = 0 : i64, scratch_operands = 0 : i64, tpu.core_type = #tpu.core_type<tc>, window_params = [{transform_indices = @transform_0, window_bounds = array<i64: 1, 8, 256>}, {pipeline_mode = #tpu.pipeline_mode<synchronous>, transform_indices = @transform_1, window_bounds = array<i64: 8, 8>}, {transform_indices = @transform_2, window_bounds = array<i64: 1, 8, 1>}]} {
    %c0 = arith.constant 0 : index
    %c0_0 = arith.constant 0 : index
    %c0_1 = arith.constant 0 : index
    %0 = vector.load %arg1[%c0, %c0_0, %c0_1] : memref<1x8x256xf32, #tpu.memory_space<vmem>>, vector<1x8x256xf32>
    %1 = vector.shape_cast %0 : vector<1x8x256xf32> to vector<8x256xf32>
    %cst = arith.constant dense<0.000000e+00> : vector<8xf32>
    %2 = vector.multi_reduction <add>, %1, %cst [1] : vector<8x256xf32> to vector<8xf32>
    %3 = vector.shape_cast %2 : vector<8xf32> to vector<8x1xf32>
    %cst_2 = arith.constant 3.906250e-03 : f32
    %4 = vector.broadcast %cst_2 : f32 to vector<8x1xf32>
    %5 = arith.mulf %3, %4 : vector<8x1xf32>
    %c0_3 = arith.constant 0 : index
    %c0_4 = arith.constant 0 : index
    %6 = vector.load %arg2[%c0_3, %c0_4] : memref<8x8xf32, #tpu.memory_space<vmem>>, vector<8x8xf32>
    %cst_5 = arith.constant dense<0.000000e+00> : vector<8x1xf32>
    %7 = tpu.matmul %6, %5, %cst_5 {dimension_numbers = #tpu.dot_dimension_numbers<[1], [0], [0], [1], [0, 0, 1, 1], [], []>} : vector<8x8xf32>, vector<8x1xf32>, vector<8x1xf32> -> vector<8x1xf32>
    %cst_6 = arith.constant 0.000000e+00 : f32
    %8 = vector.broadcast %cst_6 : f32 to vector<8x1xf32>
    %9 = arith.subf %8, %7 : vector<8x1xf32>
    %10 = math.exp %9 : vector<8x1xf32>
    %cst_7 = arith.constant 1.000000e+00 : f32
    %11 = vector.broadcast %cst_7 : f32 to vector<8x1xf32>
    %12 = arith.addf %11, %10 : vector<8x1xf32>
    %cst_8 = arith.constant 1.000000e+00 : f32
    %13 = vector.broadcast %cst_8 : f32 to vector<8x1xf32>
    %14 = arith.divf %13, %12 : vector<8x1xf32>
    %c0_9 = arith.constant 0 : index
    %c0_10 = arith.constant 0 : index
    %c0_11 = arith.constant 0 : index
    %15 = vector.load %arg3[%c0_9, %c0_10, %c0_11] : memref<1x8x1xf32, #tpu.memory_space<vmem>>, vector<1x8x1xf32>
    %16 = vector.shape_cast %15 : vector<1x8x1xf32> to vector<8x1xf32>
    %17 = vector.shape_cast %14 : vector<8x1xf32> to vector<1x8x1xf32>
    tpu.vector_store %arg3[%c0_9, %c0_10, %c0_11], %17 {strides = array<i32>} : memref<1x8x1xf32, #tpu.memory_space<vmem>>, vector<1x8x1xf32>,
    return
  }
  func.func @transform_0(%arg0: i32) -> (i32, i32, i32) {
    %c0_i32 = arith.constant 0 : i32
    %c0_i32_0 = arith.constant 0 : i32
    %c0_i32_1 = arith.constant 0 : i32
    return %arg0, %c0_i32, %c0_i32_0 : i32, i32, i32
  }
  func.func @transform_1(%arg0: i32) -> (i32, i32) {
    %c0_i32 = arith.constant 0 : i32
    %c0_i32_0 = arith.constant 0 : i32
    %c0_i32_1 = arith.constant 0 : i32
    return %c0_i32, %c0_i32_0 : i32, i32
  }
  func.func @transform_2(%arg0: i32) -> (i32, i32, i32) {
    %c0_i32 = arith.constant 0 : i32
    %c0_i32_0 = arith.constant 0 : i32
    %c0_i32_1 = arith.constant 0 : i32
    return %arg0, %c0_i32, %c0_i32_0 : i32, i32, i32
  }
}

module attributes {stable_mosaic.version = 11 : i64} {
  func.func @_conv3_kernel(%arg0: i32, %arg1: i32, %arg2: memref<1x8x256xf32, #tpu.memory_space<vmem>>, %arg3: memref<1x8x256xf32, #tpu.memory_space<vmem>>, %arg4: memref<1x8x1xf32, #tpu.memory_space<vmem>>, %arg5: memref<16x8xf32, #tpu.memory_space<vmem>>, %arg6: memref<16x8xf32, #tpu.memory_space<vmem>>, %arg7: memref<16x1xf32, #tpu.memory_space<vmem>>, %arg8: memref<1x16x256xf32, #tpu.memory_space<vmem>>) attributes {dimension_semantics = [#tpu.dimension_semantics<parallel>, #tpu.dimension_semantics<parallel>], iteration_bounds = array<i64: 2, 1>, scalar_prefetch = 0 : i64, scratch_operands = 0 : i64, tpu.core_type = #tpu.core_type<tc>, window_params = [{transform_indices = @transform_0, window_bounds = array<i64: 1, 8, 256>}, {transform_indices = @transform_1, window_bounds = array<i64: 1, 8, 256>}, {transform_indices = @transform_2, window_bounds = array<i64: 1, 8, 1>}, {pipeline_mode = #tpu.pipeline_mode<synchronous>, transform_indices = @transform_3, window_bounds = array<i64: 16, 8>}, {pipeline_mode = #tpu.pipeline_mode<synchronous>, transform_indices = @transform_4, window_bounds = array<i64: 16, 8>}, {pipeline_mode = #tpu.pipeline_mode<synchronous>, transform_indices = @transform_5, window_bounds = array<i64: 16, 1>}, {transform_indices = @transform_6, window_bounds = array<i64: 1, 16, 256>}]} {
    %c0 = arith.constant 0 : index
    %c0_0 = arith.constant 0 : index
    %c0_1 = arith.constant 0 : index
    %0 = vector.load %arg2[%c0, %c0_0, %c0_1] : memref<1x8x256xf32, #tpu.memory_space<vmem>>, vector<1x8x256xf32>
    %1 = vector.shape_cast %0 : vector<1x8x256xf32> to vector<8x256xf32>
    %c0_2 = arith.constant 0 : index
    %c0_3 = arith.constant 0 : index
    %c0_4 = arith.constant 0 : index
    %2 = vector.load %arg4[%c0_2, %c0_3, %c0_4] : memref<1x8x1xf32, #tpu.memory_space<vmem>>, vector<1x8x1xf32>
    %3 = vector.shape_cast %2 : vector<1x8x1xf32> to vector<8x1xf32>
    %4 = vector.broadcast %3 : vector<8x1xf32> to vector<8x256xf32>
    %5 = arith.mulf %1, %4 : vector<8x256xf32>
    %c0_5 = arith.constant 0 : index
    %c0_6 = arith.constant 0 : index
    %6 = vector.load %arg5[%c0_5, %c0_6] : memref<16x8xf32, #tpu.memory_space<vmem>>, vector<16x8xf32>
    %cst = arith.constant dense<0.000000e+00> : vector<16x256xf32>
    %7 = tpu.matmul %6, %5, %cst {dimension_numbers = #tpu.dot_dimension_numbers<[1], [0], [0], [1], [0, 0, 1, 1], [], []>} : vector<16x8xf32>, vector<8x256xf32>, vector<16x256xf32> -> vector<16x256xf32>
    %c0_7 = arith.constant 0 : index
    %c0_8 = arith.constant 0 : index
    %8 = vector.load %arg6[%c0_7, %c0_8] : memref<16x8xf32, #tpu.memory_space<vmem>>, vector<16x8xf32>
    %c0_9 = arith.constant 0 : index
    %c0_10 = arith.constant 0 : index
    %c0_11 = arith.constant 0 : index
    %9 = vector.load %arg3[%c0_9, %c0_10, %c0_11] : memref<1x8x256xf32, #tpu.memory_space<vmem>>, vector<1x8x256xf32>
    %10 = vector.shape_cast %9 : vector<1x8x256xf32> to vector<8x256xf32>
    %cst_12 = arith.constant dense<0.000000e+00> : vector<16x256xf32>
    %11 = tpu.matmul %8, %10, %cst_12 {dimension_numbers = #tpu.dot_dimension_numbers<[1], [0], [0], [1], [0, 0, 1, 1], [], []>} : vector<16x8xf32>, vector<8x256xf32>, vector<16x256xf32> -> vector<16x256xf32>
    %12 = arith.addf %7, %11 : vector<16x256xf32>
    %c0_13 = arith.constant 0 : index
    %c0_14 = arith.constant 0 : index
    %13 = vector.load %arg7[%c0_13, %c0_14] : memref<16x1xf32, #tpu.memory_space<vmem>>, vector<16x1xf32>
    %14 = vector.broadcast %13 : vector<16x1xf32> to vector<16x256xf32>
    %15 = arith.addf %12, %14 : vector<16x256xf32>
    %cst_15 = arith.constant 0.000000e+00 : f32
    %16 = vector.broadcast %cst_15 : f32 to vector<16x256xf32>
    %17 = arith.subf %16, %15 : vector<16x256xf32>
    %18 = math.exp %17 : vector<16x256xf32>
    %cst_16 = arith.constant 1.000000e+00 : f32
    %19 = vector.broadcast %cst_16 : f32 to vector<16x256xf32>
    %20 = arith.addf %19, %18 : vector<16x256xf32>
    %cst_17 = arith.constant 1.000000e+00 : f32
    %21 = vector.broadcast %cst_17 : f32 to vector<16x256xf32>
    %22 = arith.divf %21, %20 : vector<16x256xf32>
    %23 = arith.mulf %15, %22 : vector<16x256xf32>
    %c0_18 = arith.constant 0 : index
    %c0_19 = arith.constant 0 : index
    %c0_20 = arith.constant 0 : index
    %24 = vector.load %arg8[%c0_18, %c0_19, %c0_20] : memref<1x16x256xf32, #tpu.memory_space<vmem>>, vector<1x16x256xf32>
    %25 = vector.shape_cast %24 : vector<1x16x256xf32> to vector<16x256xf32>
    %26 = vector.shape_cast %23 : vector<16x256xf32> to vector<1x16x256xf32>
    tpu.vector_store %arg8[%c0_18, %c0_19, %c0_20], %26 {strides = array<i32>} : memref<1x16x256xf32, #tpu.memory_space<vmem>>, vector<1x16x256xf32>,
    return
  }
  func.func @transform_0(%arg0: i32, %arg1: i32) -> (i32, i32, i32) {
    %c0_i32 = arith.constant 0 : i32
    %c0_i32_0 = arith.constant 0 : i32
    return %arg0, %c0_i32, %arg1 : i32, i32, i32
  }
  func.func @transform_1(%arg0: i32, %arg1: i32) -> (i32, i32, i32) {
    %c0_i32 = arith.constant 0 : i32
    %c0_i32_0 = arith.constant 0 : i32
    return %arg0, %c0_i32, %arg1 : i32, i32, i32
  }
  func.func @transform_2(%arg0: i32, %arg1: i32) -> (i32, i32, i32) {
    %c0_i32 = arith.constant 0 : i32
    %c0_i32_0 = arith.constant 0 : i32
    %c0_i32_1 = arith.constant 0 : i32
    return %arg0, %c0_i32, %c0_i32_0 : i32, i32, i32
  }
  func.func @transform_3(%arg0: i32, %arg1: i32) -> (i32, i32) {
    %c0_i32 = arith.constant 0 : i32
    %c0_i32_0 = arith.constant 0 : i32
    %c0_i32_1 = arith.constant 0 : i32
    return %c0_i32, %c0_i32_0 : i32, i32
  }
  func.func @transform_4(%arg0: i32, %arg1: i32) -> (i32, i32) {
    %c0_i32 = arith.constant 0 : i32
    %c0_i32_0 = arith.constant 0 : i32
    %c0_i32_1 = arith.constant 0 : i32
    return %c0_i32, %c0_i32_0 : i32, i32
  }
  func.func @transform_5(%arg0: i32, %arg1: i32) -> (i32, i32) {
    %c0_i32 = arith.constant 0 : i32
    %c0_i32_0 = arith.constant 0 : i32
    %c0_i32_1 = arith.constant 0 : i32
    return %c0_i32, %c0_i32_0 : i32, i32
  }
  func.func @transform_6(%arg0: i32, %arg1: i32) -> (i32, i32, i32) {
    %c0_i32 = arith.constant 0 : i32
    %c0_i32_0 = arith.constant 0 : i32
    return %arg0, %c0_i32, %arg1 : i32, i32, i32
  }
}

</mosaic_0001>

<llo_original>
// kernel: csp_layer_mhsa1_forward.12
$region0: #{csp_layer_mhsa1_forward.12}
  #allocation0 [shape = 'u32[]', space=smem, size = 0x4, offset = 0x4, fixed_abs, tag = 'smem constant byte address 0x4 - core index']
  #allocation1 [shape = 'u32[144,128]{1,0:T(1,128)}', space=vmem, size = 0x12000, scoped, tag = 'internal scratch']
  %s0 = inlined_call_operand.vmem [shape: f32[2,8,256], index: 0, kind: input, shape index: {}]
  %s1 = inlined_call_operand.vmem [shape: f32[8,8], index: 1, kind: input, shape index: {}]
  %s2 = inlined_call_operand.vmem [shape: f32[8,1], index: 2, kind: input, shape index: {}]
  %s3 = inlined_call_operand.vmem [shape: f32[2,8,256], index: 3, kind: output, shape index: {}]
  %s4 = sld [smem:[#allocation0]]
  $region45: #{csp_layer_mhsa1_forward.12} parent=0
    _
  %s6 = ssub.s32 1, %s4
  %s7 = scalar_select 0, %s6, %s4
  loop: start=0, step=1, limit=4
  $region2: #{csp_layer_mhsa1_forward.12} parent=0 // loop_pre_header
    _
  $region3: #{csp_layer_mhsa1_forward.12} parent=0 // loop_header
    %s9 = sphi 0, %s13
    %p10 = scmp.ge.s32.totalorder %s9, 4
    %s16 = sphi 0, %s28
    %s17 = sphi 0, %s24
    %s18 = sphi 0, %s16
    %s19 = sphi 0, %s17
    %s20 = sphi 0, %s18
    %s21 = sphi 0, %s19
    %s33 = sphi 0, %s35
    %s36 = sphi 0, %s33
    %s37 = sphi 0, %s36
    %s53 = sphi 0, %s37
    %s57 = sphi 0, %s57
    %s59 = sphi 0, %s57
    %s60 = sphi 0, %s59
    %s74 = sphi 0, %s60
    %s78 = sphi 0, %s78
    %s80 = sphi 0, %s78
    %s81 = sphi 0, %s80
    %s95 = sphi 0, %s81
    %s103 = sphi 0, %s105
    %s106 = sphi 0, %s103
    %s107 = sphi 0, %s106
    %s123 = sphi 0, %s107
  $region4: #{csp_layer_mhsa1_forward.12} parent=0 // loop_header_branch
    %12 = sbr.rel (%p10) target = $region8
  $region5: #{csp_layer_mhsa1_forward.12} parent=0 // loop_body
    %s14 = ssub.s32 %s9, 1
    %s15 = ssub.s32 %s9, 2
    %s22 = sadd.s32 1, %s17
    %p23 = scmp.ge.s32.totalorder %s22, 1
    %s24 = scalar_select %p23, 0, %s22
    %s25 = sadd.s32 1, %s16
    %s26 = scalar_select %p23, %s25, %s16
    %p27 = scmp.ge.s32.totalorder %s26, 2
    %s28 = scalar_select %p27, 0, %s26
    %s29 = ssub.s32 %s16, %s28
    %s30 = ssub.s32 %s17, %s24
    %s31 = sor.u32 %s29, %s30
    %p32 = scmp.eq.s32.totalorder %s31, 0
    %s34 = sadd.s32 %s33, 1
    %s35 = scalar_select %p32, %s33, %s34
    %p38 = pneg %p32
    %p39 = scmp.eq.s32.totalorder %s9, 1
    %p40 = por %p38, %p39
    %p41 = scmp.ne.s32.totalorder %s33, %s36
    %p42 = scmp.eq.s32.totalorder %s9, 0
    %p43 = por %p41, %p42
    %p44 = scmp.ne.s32.totalorder %s33, %s36
    %p45 = scmp.eq.s32.totalorder %s14, 1
    %p46 = por %p44, %p45
    %p47 = scmp.ne.s32.totalorder %s36, %s37
    %p48 = scmp.eq.s32.totalorder %s14, 0
    %p49 = por %p47, %p48
    %p50 = scmp.ne.s32.totalorder %s36, %s37
    %p51 = scmp.eq.s32.totalorder %s15, 1
    %p52 = por %p50, %p51
    %p54 = scmp.ne.s32.totalorder %s37, %s53
    %p55 = scmp.eq.s32.totalorder %s15, 0
    %p56 = por %p54, %p55
    %s58 = sadd.s32 %s57, 1
    %p61 = scmp.eq.s32.totalorder %s9, 1
    %p62 = scmp.ne.s32.totalorder %s57, %s59
    %p63 = scmp.eq.s32.totalorder %s9, 0
    %p64 = por %p62, %p63
    %p65 = scmp.ne.s32.totalorder %s57, %s59
    %p66 = scmp.eq.s32.totalorder %s14, 1
    %p67 = por %p65, %p66
    %p68 = scmp.ne.s32.totalorder %s59, %s60
    %p69 = scmp.eq.s32.totalorder %s14, 0
    %p70 = por %p68, %p69
    %p71 = scmp.ne.s32.totalorder %s59, %s60
    %p72 = scmp.eq.s32.totalorder %s15, 1
    %p73 = por %p71, %p72
    %p75 = scmp.ne.s32.totalorder %s60, %s74
    %p76 = scmp.eq.s32.totalorder %s15, 0
    %p77 = por %p75, %p76
    %s79 = sadd.s32 %s78, 1
    %p82 = scmp.eq.s32.totalorder %s9, 1
    %p83 = scmp.ne.s32.totalorder %s78, %s80
    %p84 = scmp.eq.s32.totalorder %s9, 0
    %p85 = por %p83, %p84
    %p86 = scmp.ne.s32.totalorder %s78, %s80
    %p87 = scmp.eq.s32.totalorder %s14, 1
    %p88 = por %p86, %p87
    %p89 = scmp.ne.s32.totalorder %s80, %s81
    %p90 = scmp.eq.s32.totalorder %s14, 0
    %p91 = por %p89, %p90
    %p92 = scmp.ne.s32.totalorder %s80, %s81
    %p93 = scmp.eq.s32.totalorder %s15, 1
    %p94 = por %p92, %p93
    %p96 = scmp.ne.s32.totalorder %s81, %s95
    %p97 = scmp.eq.s32.totalorder %s15, 0
    %p98 = por %p96, %p97
    %s99 = ssub.s32 %s16, %s28
    %s100 = ssub.s32 %s17, %s24
    %s101 = sor.u32 %s99, %s100
    %p102 = scmp.eq.s32.totalorder %s101, 0
    %s104 = sadd.s32 %s103, 1
    %s105 = scalar_select %p102, %s103, %s104
    %p108 = pneg %p102
    %p109 = scmp.eq.s32.totalorder %s9, 1
    %p110 = por %p108, %p109
    %p111 = scmp.ne.s32.totalorder %s103, %s106
    %p112 = scmp.eq.s32.totalorder %s9, 0
    %p113 = por %p111, %p112
    %p114 = scmp.ne.s32.totalorder %s103, %s106
    %p115 = scmp.eq.s32.totalorder %s14, 1
    %p116 = por %p114, %p115
    %p117 = scmp.ne.s32.totalorder %s106, %s107
    %p118 = scmp.eq.s32.totalorder %s14, 0
    %p119 = por %p117, %p118
    %p120 = scmp.ne.s32.totalorder %s106, %s107
    %p121 = scmp.eq.s32.totalorder %s15, 1
    %p122 = por %p120, %p121
    %p124 = scmp.ne.s32.totalorder %s107, %s123
    %p125 = scmp.eq.s32.totalorder %s15, 0
    %p126 = por %p124, %p125
    %p127 = scmp.le.s32.totalorder 1, %s9
    %p128 = scmp.lt.s32.totalorder %s9, 3
    %p129 = pnand %p127, %p128
    %p130 = pneg %p129
    // Predicated region
    $region9: #{csp_layer_mhsa1_forward.12} parent=5 // pred_check
      _
    $region10: #{csp_layer_mhsa1_forward.12} parent=5 // pred_check_branch
      %132 = sbr.rel (%p129) target = $region12
    $region11: #{csp_layer_mhsa1_forward.12} parent=5 // pred_region
      %s133 = ssub.s32 %s9, 1
      // Predicated region
      $region13: #{csp_layer_mhsa1_forward.12} parent=11 // pred_check
        %p134 = pneg %p70
      $region14: #{csp_layer_mhsa1_forward.12} parent=11 // pred_check_branch
        %136 = sbr.rel (%p134) target = $region16
      $region15: #{csp_layer_mhsa1_forward.12} parent=11 // pred_region
        _
      $region16: #{csp_layer_mhsa1_forward.12} parent=11 // pred_fallthru
        _
      // Predicated region
      $region17: #{csp_layer_mhsa1_forward.12} parent=11 // pred_check
        %p137 = pneg %p91
      $region18: #{csp_layer_mhsa1_forward.12} parent=11 // pred_check_branch
        %139 = sbr.rel (%p137) target = $region20
      $region19: #{csp_layer_mhsa1_forward.12} parent=11 // pred_region
        _
      $region20: #{csp_layer_mhsa1_forward.12} parent=11 // pred_fallthru
        _
    $region12: #{csp_layer_mhsa1_forward.12} parent=5 // pred_fallthru
      _
    %p140 = scmp.lt.s32.totalorder %s9, 2
    // Predicated region
    $region21: #{csp_layer_mhsa1_forward.12} parent=5 // pred_check
      %p141 = pneg %p140
    $region22: #{csp_layer_mhsa1_forward.12} parent=5 // pred_check_branch
      %143 = sbr.rel (%p141) target = $region24
    $region23: #{csp_layer_mhsa1_forward.12} parent=5 // pred_region
      // Predicated region
      $region25: #{csp_layer_mhsa1_forward.12} parent=23 // pred_check
        %p144 = pneg %p43
      $region26: #{csp_layer_mhsa1_forward.12} parent=23 // pred_check_branch
        %146 = sbr.rel (%p144) target = $region28
      $region27: #{csp_layer_mhsa1_forward.12} parent=23 // pred_region
        %s147 = smul.u32 2, %s17
        %p148 = scmp.lt.s32.totalorder %s16, 1
        %s149 = scalar_select %p148, %s16, 1
        %p150 = scmp.lt.s32.totalorder %s147, 1
        %s151 = scalar_select %p150, %s147, 1
        %s152 = smul.addr %s149, 2
        %s153 = sadd.s32 %s151, %s152
        %s154 = smul.addr %s153, 8
        %s155 = scalar_lea.vmem %s0, %s154
        %s156 = smul.u32 2, %s17
      $region28: #{csp_layer_mhsa1_forward.12} parent=23 // pred_fallthru
        _
    $region24: #{csp_layer_mhsa1_forward.12} parent=5 // pred_fallthru
      _
    %p157 = scmp.le.s32.totalorder 1, %s9
    %p158 = scmp.lt.s32.totalorder %s9, 3
    %p159 = pnand %p157, %p158
    %p160 = pneg %p159
    // Predicated region
    $region29: #{csp_layer_mhsa1_forward.12} parent=5 // pred_check
      _
    $region30: #{csp_layer_mhsa1_forward.12} parent=5 // pred_check_branch
      %162 = sbr.rel (%p159) target = $region32
    $region31: #{csp_layer_mhsa1_forward.12} parent=5 // pred_region
      %s163 = ssub.s32 %s9, 1
      %s164 = smul.u32 2, %s19
      %p165 = scmp.lt.s32.totalorder %s18, 1
      %s166 = scalar_select %p165, %s18, 1
      %p167 = scmp.lt.s32.totalorder %s164, 1
      %s168 = scalar_select %p167, %s164, 1
      %s169 = smul.addr %s166, 2
      %s170 = sadd.s32 %s168, %s169
      %s171 = smul.addr %s170, 8
      %s172 = scalar_lea.vmem %s0, %s171
      %p173 = pneg %p49
      %p174 = pneg %p46
      %p175 = pneg %p70
      %p176 = pneg %p67
      %p177 = pneg %p91
      %p178 = pneg %p88
      %p179 = pneg %p119
      %p180 = pneg %p116
      %s181 = smul.u32 2, %s19
      %p182 = scmp.lt.s32.totalorder %s18, 1
      %s183 = scalar_select %p182, %s18, 1
      %p184 = scmp.lt.s32.totalorder %s181, 1
      %s185 = scalar_select %p184, %s181, 1
      %s186 = smul.addr %s183, 2
      %s187 = sadd.s32 %s185, %s186
      %s188 = smul.addr %s187, 8
      %s189 = scalar_lea.vmem %s3, %s188
      %s190 = smul.u32 2, %s19
      %p191 = scmp.lt.s32.totalorder %s18, 1
      %s192 = scalar_select %p191, %s18, 1
      %p193 = scmp.lt.s32.totalorder %s190, 1
      %s194 = scalar_select %p193, %s190, 1
      %s195 = smul.addr %s192, 2
      %s196 = sadd.s32 %s194, %s195
      %s197 = smul.addr %s196, 8
      %s198 = scalar_lea.vmem %s0, %s197
      %s199 = smul.u32 2, %s19
      %s200 = smul.u32 2, %s19
      %p201 = scmp.lt.s32.totalorder %s18, 1
      %s202 = scalar_select %p201, %s18, 1
      %p203 = scmp.lt.s32.totalorder %s200, 1
      %s204 = scalar_select %p203, %s200, 1
      %s205 = smul.addr %s202, 2
      %s206 = sadd.s32 %s204, %s205
      %s207 = smul.addr %s206, 8
      %s208 = scalar_lea.vmem %s3, %s207
      %s209 = smul.u32 2, %s19
      %v210 = vld [vmem:[%s1] sm:$0xff]
      %v211 = vld [vmem:[%s198] sm:$0xff]
      %v212 = vld [vmem:[%s198 + $0x8] sm:$0xff]
      %v213 = vld [vmem:[%s2] sm:$0xff]
      %215 = vset.pattern.permute.xlu0 0
      %216 = vperm.xlu0 %215, %v213
      %v217 = vpop.permute.xlu0 %216
      %vm219 = vcmask 64512
      %v221 = vsel %vm219, %v210, 0
      %223 = vmatprep.subr.mxu0 %v212
      %224 = vmatpush1.msra.mxu0 %v211
      %225 = vmatprep.subr.mxu0 0.0
      %226 = vmatpush1.msra.mxu0 0.0
      %227 = vmatprep.subr.mxu0 0.0
      %228 = vmatpush1.msra.mxu0 0.0
      %229 = vmatprep.subr.mxu0 0.0
      %230 = vmatpush1.msra.mxu0 0.0
      %231 = vmatprep.subr.mxu0 0.0
      %232 = vmatpush1.msra.mxu0 0.0
      %233 = vmatprep.subr.mxu0 0.0
      %234 = vmatpush1.msra.mxu0 0.0
      %235 = vmatprep.subr.mxu0 0.0
      %236 = vmatpush1.msra.mxu0 0.0
      %237 = vmatprep.subr.mxu0 0.0
      %238 = vmatpush1.msra.mxu0 0.0
      %239 = vmatprep.subr.mxu0 0.0
      %240 = vmatpush1.msra.mxu0 0.0
      %241 = vmatprep.subr.mxu0 0.0
      %242 = vmatpush1.msra.mxu0 0.0
      %243 = vmatprep.subr.mxu0 0.0
      %244 = vmatpush1.msra.mxu0 0.0
      %245 = vmatprep.subr.mxu0 0.0
      %246 = vmatpush1.msra.mxu0 0.0
      %247 = vmatprep.subr.mxu0 0.0
      %248 = vmatpush1.msra.mxu0 0.0
      %249 = vmatprep.subr.mxu0 0.0
      %250 = vmatpush1.msra.mxu0 0.0
      %251 = vmatprep.subr.mxu0 0.0
      %252 = vmatpush1.msra.mxu0 0.0
      %253 = vmatprep.subr.mxu0 0.0
      %254 = vmatpush1.msra.mxu0 0.0
      %255 = vmatprep.subr.mxu0 0.0
      %256 = vmatpush1.msra.mxu0 0.0
      %257 = vmatprep.subr.mxu0 0.0
      %258 = vmatpush1.msra.mxu0 0.0
      %259 = vmatprep.subr.mxu0 0.0
      %260 = vmatpush1.msra.mxu0 0.0
      %261 = vmatprep.subr.mxu0 0.0
      %262 = vmatpush1.msra.mxu0 0.0
      %263 = vmatprep.subr.mxu0 0.0
      %264 = vmatpush1.msra.mxu0 0.0
      %265 = vmatprep.subr.mxu0 0.0
      %266 = vmatpush1.msra.mxu0 0.0
      %267 = vmatprep.subr.mxu0 0.0
      %268 = vmatpush1.msra.mxu0 0.0
      %269 = vmatprep.subr.mxu0 0.0
      %270 = vmatpush1.msra.mxu0 0.0
      %271 = vmatprep.subr.mxu0 0.0
      %272 = vmatpush1.msra.mxu0 0.0
      %273 = vmatprep.subr.mxu0 0.0
      %274 = vmatpush1.msra.mxu0 0.0
      %275 = vmatprep.subr.mxu0 0.0
      %276 = vmatpush1.msra.mxu0 0.0
      %277 = vmatprep.subr.mxu0 0.0
      %278 = vmatpush1.msra.mxu0 0.0
      %279 = vmatprep.subr.mxu0 0.0
      %280 = vmatpush1.msra.mxu0 0.0
      %281 = vmatprep.subr.mxu0 0.0
      %282 = vmatpush1.msra.mxu0 0.0
      %283 = vmatprep.subr.mxu0 0.0
      %284 = vmatpush1.msra.mxu0 0.0
      %285 = vmatprep.subr.mxu0 0.0
      %286 = vmatpush1.msra.mxu0 0.0
      %287 = vmatprep.mubr.f32.mxu0 0.0
      %288 = vmatmul.mubr.f32.gmra.mrb[0].mxu0 %v221
      %v289 = vpop.f32.mrb[0].mxu0
      %v290 = vadd.f32 %v217, %v289
      %v291 = vpop.f32.mrb[0].mxu0
      %v292 = vadd.f32 %v217, %v291
      %293 = vdwg.mxu0
      %v294 = vsub.f32 0.0, %v290
      %v295 = vsub.f32 0.0, %v292
      %v296 = vmul.f32 %v294, 1.442695
      %v297 = vpow.pop %v296
      %v298 = vmul.f32 %v295, 1.442695
      %v299 = vpow.pop %v298
      %v300 = vadd.f32 %v297, 1.0
      %v301 = vadd.f32 %v299, 1.0
      %v302 = vrcp.pop %v300
      %v303 = vmul.f32 1.0, %v302
      %v304 = vrcp.pop %v301
      %v305 = vmul.f32 1.0, %v304
      %v306 = vmul.f32 %v290, %v303
      %v307 = vmul.f32 %v292, %v305
      %308 = vst [vmem:[%s208] sm:$0xff] %v306
      %309 = vst [vmem:[%s208 + $0x8] sm:$0xff] %v307
      %s310 = smul.u32 2, %s19
      %p311 = scmp.lt.s32.totalorder %s18, 1
      %s312 = scalar_select %p311, %s18, 1
      %p313 = scmp.lt.s32.totalorder %s310, 1
      %s314 = scalar_select %p313, %s310, 1
      %s315 = smul.addr %s312, 2
      %s316 = sadd.s32 %s314, %s315
      %s317 = smul.addr %s316, 8
      %s318 = scalar_lea.vmem %s3, %s317
      // Predicated region
      $region33: #{csp_layer_mhsa1_forward.12} parent=31 // pred_check
        %p319 = pneg %p116
      $region34: #{csp_layer_mhsa1_forward.12} parent=31 // pred_check_branch
        %321 = sbr.rel (%p319) target = $region36
      $region35: #{csp_layer_mhsa1_forward.12} parent=31 // pred_region
        %s322 = smul.u32 2, %s19
      $region36: #{csp_layer_mhsa1_forward.12} parent=31 // pred_fallthru
        _
    $region32: #{csp_layer_mhsa1_forward.12} parent=5 // pred_fallthru
      _
    %p323 = scmp.le.s32.totalorder 2, %s9
    // Predicated region
    $region37: #{csp_layer_mhsa1_forward.12} parent=5 // pred_check
      %p324 = pneg %p323
    $region38: #{csp_layer_mhsa1_forward.12} parent=5 // pred_check_branch
      %326 = sbr.rel (%p324) target = $region40
    $region39: #{csp_layer_mhsa1_forward.12} parent=5 // pred_region
      %s327 = ssub.s32 %s9, 2
      // Predicated region
      $region41: #{csp_layer_mhsa1_forward.12} parent=39 // pred_check
        %p328 = pneg %p122
      $region42: #{csp_layer_mhsa1_forward.12} parent=39 // pred_check_branch
        %330 = sbr.rel (%p328) target = $region44
      $region43: #{csp_layer_mhsa1_forward.12} parent=39 // pred_region
        %s331 = smul.u32 2, %s21
        %p332 = scmp.lt.s32.totalorder %s20, 1
        %s333 = scalar_select %p332, %s20, 1
        %p334 = scmp.lt.s32.totalorder %s331, 1
        %s335 = scalar_select %p334, %s331, 1
        %s336 = smul.addr %s333, 2
        %s337 = sadd.s32 %s335, %s336
        %s338 = smul.addr %s337, 8
        %s339 = scalar_lea.vmem %s3, %s338
      $region44: #{csp_layer_mhsa1_forward.12} parent=39 // pred_fallthru
        _
    $region40: #{csp_layer_mhsa1_forward.12} parent=5 // pred_fallthru
      _
  $region6: #{csp_layer_mhsa1_forward.12} parent=0 // loop_footer
    %s13 = sadd.s32 1, %s9
  $region7: #{csp_layer_mhsa1_forward.12} parent=0 // loop_footer_branch
    %8 = sbr.rel target = $region3
  $region8: #{csp_layer_mhsa1_forward.12} parent=0 // loop_exit
    _

// kernel: csp_layer_mhsa1_forward.13
$region0: #{csp_layer_mhsa1_forward.13}
  #allocation0 [shape = 'u32[]', space=smem, size = 0x4, offset = 0x4, fixed_abs, tag = 'smem constant byte address 0x4 - core index']
  #allocation1 [shape = 'u32[144,128]{1,0:T(1,128)}', space=vmem, size = 0x12000, scoped, tag = 'internal scratch']
  %s0 = inlined_call_operand.vmem [shape: f32[2,8,256], index: 0, kind: input, shape index: {}]
  %s1 = inlined_call_operand.vmem [shape: f32[8,8], index: 1, kind: input, shape index: {}]
  %s2 = inlined_call_operand.vmem [shape: f32[8,1], index: 2, kind: input, shape index: {}]
  %s3 = inlined_call_operand.vmem [shape: f32[2,8,256], index: 3, kind: output, shape index: {}]
  %s4 = sld [smem:[#allocation0]]
  $region45: #{csp_layer_mhsa1_forward.13} parent=0
    _
  %s6 = ssub.s32 1, %s4
  %s7 = scalar_select 0, %s6, %s4
  loop: start=0, step=1, limit=4
  $region2: #{csp_layer_mhsa1_forward.13} parent=0 // loop_pre_header
    _
  $region3: #{csp_layer_mhsa1_forward.13} parent=0 // loop_header
    %s9 = sphi 0, %s13
    %p10 = scmp.ge.s32.totalorder %s9, 4
    %s16 = sphi 0, %s28
    %s17 = sphi 0, %s24
    %s18 = sphi 0, %s16
    %s19 = sphi 0, %s17
    %s20 = sphi 0, %s18
    %s21 = sphi 0, %s19
    %s33 = sphi 0, %s35
    %s36 = sphi 0, %s33
    %s37 = sphi 0, %s36
    %s53 = sphi 0, %s37
    %s57 = sphi 0, %s57
    %s59 = sphi 0, %s57
    %s60 = sphi 0, %s59
    %s74 = sphi 0, %s60
    %s78 = sphi 0, %s78
    %s80 = sphi 0, %s78
    %s81 = sphi 0, %s80
    %s95 = sphi 0, %s81
    %s103 = sphi 0, %s105
    %s106 = sphi 0, %s103
    %s107 = sphi 0, %s106
    %s123 = sphi 0, %s107
  $region4: #{csp_layer_mhsa1_forward.13} parent=0 // loop_header_branch
    %12 = sbr.rel (%p10) target = $region8
  $region5: #{csp_layer_mhsa1_forward.13} parent=0 // loop_body
    %s14 = ssub.s32 %s9, 1
    %s15 = ssub.s32 %s9, 2
    %s22 = sadd.s32 1, %s17
    %p23 = scmp.ge.s32.totalorder %s22, 1
    %s24 = scalar_select %p23, 0, %s22
    %s25 = sadd.s32 1, %s16
    %s26 = scalar_select %p23, %s25, %s16
    %p27 = scmp.ge.s32.totalorder %s26, 2
    %s28 = scalar_select %p27, 0, %s26
    %s29 = ssub.s32 %s16, %s28
    %s30 = ssub.s32 %s17, %s24
    %s31 = sor.u32 %s29, %s30
    %p32 = scmp.eq.s32.totalorder %s31, 0
    %s34 = sadd.s32 %s33, 1
    %s35 = scalar_select %p32, %s33, %s34
    %p38 = pneg %p32
    %p39 = scmp.eq.s32.totalorder %s9, 1
    %p40 = por %p38, %p39
    %p41 = scmp.ne.s32.totalorder %s33, %s36
    %p42 = scmp.eq.s32.totalorder %s9, 0
    %p43 = por %p41, %p42
    %p44 = scmp.ne.s32.totalorder %s33, %s36
    %p45 = scmp.eq.s32.totalorder %s14, 1
    %p46 = por %p44, %p45
    %p47 = scmp.ne.s32.totalorder %s36, %s37
    %p48 = scmp.eq.s32.totalorder %s14, 0
    %p49 = por %p47, %p48
    %p50 = scmp.ne.s32.totalorder %s36, %s37
    %p51 = scmp.eq.s32.totalorder %s15, 1
    %p52 = por %p50, %p51
    %p54 = scmp.ne.s32.totalorder %s37, %s53
    %p55 = scmp.eq.s32.totalorder %s15, 0
    %p56 = por %p54, %p55
    %s58 = sadd.s32 %s57, 1
    %p61 = scmp.eq.s32.totalorder %s9, 1
    %p62 = scmp.ne.s32.totalorder %s57, %s59
    %p63 = scmp.eq.s32.totalorder %s9, 0
    %p64 = por %p62, %p63
    %p65 = scmp.ne.s32.totalorder %s57, %s59
    %p66 = scmp.eq.s32.totalorder %s14, 1
    %p67 = por %p65, %p66
    %p68 = scmp.ne.s32.totalorder %s59, %s60
    %p69 = scmp.eq.s32.totalorder %s14, 0
    %p70 = por %p68, %p69
    %p71 = scmp.ne.s32.totalorder %s59, %s60
    %p72 = scmp.eq.s32.totalorder %s15, 1
    %p73 = por %p71, %p72
    %p75 = scmp.ne.s32.totalorder %s60, %s74
    %p76 = scmp.eq.s32.totalorder %s15, 0
    %p77 = por %p75, %p76
    %s79 = sadd.s32 %s78, 1
    %p82 = scmp.eq.s32.totalorder %s9, 1
    %p83 = scmp.ne.s32.totalorder %s78, %s80
    %p84 = scmp.eq.s32.totalorder %s9, 0
    %p85 = por %p83, %p84
    %p86 = scmp.ne.s32.totalorder %s78, %s80
    %p87 = scmp.eq.s32.totalorder %s14, 1
    %p88 = por %p86, %p87
    %p89 = scmp.ne.s32.totalorder %s80, %s81
    %p90 = scmp.eq.s32.totalorder %s14, 0
    %p91 = por %p89, %p90
    %p92 = scmp.ne.s32.totalorder %s80, %s81
    %p93 = scmp.eq.s32.totalorder %s15, 1
    %p94 = por %p92, %p93
    %p96 = scmp.ne.s32.totalorder %s81, %s95
    %p97 = scmp.eq.s32.totalorder %s15, 0
    %p98 = por %p96, %p97
    %s99 = ssub.s32 %s16, %s28
    %s100 = ssub.s32 %s17, %s24
    %s101 = sor.u32 %s99, %s100
    %p102 = scmp.eq.s32.totalorder %s101, 0
    %s104 = sadd.s32 %s103, 1
    %s105 = scalar_select %p102, %s103, %s104
    %p108 = pneg %p102
    %p109 = scmp.eq.s32.totalorder %s9, 1
    %p110 = por %p108, %p109
    %p111 = scmp.ne.s32.totalorder %s103, %s106
    %p112 = scmp.eq.s32.totalorder %s9, 0
    %p113 = por %p111, %p112
    %p114 = scmp.ne.s32.totalorder %s103, %s106
    %p115 = scmp.eq.s32.totalorder %s14, 1
    %p116 = por %p114, %p115
    %p117 = scmp.ne.s32.totalorder %s106, %s107
    %p118 = scmp.eq.s32.totalorder %s14, 0
    %p119 = por %p117, %p118
    %p120 = scmp.ne.s32.totalorder %s106, %s107
    %p121 = scmp.eq.s32.totalorder %s15, 1
    %p122 = por %p120, %p121
    %p124 = scmp.ne.s32.totalorder %s107, %s123
    %p125 = scmp.eq.s32.totalorder %s15, 0
    %p126 = por %p124, %p125
    %p127 = scmp.le.s32.totalorder 1, %s9
    %p128 = scmp.lt.s32.totalorder %s9, 3
    %p129 = pnand %p127, %p128
    %p130 = pneg %p129
    // Predicated region
    $region9: #{csp_layer_mhsa1_forward.13} parent=5 // pred_check
      _
    $region10: #{csp_layer_mhsa1_forward.13} parent=5 // pred_check_branch
      %132 = sbr.rel (%p129) target = $region12
    $region11: #{csp_layer_mhsa1_forward.13} parent=5 // pred_region
      %s133 = ssub.s32 %s9, 1
      // Predicated region
      $region13: #{csp_layer_mhsa1_forward.13} parent=11 // pred_check
        %p134 = pneg %p70
      $region14: #{csp_layer_mhsa1_forward.13} parent=11 // pred_check_branch
        %136 = sbr.rel (%p134) target = $region16
      $region15: #{csp_layer_mhsa1_forward.13} parent=11 // pred_region
        _
      $region16: #{csp_layer_mhsa1_forward.13} parent=11 // pred_fallthru
        _
      // Predicated region
      $region17: #{csp_layer_mhsa1_forward.13} parent=11 // pred_check
        %p137 = pneg %p91
      $region18: #{csp_layer_mhsa1_forward.13} parent=11 // pred_check_branch
        %139 = sbr.rel (%p137) target = $region20
      $region19: #{csp_layer_mhsa1_forward.13} parent=11 // pred_region
        _
      $region20: #{csp_layer_mhsa1_forward.13} parent=11 // pred_fallthru
        _
    $region12: #{csp_layer_mhsa1_forward.13} parent=5 // pred_fallthru
      _
    %p140 = scmp.lt.s32.totalorder %s9, 2
    // Predicated region
    $region21: #{csp_layer_mhsa1_forward.13} parent=5 // pred_check
      %p141 = pneg %p140
    $region22: #{csp_layer_mhsa1_forward.13} parent=5 // pred_check_branch
      %143 = sbr.rel (%p141) target = $region24
    $region23: #{csp_layer_mhsa1_forward.13} parent=5 // pred_region
      // Predicated region
      $region25: #{csp_layer_mhsa1_forward.13} parent=23 // pred_check
        %p144 = pneg %p43
      $region26: #{csp_layer_mhsa1_forward.13} parent=23 // pred_check_branch
        %146 = sbr.rel (%p144) target = $region28
      $region27: #{csp_layer_mhsa1_forward.13} parent=23 // pred_region
        %s147 = smul.u32 2, %s17
        %p148 = scmp.lt.s32.totalorder %s16, 1
        %s149 = scalar_select %p148, %s16, 1
        %p150 = scmp.lt.s32.totalorder %s147, 1
        %s151 = scalar_select %p150, %s147, 1
        %s152 = smul.addr %s149, 2
        %s153 = sadd.s32 %s151, %s152
        %s154 = smul.addr %s153, 8
        %s155 = scalar_lea.vmem %s0, %s154
        %s156 = smul.u32 2, %s17
      $region28: #{csp_layer_mhsa1_forward.13} parent=23 // pred_fallthru
        _
    $region24: #{csp_layer_mhsa1_forward.13} parent=5 // pred_fallthru
      _
    %p157 = scmp.le.s32.totalorder 1, %s9
    %p158 = scmp.lt.s32.totalorder %s9, 3
    %p159 = pnand %p157, %p158
    %p160 = pneg %p159
    // Predicated region
    $region29: #{csp_layer_mhsa1_forward.13} parent=5 // pred_check
      _
    $region30: #{csp_layer_mhsa1_forward.13} parent=5 // pred_check_branch
      %162 = sbr.rel (%p159) target = $region32
    $region31: #{csp_layer_mhsa1_forward.13} parent=5 // pred_region
      %s163 = ssub.s32 %s9, 1
      %s164 = smul.u32 2, %s19
      %p165 = scmp.lt.s32.totalorder %s18, 1
      %s166 = scalar_select %p165, %s18, 1
      %p167 = scmp.lt.s32.totalorder %s164, 1
      %s168 = scalar_select %p167, %s164, 1
      %s169 = smul.addr %s166, 2
      %s170 = sadd.s32 %s168, %s169
      %s171 = smul.addr %s170, 8
      %s172 = scalar_lea.vmem %s0, %s171
      %p173 = pneg %p49
      %p174 = pneg %p46
      %p175 = pneg %p70
      %p176 = pneg %p67
      %p177 = pneg %p91
      %p178 = pneg %p88
      %p179 = pneg %p119
      %p180 = pneg %p116
      %s181 = smul.u32 2, %s19
      %p182 = scmp.lt.s32.totalorder %s18, 1
      %s183 = scalar_select %p182, %s18, 1
      %p184 = scmp.lt.s32.totalorder %s181, 1
      %s185 = scalar_select %p184, %s181, 1
      %s186 = smul.addr %s183, 2
      %s187 = sadd.s32 %s185, %s186
      %s188 = smul.addr %s187, 8
      %s189 = scalar_lea.vmem %s3, %s188
      %s190 = smul.u32 2, %s19
      %p191 = scmp.lt.s32.totalorder %s18, 1
      %s192 = scalar_select %p191, %s18, 1
      %p193 = scmp.lt.s32.totalorder %s190, 1
      %s194 = scalar_select %p193, %s190, 1
      %s195 = smul.addr %s192, 2
      %s196 = sadd.s32 %s194, %s195
      %s197 = smul.addr %s196, 8
      %s198 = scalar_lea.vmem %s0, %s197
      %s199 = smul.u32 2, %s19
      %s200 = smul.u32 2, %s19
      %p201 = scmp.lt.s32.totalorder %s18, 1
      %s202 = scalar_select %p201, %s18, 1
      %p203 = scmp.lt.s32.totalorder %s200, 1
      %s204 = scalar_select %p203, %s200, 1
      %s205 = smul.addr %s202, 2
      %s206 = sadd.s32 %s204, %s205
      %s207 = smul.addr %s206, 8
      %s208 = scalar_lea.vmem %s3, %s207
      %s209 = smul.u32 2, %s19
      %v210 = vld [vmem:[%s1] sm:$0xff]
      %v211 = vld [vmem:[%s198] sm:$0xff]
      %v212 = vld [vmem:[%s198 + $0x8] sm:$0xff]
      %v213 = vld [vmem:[%s2] sm:$0xff]
      %215 = vset.pattern.permute.xlu0 0
      %216 = vperm.xlu0 %215, %v213
      %v217 = vpop.permute.xlu0 %216
      %vm219 = vcmask 64512
      %v221 = vsel %vm219, %v210, 0
      %223 = vmatprep.subr.mxu0 %v212
      %224 = vmatpush1.msra.mxu0 %v211
      %225 = vmatprep.subr.mxu0 0.0
      %226 = vmatpush1.msra.mxu0 0.0
      %227 = vmatprep.subr.mxu0 0.0
      %228 = vmatpush1.msra.mxu0 0.0
      %229 = vmatprep.subr.mxu0 0.0
      %230 = vmatpush1.msra.mxu0 0.0
      %231 = vmatprep.subr.mxu0 0.0
      %232 = vmatpush1.msra.mxu0 0.0
      %233 = vmatprep.subr.mxu0 0.0
      %234 = vmatpush1.msra.mxu0 0.0
      %235 = vmatprep.subr.mxu0 0.0
      %236 = vmatpush1.msra.mxu0 0.0
      %237 = vmatprep.subr.mxu0 0.0
      %238 = vmatpush1.msra.mxu0 0.0
      %239 = vmatprep.subr.mxu0 0.0
      %240 = vmatpush1.msra.mxu0 0.0
      %241 = vmatprep.subr.mxu0 0.0
      %242 = vmatpush1.msra.mxu0 0.0
      %243 = vmatprep.subr.mxu0 0.0
      %244 = vmatpush1.msra.mxu0 0.0
      %245 = vmatprep.subr.mxu0 0.0
      %246 = vmatpush1.msra.mxu0 0.0
      %247 = vmatprep.subr.mxu0 0.0
      %248 = vmatpush1.msra.mxu0 0.0
      %249 = vmatprep.subr.mxu0 0.0
      %250 = vmatpush1.msra.mxu0 0.0
      %251 = vmatprep.subr.mxu0 0.0
      %252 = vmatpush1.msra.mxu0 0.0
      %253 = vmatprep.subr.mxu0 0.0
      %254 = vmatpush1.msra.mxu0 0.0
      %255 = vmatprep.subr.mxu0 0.0
      %256 = vmatpush1.msra.mxu0 0.0
      %257 = vmatprep.subr.mxu0 0.0
      %258 = vmatpush1.msra.mxu0 0.0
      %259 = vmatprep.subr.mxu0 0.0
      %260 = vmatpush1.msra.mxu0 0.0
      %261 = vmatprep.subr.mxu0 0.0
      %262 = vmatpush1.msra.mxu0 0.0
      %263 = vmatprep.subr.mxu0 0.0
      %264 = vmatpush1.msra.mxu0 0.0
      %265 = vmatprep.subr.mxu0 0.0
      %266 = vmatpush1.msra.mxu0 0.0
      %267 = vmatprep.subr.mxu0 0.0
      %268 = vmatpush1.msra.mxu0 0.0
      %269 = vmatprep.subr.mxu0 0.0
      %270 = vmatpush1.msra.mxu0 0.0
      %271 = vmatprep.subr.mxu0 0.0
      %272 = vmatpush1.msra.mxu0 0.0
      %273 = vmatprep.subr.mxu0 0.0
      %274 = vmatpush1.msra.mxu0 0.0
      %275 = vmatprep.subr.mxu0 0.0
      %276 = vmatpush1.msra.mxu0 0.0
      %277 = vmatprep.subr.mxu0 0.0
      %278 = vmatpush1.msra.mxu0 0.0
      %279 = vmatprep.subr.mxu0 0.0
      %280 = vmatpush1.msra.mxu0 0.0
      %281 = vmatprep.subr.mxu0 0.0
      %282 = vmatpush1.msra.mxu0 0.0
      %283 = vmatprep.subr.mxu0 0.0
      %284 = vmatpush1.msra.mxu0 0.0
      %285 = vmatprep.subr.mxu0 0.0
      %286 = vmatpush1.msra.mxu0 0.0
      %287 = vmatprep.mubr.f32.mxu0 0.0
      %288 = vmatmul.mubr.f32.gmra.mrb[0].mxu0 %v221
      %v289 = vpop.f32.mrb[0].mxu0
      %v290 = vadd.f32 %v217, %v289
      %v291 = vpop.f32.mrb[0].mxu0
      %v292 = vadd.f32 %v217, %v291
      %293 = vdwg.mxu0
      %294 = vst [vmem:[%s208] sm:$0xff] %v290
      %295 = vst [vmem:[%s208 + $0x8] sm:$0xff] %v292
      %s296 = smul.u32 2, %s19
      %p297 = scmp.lt.s32.totalorder %s18, 1
      %s298 = scalar_select %p297, %s18, 1
      %p299 = scmp.lt.s32.totalorder %s296, 1
      %s300 = scalar_select %p299, %s296, 1
      %s301 = smul.addr %s298, 2
      %s302 = sadd.s32 %s300, %s301
      %s303 = smul.addr %s302, 8
      %s304 = scalar_lea.vmem %s3, %s303
      // Predicated region
      $region33: #{csp_layer_mhsa1_forward.13} parent=31 // pred_check
        %p305 = pneg %p116
      $region34: #{csp_layer_mhsa1_forward.13} parent=31 // pred_check_branch
        %307 = sbr.rel (%p305) target = $region36
      $region35: #{csp_layer_mhsa1_forward.13} parent=31 // pred_region
        %s308 = smul.u32 2, %s19
      $region36: #{csp_layer_mhsa1_forward.13} parent=31 // pred_fallthru
        _
    $region32: #{csp_layer_mhsa1_forward.13} parent=5 // pred_fallthru
      _
    %p309 = scmp.le.s32.totalorder 2, %s9
    // Predicated region
    $region37: #{csp_layer_mhsa1_forward.13} parent=5 // pred_check
      %p310 = pneg %p309
    $region38: #{csp_layer_mhsa1_forward.13} parent=5 // pred_check_branch
      %312 = sbr.rel (%p310) target = $region40
    $region39: #{csp_layer_mhsa1_forward.13} parent=5 // pred_region
      %s313 = ssub.s32 %s9, 2
      // Predicated region
      $region41: #{csp_layer_mhsa1_forward.13} parent=39 // pred_check
        %p314 = pneg %p122
      $region42: #{csp_layer_mhsa1_forward.13} parent=39 // pred_check_branch
        %316 = sbr.rel (%p314) target = $region44
      $region43: #{csp_layer_mhsa1_forward.13} parent=39 // pred_region
        %s317 = smul.u32 2, %s21
        %p318 = scmp.lt.s32.totalorder %s20, 1
        %s319 = scalar_select %p318, %s20, 1
        %p320 = scmp.lt.s32.totalorder %s317, 1
        %s321 = scalar_select %p320, %s317, 1
        %s322 = smul.addr %s319, 2
        %s323 = sadd.s32 %s321, %s322
        %s324 = smul.addr %s323, 8
        %s325 = scalar_lea.vmem %s3, %s324
      $region44: #{csp_layer_mhsa1_forward.13} parent=39 // pred_fallthru
        _
    $region40: #{csp_layer_mhsa1_forward.13} parent=5 // pred_fallthru
      _
  $region6: #{csp_layer_mhsa1_forward.13} parent=0 // loop_footer
    %s13 = sadd.s32 1, %s9
  $region7: #{csp_layer_mhsa1_forward.13} parent=0 // loop_footer_branch
    %8 = sbr.rel target = $region3
  $region8: #{csp_layer_mhsa1_forward.13} parent=0 // loop_exit
    _

// kernel: csp_layer_mhsa1_forward.10
$region0: #{csp_layer_mhsa1_forward.10}
  #allocation0 [shape = 'u32[]', space=smem, size = 0x4, offset = 0x4, fixed_abs, tag = 'smem constant byte address 0x4 - core index']
  #allocation1 [shape = 'u32[144,128]{1,0:T(1,128)}', space=vmem, size = 0x12000, scoped, tag = 'internal scratch']
  %s0 = inlined_call_operand.vmem [shape: f32[2,16,256], index: 0, kind: input, shape index: {}]
  %s1 = inlined_call_operand.vmem [shape: f32[8,16], index: 1, kind: input, shape index: {}]
  %s2 = inlined_call_operand.vmem [shape: f32[8,1], index: 2, kind: input, shape index: {}]
  %s3 = inlined_call_operand.vmem [shape: f32[2,8,256], index: 3, kind: output, shape index: {}]
  %s4 = sld [smem:[#allocation0]]
  $region45: #{csp_layer_mhsa1_forward.10} parent=0
    _
  %s6 = ssub.s32 1, %s4
  %s7 = scalar_select 0, %s6, %s4
  loop: start=0, step=1, limit=4
  $region2: #{csp_layer_mhsa1_forward.10} parent=0 // loop_pre_header
    _
  $region3: #{csp_layer_mhsa1_forward.10} parent=0 // loop_header
    %s9 = sphi 0, %s13
    %p10 = scmp.ge.s32.totalorder %s9, 4
    %s16 = sphi 0, %s28
    %s17 = sphi 0, %s24
    %s18 = sphi 0, %s16
    %s19 = sphi 0, %s17
    %s20 = sphi 0, %s18
    %s21 = sphi 0, %s19
    %s33 = sphi 0, %s35
    %s36 = sphi 0, %s33
    %s37 = sphi 0, %s36
    %s53 = sphi 0, %s37
    %s57 = sphi 0, %s57
    %s59 = sphi 0, %s57
    %s60 = sphi 0, %s59
    %s74 = sphi 0, %s60
    %s78 = sphi 0, %s78
    %s80 = sphi 0, %s78
    %s81 = sphi 0, %s80
    %s95 = sphi 0, %s81
    %s103 = sphi 0, %s105
    %s106 = sphi 0, %s103
    %s107 = sphi 0, %s106
    %s123 = sphi 0, %s107
  $region4: #{csp_layer_mhsa1_forward.10} parent=0 // loop_header_branch
    %12 = sbr.rel (%p10) target = $region8
  $region5: #{csp_layer_mhsa1_forward.10} parent=0 // loop_body
    %s14 = ssub.s32 %s9, 1
    %s15 = ssub.s32 %s9, 2
    %s22 = sadd.s32 1, %s17
    %p23 = scmp.ge.s32.totalorder %s22, 1
    %s24 = scalar_select %p23, 0, %s22
    %s25 = sadd.s32 1, %s16
    %s26 = scalar_select %p23, %s25, %s16
    %p27 = scmp.ge.s32.totalorder %s26, 2
    %s28 = scalar_select %p27, 0, %s26
    %s29 = ssub.s32 %s16, %s28
    %s30 = ssub.s32 %s17, %s24
    %s31 = sor.u32 %s29, %s30
    %p32 = scmp.eq.s32.totalorder %s31, 0
    %s34 = sadd.s32 %s33, 1
    %s35 = scalar_select %p32, %s33, %s34
    %p38 = pneg %p32
    %p39 = scmp.eq.s32.totalorder %s9, 1
    %p40 = por %p38, %p39
    %p41 = scmp.ne.s32.totalorder %s33, %s36
    %p42 = scmp.eq.s32.totalorder %s9, 0
    %p43 = por %p41, %p42
    %p44 = scmp.ne.s32.totalorder %s33, %s36
    %p45 = scmp.eq.s32.totalorder %s14, 1
    %p46 = por %p44, %p45
    %p47 = scmp.ne.s32.totalorder %s36, %s37
    %p48 = scmp.eq.s32.totalorder %s14, 0
    %p49 = por %p47, %p48
    %p50 = scmp.ne.s32.totalorder %s36, %s37
    %p51 = scmp.eq.s32.totalorder %s15, 1
    %p52 = por %p50, %p51
    %p54 = scmp.ne.s32.totalorder %s37, %s53
    %p55 = scmp.eq.s32.totalorder %s15, 0
    %p56 = por %p54, %p55
    %s58 = sadd.s32 %s57, 1
    %p61 = scmp.eq.s32.totalorder %s9, 1
    %p62 = scmp.ne.s32.totalorder %s57, %s59
    %p63 = scmp.eq.s32.totalorder %s9, 0
    %p64 = por %p62, %p63
    %p65 = scmp.ne.s32.totalorder %s57, %s59
    %p66 = scmp.eq.s32.totalorder %s14, 1
    %p67 = por %p65, %p66
    %p68 = scmp.ne.s32.totalorder %s59, %s60
    %p69 = scmp.eq.s32.totalorder %s14, 0
    %p70 = por %p68, %p69
    %p71 = scmp.ne.s32.totalorder %s59, %s60
    %p72 = scmp.eq.s32.totalorder %s15, 1
    %p73 = por %p71, %p72
    %p75 = scmp.ne.s32.totalorder %s60, %s74
    %p76 = scmp.eq.s32.totalorder %s15, 0
    %p77 = por %p75, %p76
    %s79 = sadd.s32 %s78, 1
    %p82 = scmp.eq.s32.totalorder %s9, 1
    %p83 = scmp.ne.s32.totalorder %s78, %s80
    %p84 = scmp.eq.s32.totalorder %s9, 0
    %p85 = por %p83, %p84
    %p86 = scmp.ne.s32.totalorder %s78, %s80
    %p87 = scmp.eq.s32.totalorder %s14, 1
    %p88 = por %p86, %p87
    %p89 = scmp.ne.s32.totalorder %s80, %s81
    %p90 = scmp.eq.s32.totalorder %s14, 0
    %p91 = por %p89, %p90
    %p92 = scmp.ne.s32.totalorder %s80, %s81
    %p93 = scmp.eq.s32.totalorder %s15, 1
    %p94 = por %p92, %p93
    %p96 = scmp.ne.s32.totalorder %s81, %s95
    %p97 = scmp.eq.s32.totalorder %s15, 0
    %p98 = por %p96, %p97
    %s99 = ssub.s32 %s16, %s28
    %s100 = ssub.s32 %s17, %s24
    %s101 = sor.u32 %s99, %s100
    %p102 = scmp.eq.s32.totalorder %s101, 0
    %s104 = sadd.s32 %s103, 1
    %s105 = scalar_select %p102, %s103, %s104
    %p108 = pneg %p102
    %p109 = scmp.eq.s32.totalorder %s9, 1
    %p110 = por %p108, %p109
    %p111 = scmp.ne.s32.totalorder %s103, %s106
    %p112 = scmp.eq.s32.totalorder %s9, 0
    %p113 = por %p111, %p112
    %p114 = scmp.ne.s32.totalorder %s103, %s106
    %p115 = scmp.eq.s32.totalorder %s14, 1
    %p116 = por %p114, %p115
    %p117 = scmp.ne.s32.totalorder %s106, %s107
    %p118 = scmp.eq.s32.totalorder %s14, 0
    %p119 = por %p117, %p118
    %p120 = scmp.ne.s32.totalorder %s106, %s107
    %p121 = scmp.eq.s32.totalorder %s15, 1
    %p122 = por %p120, %p121
    %p124 = scmp.ne.s32.totalorder %s107, %s123
    %p125 = scmp.eq.s32.totalorder %s15, 0
    %p126 = por %p124, %p125
    %p127 = scmp.le.s32.totalorder 1, %s9
    %p128 = scmp.lt.s32.totalorder %s9, 3
    %p129 = pnand %p127, %p128
    %p130 = pneg %p129
    // Predicated region
    $region9: #{csp_layer_mhsa1_forward.10} parent=5 // pred_check
      _
    $region10: #{csp_layer_mhsa1_forward.10} parent=5 // pred_check_branch
      %132 = sbr.rel (%p129) target = $region12
    $region11: #{csp_layer_mhsa1_forward.10} parent=5 // pred_region
      %s133 = ssub.s32 %s9, 1
      // Predicated region
      $region13: #{csp_layer_mhsa1_forward.10} parent=11 // pred_check
        %p134 = pneg %p70
      $region14: #{csp_layer_mhsa1_forward.10} parent=11 // pred_check_branch
        %136 = sbr.rel (%p134) target = $region16
      $region15: #{csp_layer_mhsa1_forward.10} parent=11 // pred_region
        _
      $region16: #{csp_layer_mhsa1_forward.10} parent=11 // pred_fallthru
        _
      // Predicated region
      $region17: #{csp_layer_mhsa1_forward.10} parent=11 // pred_check
        %p137 = pneg %p91
      $region18: #{csp_layer_mhsa1_forward.10} parent=11 // pred_check_branch
        %139 = sbr.rel (%p137) target = $region20
      $region19: #{csp_layer_mhsa1_forward.10} parent=11 // pred_region
        _
      $region20: #{csp_layer_mhsa1_forward.10} parent=11 // pred_fallthru
        _
    $region12: #{csp_layer_mhsa1_forward.10} parent=5 // pred_fallthru
      _
    %p140 = scmp.lt.s32.totalorder %s9, 2
    // Predicated region
    $region21: #{csp_layer_mhsa1_forward.10} parent=5 // pred_check
      %p141 = pneg %p140
    $region22: #{csp_layer_mhsa1_forward.10} parent=5 // pred_check_branch
      %143 = sbr.rel (%p141) target = $region24
    $region23: #{csp_layer_mhsa1_forward.10} parent=5 // pred_region
      // Predicated region
      $region25: #{csp_layer_mhsa1_forward.10} parent=23 // pred_check
        %p144 = pneg %p43
      $region26: #{csp_layer_mhsa1_forward.10} parent=23 // pred_check_branch
        %146 = sbr.rel (%p144) target = $region28
      $region27: #{csp_layer_mhsa1_forward.10} parent=23 // pred_region
        %s147 = smul.u32 2, %s17
        %p148 = scmp.lt.s32.totalorder %s16, 1
        %s149 = scalar_select %p148, %s16, 1
        %p150 = scmp.lt.s32.totalorder %s147, 1
        %s151 = scalar_select %p150, %s147, 1
        %s152 = smul.addr %s149, 4
        %s153 = sadd.s32 %s151, %s152
        %s154 = smul.addr %s153, 8
        %s155 = scalar_lea.vmem %s0, %s154
        %s156 = smul.u32 2, %s17
      $region28: #{csp_layer_mhsa1_forward.10} parent=23 // pred_fallthru
        _
    $region24: #{csp_layer_mhsa1_forward.10} parent=5 // pred_fallthru
      _
    %p157 = scmp.le.s32.totalorder 1, %s9
    %p158 = scmp.lt.s32.totalorder %s9, 3
    %p159 = pnand %p157, %p158
    %p160 = pneg %p159
    // Predicated region
    $region29: #{csp_layer_mhsa1_forward.10} parent=5 // pred_check
      _
    $region30: #{csp_layer_mhsa1_forward.10} parent=5 // pred_check_branch
      %162 = sbr.rel (%p159) target = $region32
    $region31: #{csp_layer_mhsa1_forward.10} parent=5 // pred_region
      %s163 = ssub.s32 %s9, 1
      %s164 = smul.u32 2, %s19
      %p165 = scmp.lt.s32.totalorder %s18, 1
      %s166 = scalar_select %p165, %s18, 1
      %p167 = scmp.lt.s32.totalorder %s164, 1
      %s168 = scalar_select %p167, %s164, 1
      %s169 = smul.addr %s166, 4
      %s170 = sadd.s32 %s168, %s169
      %s171 = smul.addr %s170, 8
      %s172 = scalar_lea.vmem %s0, %s171
      %p173 = pneg %p49
      %p174 = pneg %p46
      %p175 = pneg %p70
      %p176 = pneg %p67
      %p177 = pneg %p91
      %p178 = pneg %p88
      %p179 = pneg %p119
      %p180 = pneg %p116
      %s181 = smul.u32 2, %s19
      %p182 = scmp.lt.s32.totalorder %s18, 1
      %s183 = scalar_select %p182, %s18, 1
      %p184 = scmp.lt.s32.totalorder %s181, 1
      %s185 = scalar_select %p184, %s181, 1
      %s186 = smul.addr %s183, 2
      %s187 = sadd.s32 %s185, %s186
      %s188 = smul.addr %s187, 8
      %s189 = scalar_lea.vmem %s3, %s188
      %s190 = smul.u32 2, %s19
      %p191 = scmp.lt.s32.totalorder %s18, 1
      %s192 = scalar_select %p191, %s18, 1
      %p193 = scmp.lt.s32.totalorder %s190, 1
      %s194 = scalar_select %p193, %s190, 1
      %s195 = smul.addr %s192, 4
      %s196 = sadd.s32 %s194, %s195
      %s197 = smul.addr %s196, 8
      %s198 = scalar_lea.vmem %s0, %s197
      %s199 = smul.u32 2, %s19
      %s200 = smul.u32 2, %s19
      %p201 = scmp.lt.s32.totalorder %s18, 1
      %s202 = scalar_select %p201, %s18, 1
      %p203 = scmp.lt.s32.totalorder %s200, 1
      %s204 = scalar_select %p203, %s200, 1
      %s205 = smul.addr %s202, 2
      %s206 = sadd.s32 %s204, %s205
      %s207 = smul.addr %s206, 8
      %s208 = scalar_lea.vmem %s3, %s207
      %s209 = smul.u32 2, %s19
      %v210 = vld [vmem:[%s1] sm:$0xff]
      %v211 = vld [vmem:[%s198] sm:$0xff]
      %v212 = vld [vmem:[%s198 + $0x8] sm:$0xff]
      %v213 = vld [vmem:[%s198 + $0x10] sm:$0xff]
      %v214 = vld [vmem:[%s198 + $0x18] sm:$0xff]
      %v215 = vld [vmem:[%s2] sm:$0xff]
      %217 = vset.pattern.permute.xlu0 0
      %218 = vperm.xlu0 %217, %v215
      %v219 = vpop.permute.xlu0 %218
      %vm221 = vcmask 130048
      %v223 = vsel %vm221, %v210, 0
      %225 = vmatprep.subr.mxu0 %v212
      %226 = vmatpush1.msra.mxu0 %v211
      %227 = vmatprep.subr.mxu0 %v214
      %228 = vmatpush1.msra.mxu0 %v213
      %229 = vmatprep.subr.mxu0 0.0
      %230 = vmatpush1.msra.mxu0 0.0
      %231 = vmatprep.subr.mxu0 0.0
      %232 = vmatpush1.msra.mxu0 0.0
      %233 = vmatprep.subr.mxu0 0.0
      %234 = vmatpush1.msra.mxu0 0.0
      %235 = vmatprep.subr.mxu0 0.0
      %236 = vmatpush1.msra.mxu0 0.0
      %237 = vmatprep.subr.mxu0 0.0
      %238 = vmatpush1.msra.mxu0 0.0
      %239 = vmatprep.subr.mxu0 0.0
      %240 = vmatpush1.msra.mxu0 0.0
      %241 = vmatprep.subr.mxu0 0.0
      %242 = vmatpush1.msra.mxu0 0.0
      %243 = vmatprep.subr.mxu0 0.0
      %244 = vmatpush1.msra.mxu0 0.0
      %245 = vmatprep.subr.mxu0 0.0
      %246 = vmatpush1.msra.mxu0 0.0
      %247 = vmatprep.subr.mxu0 0.0
      %248 = vmatpush1.msra.mxu0 0.0
      %249 = vmatprep.subr.mxu0 0.0
      %250 = vmatpush1.msra.mxu0 0.0
      %251 = vmatprep.subr.mxu0 0.0
      %252 = vmatpush1.msra.mxu0 0.0
      %253 = vmatprep.subr.mxu0 0.0
      %254 = vmatpush1.msra.mxu0 0.0
      %255 = vmatprep.subr.mxu0 0.0
      %256 = vmatpush1.msra.mxu0 0.0
      %257 = vmatprep.subr.mxu0 0.0
      %258 = vmatpush1.msra.mxu0 0.0
      %259 = vmatprep.subr.mxu0 0.0
      %260 = vmatpush1.msra.mxu0 0.0
      %261 = vmatprep.subr.mxu0 0.0
      %262 = vmatpush1.msra.mxu0 0.0
      %263 = vmatprep.subr.mxu0 0.0
      %264 = vmatpush1.msra.mxu0 0.0
      %265 = vmatprep.subr.mxu0 0.0
      %266 = vmatpush1.msra.mxu0 0.0
      %267 = vmatprep.subr.mxu0 0.0
      %268 = vmatpush1.msra.mxu0 0.0
      %269 = vmatprep.subr.mxu0 0.0
      %270 = vmatpush1.msra.mxu0 0.0
      %271 = vmatprep.subr.mxu0 0.0
      %272 = vmatpush1.msra.mxu0 0.0
      %273 = vmatprep.subr.mxu0 0.0
      %274 = vmatpush1.msra.mxu0 0.0
      %275 = vmatprep.subr.mxu0 0.0
      %276 = vmatpush1.msra.mxu0 0.0
      %277 = vmatprep.subr.mxu0 0.0
      %278 = vmatpush1.msra.mxu0 0.0
      %279 = vmatprep.subr.mxu0 0.0
      %280 = vmatpush1.msra.mxu0 0.0
      %281 = vmatprep.subr.mxu0 0.0
      %282 = vmatpush1.msra.mxu0 0.0
      %283 = vmatprep.subr.mxu0 0.0
      %284 = vmatpush1.msra.mxu0 0.0
      %285 = vmatprep.subr.mxu0 0.0
      %286 = vmatpush1.msra.mxu0 0.0
      %287 = vmatprep.subr.mxu0 0.0
      %288 = vmatpush1.msra.mxu0 0.0
      %289 = vmatprep.mubr.f32.mxu0 0.0
      %290 = vmatmul.mubr.f32.gmra.mrb[0].mxu0 %v223
      %v291 = vpop.f32.mrb[0].mxu0
      %v292 = vadd.f32 %v219, %v291
      %v293 = vpop.f32.mrb[0].mxu0
      %v294 = vadd.f32 %v219, %v293
      %295 = vdwg.mxu0
      %v296 = vsub.f32 0.0, %v292
      %v297 = vsub.f32 0.0, %v294
      %v298 = vmul.f32 %v296, 1.442695
      %v299 = vpow.pop %v298
      %v300 = vmul.f32 %v297, 1.442695
      %v301 = vpow.pop %v300
      %v302 = vadd.f32 %v299, 1.0
      %v303 = vadd.f32 %v301, 1.0
      %v304 = vrcp.pop %v302
      %v305 = vmul.f32 1.0, %v304
      %v306 = vrcp.pop %v303
      %v307 = vmul.f32 1.0, %v306
      %v308 = vmul.f32 %v292, %v305
      %v309 = vmul.f32 %v294, %v307
      %310 = vst [vmem:[%s208] sm:$0xff] %v308
      %311 = vst [vmem:[%s208 + $0x8] sm:$0xff] %v309
      %s312 = smul.u32 2, %s19
      %p313 = scmp.lt.s32.totalorder %s18, 1
      %s314 = scalar_select %p313, %s18, 1
      %p315 = scmp.lt.s32.totalorder %s312, 1
      %s316 = scalar_select %p315, %s312, 1
      %s317 = smul.addr %s314, 2
      %s318 = sadd.s32 %s316, %s317
      %s319 = smul.addr %s318, 8
      %s320 = scalar_lea.vmem %s3, %s319
      // Predicated region
      $region33: #{csp_layer_mhsa1_forward.10} parent=31 // pred_check
        %p321 = pneg %p116
      $region34: #{csp_layer_mhsa1_forward.10} parent=31 // pred_check_branch
        %323 = sbr.rel (%p321) target = $region36
      $region35: #{csp_layer_mhsa1_forward.10} parent=31 // pred_region
        %s324 = smul.u32 2, %s19
      $region36: #{csp_layer_mhsa1_forward.10} parent=31 // pred_fallthru
        _
    $region32: #{csp_layer_mhsa1_forward.10} parent=5 // pred_fallthru
      _
    %p325 = scmp.le.s32.totalorder 2, %s9
    // Predicated region
    $region37: #{csp_layer_mhsa1_forward.10} parent=5 // pred_check
      %p326 = pneg %p325
    $region38: #{csp_layer_mhsa1_forward.10} parent=5 // pred_check_branch
      %328 = sbr.rel (%p326) target = $region40
    $region39: #{csp_layer_mhsa1_forward.10} parent=5 // pred_region
      %s329 = ssub.s32 %s9, 2
      // Predicated region
      $region41: #{csp_layer_mhsa1_forward.10} parent=39 // pred_check
        %p330 = pneg %p122
      $region42: #{csp_layer_mhsa1_forward.10} parent=39 // pred_check_branch
        %332 = sbr.rel (%p330) target = $region44
      $region43: #{csp_layer_mhsa1_forward.10} parent=39 // pred_region
        %s333 = smul.u32 2, %s21
        %p334 = scmp.lt.s32.totalorder %s20, 1
        %s335 = scalar_select %p334, %s20, 1
        %p336 = scmp.lt.s32.totalorder %s333, 1
        %s337 = scalar_select %p336, %s333, 1
        %s338 = smul.addr %s335, 2
        %s339 = sadd.s32 %s337, %s338
        %s340 = smul.addr %s339, 8
        %s341 = scalar_lea.vmem %s3, %s340
      $region44: #{csp_layer_mhsa1_forward.10} parent=39 // pred_fallthru
        _
    $region40: #{csp_layer_mhsa1_forward.10} parent=5 // pred_fallthru
      _
  $region6: #{csp_layer_mhsa1_forward.10} parent=0 // loop_footer
    %s13 = sadd.s32 1, %s9
  $region7: #{csp_layer_mhsa1_forward.10} parent=0 // loop_footer_branch
    %8 = sbr.rel target = $region3
  $region8: #{csp_layer_mhsa1_forward.10} parent=0 // loop_exit
    _

// kernel: csp_layer_mhsa1_forward.16
$region0: #{csp_layer_mhsa1_forward.16}
  #allocation0 [shape = 'u32[]', space=smem, size = 0x4, offset = 0x4, fixed_abs, tag = 'smem constant byte address 0x4 - core index']
  #allocation1 [shape = 'u32[144,128]{1,0:T(1,128)}', space=vmem, size = 0x12000, scoped, tag = 'internal scratch']
  %s0 = inlined_call_operand.vmem [shape: f32[2,4,8,256], index: 0, kind: input, shape index: {}]
  %s1 = inlined_call_operand.vmem [shape: f32[2,4,8,256], index: 1, kind: input, shape index: {}]
  %s2 = inlined_call_operand.vmem [shape: f32[2,4,8,256], index: 2, kind: input, shape index: {}]
  %s3 = inlined_call_operand.vmem [shape: f32[2,4,8,256], index: 3, kind: output, shape index: {}]
  %s4 = sld [smem:[#allocation0]]
  $region45: #{csp_layer_mhsa1_forward.16} parent=0
    _
  %s6 = ssub.s32 1, %s4
  %s7 = scalar_select 0, %s6, %s4
  loop: start=0, step=1, limit=10
  $region2: #{csp_layer_mhsa1_forward.16} parent=0 // loop_pre_header
    _
  $region3: #{csp_layer_mhsa1_forward.16} parent=0 // loop_header
    %s9 = sphi 0, %s13
    %p10 = scmp.ge.s32.totalorder %s9, 10
    %s16 = sphi 0, %s28
    %s17 = sphi 0, %s24
    %s18 = sphi 0, %s16
    %s19 = sphi 0, %s17
    %s20 = sphi 0, %s18
    %s21 = sphi 0, %s19
    %s33 = sphi 0, %s35
    %s36 = sphi 0, %s33
    %s37 = sphi 0, %s36
    %s53 = sphi 0, %s37
    %s61 = sphi 0, %s63
    %s64 = sphi 0, %s61
    %s65 = sphi 0, %s64
    %s81 = sphi 0, %s65
    %s89 = sphi 0, %s91
    %s92 = sphi 0, %s89
    %s93 = sphi 0, %s92
    %s109 = sphi 0, %s93
    %s117 = sphi 0, %s119
    %s120 = sphi 0, %s117
    %s121 = sphi 0, %s120
    %s137 = sphi 0, %s121
  $region4: #{csp_layer_mhsa1_forward.16} parent=0 // loop_header_branch
    %12 = sbr.rel (%p10) target = $region8
  $region5: #{csp_layer_mhsa1_forward.16} parent=0 // loop_body
    %s14 = ssub.s32 %s9, 1
    %s15 = ssub.s32 %s9, 2
    %s22 = sadd.s32 1, %s17
    %p23 = scmp.ge.s32.totalorder %s22, 4
    %s24 = scalar_select %p23, 0, %s22
    %s25 = sadd.s32 1, %s16
    %s26 = scalar_select %p23, %s25, %s16
    %p27 = scmp.ge.s32.totalorder %s26, 2
    %s28 = scalar_select %p27, 0, %s26
    %s29 = ssub.s32 %s16, %s28
    %s30 = ssub.s32 %s17, %s24
    %s31 = sor.u32 %s29, %s30
    %p32 = scmp.eq.s32.totalorder %s31, 0
    %s34 = sadd.s32 %s33, 1
    %s35 = scalar_select %p32, %s33, %s34
    %p38 = pneg %p32
    %p39 = scmp.eq.s32.totalorder %s9, 7
    %p40 = por %p38, %p39
    %p41 = scmp.ne.s32.totalorder %s33, %s36
    %p42 = scmp.eq.s32.totalorder %s9, 0
    %p43 = por %p41, %p42
    %p44 = scmp.ne.s32.totalorder %s33, %s36
    %p45 = scmp.eq.s32.totalorder %s14, 7
    %p46 = por %p44, %p45
    %p47 = scmp.ne.s32.totalorder %s36, %s37
    %p48 = scmp.eq.s32.totalorder %s14, 0
    %p49 = por %p47, %p48
    %p50 = scmp.ne.s32.totalorder %s36, %s37
    %p51 = scmp.eq.s32.totalorder %s15, 7
    %p52 = por %p50, %p51
    %p54 = scmp.ne.s32.totalorder %s37, %s53
    %p55 = scmp.eq.s32.totalorder %s15, 0
    %p56 = por %p54, %p55
    %s57 = ssub.s32 %s16, %s28
    %s58 = ssub.s32 %s17, %s24
    %s59 = sor.u32 %s57, %s58
    %p60 = scmp.eq.s32.totalorder %s59, 0
    %s62 = sadd.s32 %s61, 1
    %s63 = scalar_select %p60, %s61, %s62
    %p66 = pneg %p60
    %p67 = scmp.eq.s32.totalorder %s9, 7
    %p68 = por %p66, %p67
    %p69 = scmp.ne.s32.totalorder %s61, %s64
    %p70 = scmp.eq.s32.totalorder %s9, 0
    %p71 = por %p69, %p70
    %p72 = scmp.ne.s32.totalorder %s61, %s64
    %p73 = scmp.eq.s32.totalorder %s14, 7
    %p74 = por %p72, %p73
    %p75 = scmp.ne.s32.totalorder %s64, %s65
    %p76 = scmp.eq.s32.totalorder %s14, 0
    %p77 = por %p75, %p76
    %p78 = scmp.ne.s32.totalorder %s64, %s65
    %p79 = scmp.eq.s32.totalorder %s15, 7
    %p80 = por %p78, %p79
    %p82 = scmp.ne.s32.totalorder %s65, %s81
    %p83 = scmp.eq.s32.totalorder %s15, 0
    %p84 = por %p82, %p83
    %s85 = ssub.s32 %s16, %s28
    %s86 = ssub.s32 %s17, %s24
    %s87 = sor.u32 %s85, %s86
    %p88 = scmp.eq.s32.totalorder %s87, 0
    %s90 = sadd.s32 %s89, 1
    %s91 = scalar_select %p88, %s89, %s90
    %p94 = pneg %p88
    %p95 = scmp.eq.s32.totalorder %s9, 7
    %p96 = por %p94, %p95
    %p97 = scmp.ne.s32.totalorder %s89, %s92
    %p98 = scmp.eq.s32.totalorder %s9, 0
    %p99 = por %p97, %p98
    %p100 = scmp.ne.s32.totalorder %s89, %s92
    %p101 = scmp.eq.s32.totalorder %s14, 7
    %p102 = por %p100, %p101
    %p103 = scmp.ne.s32.totalorder %s92, %s93
    %p104 = scmp.eq.s32.totalorder %s14, 0
    %p105 = por %p103, %p104
    %p106 = scmp.ne.s32.totalorder %s92, %s93
    %p107 = scmp.eq.s32.totalorder %s15, 7
    %p108 = por %p106, %p107
    %p110 = scmp.ne.s32.totalorder %s93, %s109
    %p111 = scmp.eq.s32.totalorder %s15, 0
    %p112 = por %p110, %p111
    %s113 = ssub.s32 %s16, %s28
    %s114 = ssub.s32 %s17, %s24
    %s115 = sor.u32 %s113, %s114
    %p116 = scmp.eq.s32.totalorder %s115, 0
    %s118 = sadd.s32 %s117, 1
    %s119 = scalar_select %p116, %s117, %s118
    %p122 = pneg %p116
    %p123 = scmp.eq.s32.totalorder %s9, 7
    %p124 = por %p122, %p123
    %p125 = scmp.ne.s32.totalorder %s117, %s120
    %p126 = scmp.eq.s32.totalorder %s9, 0
    %p127 = por %p125, %p126
    %p128 = scmp.ne.s32.totalorder %s117, %s120
    %p129 = scmp.eq.s32.totalorder %s14, 7
    %p130 = por %p128, %p129
    %p131 = scmp.ne.s32.totalorder %s120, %s121
    %p132 = scmp.eq.s32.totalorder %s14, 0
    %p133 = por %p131, %p132
    %p134 = scmp.ne.s32.totalorder %s120, %s121
    %p135 = scmp.eq.s32.totalorder %s15, 7
    %p136 = por %p134, %p135
    %p138 = scmp.ne.s32.totalorder %s121, %s137
    %p139 = scmp.eq.s32.totalorder %s15, 0
    %p140 = por %p138, %p139
    %p141 = scmp.le.s32.totalorder 1, %s9
    %p142 = scmp.lt.s32.totalorder %s9, 9
    %p143 = pnand %p141, %p142
    %p144 = pneg %p143
    // Predicated region
    $region9: #{csp_layer_mhsa1_forward.16} parent=5 // pred_check
      _
    $region10: #{csp_layer_mhsa1_forward.16} parent=5 // pred_check_branch
      %146 = sbr.rel (%p143) target = $region12
    $region11: #{csp_layer_mhsa1_forward.16} parent=5 // pred_region
      %s147 = ssub.s32 %s9, 1
    $region12: #{csp_layer_mhsa1_forward.16} parent=5 // pred_fallthru
      _
    %p148 = scmp.lt.s32.totalorder %s9, 8
    // Predicated region
    $region13: #{csp_layer_mhsa1_forward.16} parent=5 // pred_check
      %p149 = pneg %p148
    $region14: #{csp_layer_mhsa1_forward.16} parent=5 // pred_check_branch
      %151 = sbr.rel (%p149) target = $region16
    $region15: #{csp_layer_mhsa1_forward.16} parent=5 // pred_region
      // Predicated region
      $region17: #{csp_layer_mhsa1_forward.16} parent=15 // pred_check
        %p152 = pneg %p43
      $region18: #{csp_layer_mhsa1_forward.16} parent=15 // pred_check_branch
        %154 = sbr.rel (%p152) target = $region20
      $region19: #{csp_layer_mhsa1_forward.16} parent=15 // pred_region
        %p155 = scmp.lt.s32.totalorder %s16, 1
        %s156 = scalar_select %p155, %s16, 1
        %p157 = scmp.lt.s32.totalorder %s17, 3
        %s158 = scalar_select %p157, %s17, 3
        %s159 = smul.addr %s158, 2
        %s160 = smul.addr %s156, 8
        %s161 = sadd.s32 %s159, %s160
        %s162 = smul.addr %s161, 8
        %s163 = scalar_lea.vmem %s0, %s162
      $region20: #{csp_layer_mhsa1_forward.16} parent=15 // pred_fallthru
        _
      // Predicated region
      $region21: #{csp_layer_mhsa1_forward.16} parent=15 // pred_check
        %p164 = pneg %p71
      $region22: #{csp_layer_mhsa1_forward.16} parent=15 // pred_check_branch
        %166 = sbr.rel (%p164) target = $region24
      $region23: #{csp_layer_mhsa1_forward.16} parent=15 // pred_region
        %p167 = scmp.lt.s32.totalorder %s16, 1
        %s168 = scalar_select %p167, %s16, 1
        %p169 = scmp.lt.s32.totalorder %s17, 3
        %s170 = scalar_select %p169, %s17, 3
        %s171 = smul.addr %s170, 2
        %s172 = smul.addr %s168, 8
        %s173 = sadd.s32 %s171, %s172
        %s174 = smul.addr %s173, 8
        %s175 = scalar_lea.vmem %s1, %s174
      $region24: #{csp_layer_mhsa1_forward.16} parent=15 // pred_fallthru
        _
      // Predicated region
      $region25: #{csp_layer_mhsa1_forward.16} parent=15 // pred_check
        %p176 = pneg %p99
      $region26: #{csp_layer_mhsa1_forward.16} parent=15 // pred_check_branch
        %178 = sbr.rel (%p176) target = $region28
      $region27: #{csp_layer_mhsa1_forward.16} parent=15 // pred_region
        %p179 = scmp.lt.s32.totalorder %s16, 1
        %s180 = scalar_select %p179, %s16, 1
        %p181 = scmp.lt.s32.totalorder %s17, 3
        %s182 = scalar_select %p181, %s17, 3
        %s183 = smul.addr %s182, 2
        %s184 = smul.addr %s180, 8
        %s185 = sadd.s32 %s183, %s184
        %s186 = smul.addr %s185, 8
        %s187 = scalar_lea.vmem %s2, %s186
      $region28: #{csp_layer_mhsa1_forward.16} parent=15 // pred_fallthru
        _
    $region16: #{csp_layer_mhsa1_forward.16} parent=5 // pred_fallthru
      _
    %p188 = scmp.le.s32.totalorder 1, %s9
    %p189 = scmp.lt.s32.totalorder %s9, 9
    %p190 = pnand %p188, %p189
    %p191 = pneg %p190
    // Predicated region
    $region29: #{csp_layer_mhsa1_forward.16} parent=5 // pred_check
      _
    $region30: #{csp_layer_mhsa1_forward.16} parent=5 // pred_check_branch
      %193 = sbr.rel (%p190) target = $region32
    $region31: #{csp_layer_mhsa1_forward.16} parent=5 // pred_region
      %s194 = ssub.s32 %s9, 1
      %p195 = scmp.lt.s32.totalorder %s18, 1
      %s196 = scalar_select %p195, %s18, 1
      %p197 = scmp.lt.s32.totalorder %s19, 3
      %s198 = scalar_select %p197, %s19, 3
      %s199 = smul.addr %s198, 2
      %s200 = smul.addr %s196, 8
      %s201 = sadd.s32 %s199, %s200
      %s202 = smul.addr %s201, 8
      %s203 = scalar_lea.vmem %s0, %s202
      %p204 = pneg %p49
      %p205 = pneg %p46
      %p206 = scmp.lt.s32.totalorder %s18, 1
      %s207 = scalar_select %p206, %s18, 1
      %p208 = scmp.lt.s32.totalorder %s19, 3
      %s209 = scalar_select %p208, %s19, 3
      %s210 = smul.addr %s209, 2
      %s211 = smul.addr %s207, 8
      %s212 = sadd.s32 %s210, %s211
      %s213 = smul.addr %s212, 8
      %s214 = scalar_lea.vmem %s1, %s213
      %p215 = pneg %p77
      %p216 = pneg %p74
      %p217 = scmp.lt.s32.totalorder %s18, 1
      %s218 = scalar_select %p217, %s18, 1
      %p219 = scmp.lt.s32.totalorder %s19, 3
      %s220 = scalar_select %p219, %s19, 3
      %s221 = smul.addr %s220, 2
      %s222 = smul.addr %s218, 8
      %s223 = sadd.s32 %s221, %s222
      %s224 = smul.addr %s223, 8
      %s225 = scalar_lea.vmem %s2, %s224
      %p226 = pneg %p105
      %p227 = pneg %p102
      %p228 = pneg %p133
      %p229 = pneg %p130
      %p230 = scmp.lt.s32.totalorder %s18, 1
      %s231 = scalar_select %p230, %s18, 1
      %p232 = scmp.lt.s32.totalorder %s19, 3
      %s233 = scalar_select %p232, %s19, 3
      %s234 = smul.addr %s233, 2
      %s235 = smul.addr %s231, 8
      %s236 = sadd.s32 %s234, %s235
      %s237 = smul.addr %s236, 8
      %s238 = scalar_lea.vmem %s3, %s237
      %p239 = scmp.lt.s32.totalorder %s18, 1
      %s240 = scalar_select %p239, %s18, 1
      %p241 = scmp.lt.s32.totalorder %s19, 3
      %s242 = scalar_select %p241, %s19, 3
      %s243 = smul.addr %s242, 2
      %s244 = smul.addr %s240, 8
      %s245 = sadd.s32 %s243, %s244
      %s246 = smul.addr %s245, 8
      %s247 = scalar_lea.vmem %s0, %s246
      %p248 = scmp.lt.s32.totalorder %s18, 1
      %s249 = scalar_select %p248, %s18, 1
      %p250 = scmp.lt.s32.totalorder %s19, 3
      %s251 = scalar_select %p250, %s19, 3
      %s252 = smul.addr %s251, 2
      %s253 = smul.addr %s249, 8
      %s254 = sadd.s32 %s252, %s253
      %s255 = smul.addr %s254, 8
      %s256 = scalar_lea.vmem %s1, %s255
      %p257 = scmp.lt.s32.totalorder %s18, 1
      %s258 = scalar_select %p257, %s18, 1
      %p259 = scmp.lt.s32.totalorder %s19, 3
      %s260 = scalar_select %p259, %s19, 3
      %s261 = smul.addr %s260, 2
      %s262 = smul.addr %s258, 8
      %s263 = sadd.s32 %s261, %s262
      %s264 = smul.addr %s263, 8
      %s265 = scalar_lea.vmem %s2, %s264
      %p266 = scmp.lt.s32.totalorder %s18, 1
      %s267 = scalar_select %p266, %s18, 1
      %p268 = scmp.lt.s32.totalorder %s19, 3
      %s269 = scalar_select %p268, %s19, 3
      %s270 = smul.addr %s269, 2
      %s271 = smul.addr %s267, 8
      %s272 = sadd.s32 %s270, %s271
      %s273 = smul.addr %s272, 8
      %s274 = scalar_lea.vmem %s3, %s273
      %v275 = vld [vmem:[%s247] sm:$0xff]
      %v276 = vld [vmem:[%s247 + $0x8] sm:$0xff]
      %v277 = vld [vmem:[%s256] sm:$0xff]
      %v278 = vld [vmem:[%s256 + $0x8] sm:$0xff]
      %v279 = vld [vmem:[%s265] sm:$0xff]
      %v280 = vld [vmem:[%s265 + $0x8] sm:$0xff]
      %281 = vxpose.xlu0.b32.start [1/16] %v275, 128
      %282 = vxpose.xlu0.b32.cont [2/16] 0.0, 128
      %283 = vxpose.xlu0.b32.cont [3/16] 0.0, 128
      %284 = vxpose.xlu0.b32.cont [4/16] 0.0, 128
      %285 = vxpose.xlu0.b32.cont [5/16] 0.0, 128
      %286 = vxpose.xlu0.b32.cont [6/16] 0.0, 128
      %287 = vxpose.xlu0.b32.cont [7/16] 0.0, 128
      %288 = vxpose.xlu0.b32.cont [8/16] 0.0, 128
      %289 = vxpose.xlu0.b32.cont [9/16] 0.0, 128
      %290 = vxpose.xlu0.b32.cont [10/16] 0.0, 128
      %291 = vxpose.xlu0.b32.cont [11/16] 0.0, 128
      %292 = vxpose.xlu0.b32.cont [12/16] 0.0, 128
      %293 = vxpose.xlu0.b32.cont [13/16] 0.0, 128
      %294 = vxpose.xlu0.b32.cont [14/16] 0.0, 128
      %295 = vxpose.xlu0.b32.cont [15/16] 0.0, 128
      %296 = vxpose.xlu0.b32.end [16/16] 0.0, 128
      %v297 = vpop.trf.xlu0
      %v298 = vpop.trf.xlu0
      %v299 = vpop.trf.xlu0
      %v300 = vpop.trf.xlu0
      %v301 = vpop.trf.xlu0
      %v302 = vpop.trf.xlu0
      %v303 = vpop.trf.xlu0
      %v304 = vpop.trf.xlu0
      %v305 = vpop.trf.xlu0
      %v306 = vpop.trf.xlu0
      %v307 = vpop.trf.xlu0
      %v308 = vpop.trf.xlu0
      %v309 = vpop.trf.xlu0
      %v310 = vpop.trf.xlu0
      %v311 = vpop.trf.xlu0
      %v312 = vpop.trf.xlu0
      %313 = vxpose.xlu0.b32.start [1/16] %v276, 128
      %314 = vxpose.xlu0.b32.cont [2/16] 0.0, 128
      %315 = vxpose.xlu0.b32.cont [3/16] 0.0, 128
      %316 = vxpose.xlu0.b32.cont [4/16] 0.0, 128
      %317 = vxpose.xlu0.b32.cont [5/16] 0.0, 128
      %318 = vxpose.xlu0.b32.cont [6/16] 0.0, 128
      %319 = vxpose.xlu0.b32.cont [7/16] 0.0, 128
      %320 = vxpose.xlu0.b32.cont [8/16] 0.0, 128
      %321 = vxpose.xlu0.b32.cont [9/16] 0.0, 128
      %322 = vxpose.xlu0.b32.cont [10/16] 0.0, 128
      %323 = vxpose.xlu0.b32.cont [11/16] 0.0, 128
      %324 = vxpose.xlu0.b32.cont [12/16] 0.0, 128
      %325 = vxpose.xlu0.b32.cont [13/16] 0.0, 128
      %326 = vxpose.xlu0.b32.cont [14/16] 0.0, 128
      %327 = vxpose.xlu0.b32.cont [15/16] 0.0, 128
      %328 = vxpose.xlu0.b32.end [16/16] 0.0, 128
      %v329 = vpop.trf.xlu0
      %v330 = vpop.trf.xlu0
      %v331 = vpop.trf.xlu0
      %v332 = vpop.trf.xlu0
      %v333 = vpop.trf.xlu0
      %v334 = vpop.trf.xlu0
      %v335 = vpop.trf.xlu0
      %v336 = vpop.trf.xlu0
      %v337 = vpop.trf.xlu0
      %v338 = vpop.trf.xlu0
      %v339 = vpop.trf.xlu0
      %v340 = vpop.trf.xlu0
      %v341 = vpop.trf.xlu0
      %v342 = vpop.trf.xlu0
      %v343 = vpop.trf.xlu0
      %v344 = vpop.trf.xlu0
      %vm345 = vcmask 64512
      %v347 = vsel %vm345, %v297, 0
      %v350 = vsel %vm345, %v298, 0
      %v353 = vsel %vm345, %v299, 0
      %v356 = vsel %vm345, %v300, 0
      %v359 = vsel %vm345, %v301, 0
      %v362 = vsel %vm345, %v302, 0
      %v365 = vsel %vm345, %v303, 0
      %v368 = vsel %vm345, %v304, 0
      %v371 = vsel %vm345, %v305, 0
      %v374 = vsel %vm345, %v306, 0
      %v377 = vsel %vm345, %v307, 0
      %v380 = vsel %vm345, %v308, 0
      %v383 = vsel %vm345, %v309, 0
      %v386 = vsel %vm345, %v310, 0
      %v389 = vsel %vm345, %v311, 0
      %v392 = vsel %vm345, %v312, 0
      %v395 = vsel %vm345, %v329, 0
      %v398 = vsel %vm345, %v330, 0
      %v401 = vsel %vm345, %v331, 0
      %v404 = vsel %vm345, %v332, 0
      %v407 = vsel %vm345, %v333, 0
      %v410 = vsel %vm345, %v334, 0
      %v413 = vsel %vm345, %v335, 0
      %v416 = vsel %vm345, %v336, 0
      %v419 = vsel %vm345, %v337, 0
      %v422 = vsel %vm345, %v338, 0
      %v425 = vsel %vm345, %v339, 0
      %v428 = vsel %vm345, %v340, 0
      %v431 = vsel %vm345, %v341, 0
      %v434 = vsel %vm345, %v342, 0
      %v437 = vsel %vm345, %v343, 0
      %v440 = vsel %vm345, %v344, 0
      %442 = vmatprep.subr.mxu0 %v278
      %443 = vmatpush1.msra.mxu0 %v277
      %444 = vmatprep.subr.mxu0 0.0
      %445 = vmatpush1.msra.mxu0 0.0
      %446 = vmatprep.subr.mxu0 0.0
      %447 = vmatpush1.msra.mxu0 0.0
      %448 = vmatprep.subr.mxu0 0.0
      %449 = vmatpush1.msra.mxu0 0.0
      %450 = vmatprep.subr.mxu0 0.0
      %451 = vmatpush1.msra.mxu0 0.0
      %452 = vmatprep.subr.mxu0 0.0
      %453 = vmatpush1.msra.mxu0 0.0
      %454 = vmatprep.subr.mxu0 0.0
      %455 = vmatpush1.msra.mxu0 0.0
      %456 = vmatprep.subr.mxu0 0.0
      %457 = vmatpush1.msra.mxu0 0.0
      %458 = vmatprep.subr.mxu0 0.0
      %459 = vmatpush1.msra.mxu0 0.0
      %460 = vmatprep.subr.mxu0 0.0
      %461 = vmatpush1.msra.mxu0 0.0
      %462 = vmatprep.subr.mxu0 0.0
      %463 = vmatpush1.msra.mxu0 0.0
      %464 = vmatprep.subr.mxu0 0.0
      %465 = vmatpush1.msra.mxu0 0.0
      %466 = vmatprep.subr.mxu0 0.0
      %467 = vmatpush1.msra.mxu0 0.0
      %468 = vmatprep.subr.mxu0 0.0
      %469 = vmatpush1.msra.mxu0 0.0
      %470 = vmatprep.subr.mxu0 0.0
      %471 = vmatpush1.msra.mxu0 0.0
      %472 = vmatprep.subr.mxu0 0.0
      %473 = vmatpush1.msra.mxu0 0.0
      %474 = vmatprep.subr.mxu0 0.0
      %475 = vmatpush1.msra.mxu0 0.0
      %476 = vmatprep.subr.mxu0 0.0
      %477 = vmatpush1.msra.mxu0 0.0
      %478 = vmatprep.subr.mxu0 0.0
      %479 = vmatpush1.msra.mxu0 0.0
      %480 = vmatprep.subr.mxu0 0.0
      %481 = vmatpush1.msra.mxu0 0.0
      %482 = vmatprep.subr.mxu0 0.0
      %483 = vmatpush1.msra.mxu0 0.0
      %484 = vmatprep.subr.mxu0 0.0
      %485 = vmatpush1.msra.mxu0 0.0
      %486 = vmatprep.subr.mxu0 0.0
      %487 = vmatpush1.msra.mxu0 0.0
      %488 = vmatprep.subr.mxu0 0.0
      %489 = vmatpush1.msra.mxu0 0.0
      %490 = vmatprep.subr.mxu0 0.0
      %491 = vmatpush1.msra.mxu0 0.0
      %492 = vmatprep.subr.mxu0 0.0
      %493 = vmatpush1.msra.mxu0 0.0
      %494 = vmatprep.subr.mxu0 0.0
      %495 = vmatpush1.msra.mxu0 0.0
      %496 = vmatprep.subr.mxu0 0.0
      %497 = vmatpush1.msra.mxu0 0.0
      %498 = vmatprep.subr.mxu0 0.0
      %499 = vmatpush1.msra.mxu0 0.0
      %500 = vmatprep.subr.mxu0 0.0
      %501 = vmatpush1.msra.mxu0 0.0
      %502 = vmatprep.subr.mxu0 0.0
      %503 = vmatpush1.msra.mxu0 0.0
      %504 = vmatprep.subr.mxu0 0.0
      %505 = vmatpush1.msra.mxu0 0.0
      %506 = vmatprep.mubr.f32.mxu0 0.0
      %507 = vmatmul.mubr.f32.gmra.mrb[0].mxu0 %v347
      %v508 = vpop.f32.mrb[0].mxu0
      %v509 = vadd.f32 0.0, %v508
      %v510 = vpop.f32.mrb[0].mxu0
      %v511 = vadd.f32 0.0, %v510
      %512 = vmatprep.mubr.f32.mxu0 0.0
      %513 = vmatmul.mubr.f32.gmra.mrb[0].mxu0 %v350
      %v514 = vpop.f32.mrb[0].mxu0
      %v515 = vadd.f32 0.0, %v514
      %v516 = vpop.f32.mrb[0].mxu0
      %v517 = vadd.f32 0.0, %v516
      %518 = vmatprep.mubr.f32.mxu0 0.0
      %519 = vmatmul.mubr.f32.gmra.mrb[0].mxu0 %v353
      %v520 = vpop.f32.mrb[0].mxu0
      %v521 = vadd.f32 0.0, %v520
      %v522 = vpop.f32.mrb[0].mxu0
      %v523 = vadd.f32 0.0, %v522
      %524 = vmatprep.mubr.f32.mxu0 0.0
      %525 = vmatmul.mubr.f32.gmra.mrb[0].mxu0 %v356
      %v526 = vpop.f32.mrb[0].mxu0
      %v527 = vadd.f32 0.0, %v526
      %v528 = vpop.f32.mrb[0].mxu0
      %v529 = vadd.f32 0.0, %v528
      %530 = vmatprep.mubr.f32.mxu0 0.0
      %531 = vmatmul.mubr.f32.gmra.mrb[0].mxu0 %v359
      %v532 = vpop.f32.mrb[0].mxu0
      %v533 = vadd.f32 0.0, %v532
      %v534 = vpop.f32.mrb[0].mxu0
      %v535 = vadd.f32 0.0, %v534
      %536 = vmatprep.mubr.f32.mxu0 0.0
      %537 = vmatmul.mubr.f32.gmra.mrb[0].mxu0 %v362
      %v538 = vpop.f32.mrb[0].mxu0
      %v539 = vadd.f32 0.0, %v538
      %v540 = vpop.f32.mrb[0].mxu0
      %v541 = vadd.f32 0.0, %v540
      %542 = vmatprep.mubr.f32.mxu0 0.0
      %543 = vmatmul.mubr.f32.gmra.mrb[0].mxu0 %v365
      %v544 = vpop.f32.mrb[0].mxu0
      %v545 = vadd.f32 0.0, %v544
      %v546 = vpop.f32.mrb[0].mxu0
      %v547 = vadd.f32 0.0, %v546
      %548 = vmatprep.mubr.f32.mxu0 0.0
      %549 = vmatmul.mubr.f32.gmra.mrb[0].mxu0 %v368
      %v550 = vpop.f32.mrb[0].mxu0
      %v551 = vadd.f32 0.0, %v550
      %v552 = vpop.f32.mrb[0].mxu0
      %v553 = vadd.f32 0.0, %v552
      %554 = vmatprep.mubr.f32.mxu0 0.0
      %555 = vmatmul.mubr.f32.gmra.mrb[0].mxu0 %v371
      %v556 = vpop.f32.mrb[0].mxu0
      %v557 = vadd.f32 0.0, %v556
      %v558 = vpop.f32.mrb[0].mxu0
      %v559 = vadd.f32 0.0, %v558
      %560 = vmatprep.mubr.f32.mxu0 0.0
      %561 = vmatmul.mubr.f32.gmra.mrb[0].mxu0 %v374
      %v562 = vpop.f32.mrb[0].mxu0
      %v563 = vadd.f32 0.0, %v562
      %v564 = vpop.f32.mrb[0].mxu0
      %v565 = vadd.f32 0.0, %v564
      %566 = vmatprep.mubr.f32.mxu0 0.0
      %567 = vmatmul.mubr.f32.gmra.mrb[0].mxu0 %v377
      %v568 = vpop.f32.mrb[0].mxu0
      %v569 = vadd.f32 0.0, %v568
      %v570 = vpop.f32.mrb[0].mxu0
      %v571 = vadd.f32 0.0, %v570
      %572 = vmatprep.mubr.f32.mxu0 0.0
      %573 = vmatmul.mubr.f32.gmra.mrb[0].mxu0 %v380
      %v574 = vpop.f32.mrb[0].mxu0
      %v575 = vadd.f32 0.0, %v574
      %v576 = vpop.f32.mrb[0].mxu0
      %v577 = vadd.f32 0.0, %v576
      %578 = vmatprep.mubr.f32.mxu0 0.0
      %579 = vmatmul.mubr.f32.gmra.mrb[0].mxu0 %v383
      %v580 = vpop.f32.mrb[0].mxu0
      %v581 = vadd.f32 0.0, %v580
      %v582 = vpop.f32.mrb[0].mxu0
      %v583 = vadd.f32 0.0, %v582
      %584 = vmatprep.mubr.f32.mxu0 0.0
      %585 = vmatmul.mubr.f32.gmra.mrb[0].mxu0 %v386
      %v586 = vpop.f32.mrb[0].mxu0
      %v587 = vadd.f32 0.0, %v586
      %v588 = vpop.f32.mrb[0].mxu0
      %v589 = vadd.f32 0.0, %v588
      %590 = vmatprep.mubr.f32.mxu0 0.0
      %591 = vmatmul.mubr.f32.gmra.mrb[0].mxu0 %v389
      %v592 = vpop.f32.mrb[0].mxu0
      %v593 = vadd.f32 0.0, %v592
      %v594 = vpop.f32.mrb[0].mxu0
      %v595 = vadd.f32 0.0, %v594
      %596 = vmatprep.mubr.f32.mxu0 0.0
      %597 = vmatmul.mubr.f32.gmra.mrb[0].mxu0 %v392
      %v598 = vpop.f32.mrb[0].mxu0
      %v599 = vadd.f32 0.0, %v598
      %v600 = vpop.f32.mrb[0].mxu0
      %v601 = vadd.f32 0.0, %v600
      %602 = vmatprep.mubr.f32.mxu0 0.0
      %603 = vmatmul.mubr.f32.gmra.mrb[0].mxu0 %v395
      %v604 = vpop.f32.mrb[0].mxu0
      %v605 = vadd.f32 0.0, %v604
      %v606 = vpop.f32.mrb[0].mxu0
      %v607 = vadd.f32 0.0, %v606
      %608 = vmatprep.mubr.f32.mxu0 0.0
      %609 = vmatmul.mubr.f32.gmra.mrb[0].mxu0 %v398
      %v610 = vpop.f32.mrb[0].mxu0
      %v611 = vadd.f32 0.0, %v610
      %v612 = vpop.f32.mrb[0].mxu0
      %v613 = vadd.f32 0.0, %v612
      %614 = vmatprep.mubr.f32.mxu0 0.0
      %615 = vmatmul.mubr.f32.gmra.mrb[0].mxu0 %v401
      %v616 = vpop.f32.mrb[0].mxu0
      %v617 = vadd.f32 0.0, %v616
      %v618 = vpop.f32.mrb[0].mxu0
      %v619 = vadd.f32 0.0, %v618
      %620 = vmatprep.mubr.f32.mxu0 0.0
      %621 = vmatmul.mubr.f32.gmra.mrb[0].mxu0 %v404
      %v622 = vpop.f32.mrb[0].mxu0
      %v623 = vadd.f32 0.0, %v622
      %v624 = vpop.f32.mrb[0].mxu0
      %v625 = vadd.f32 0.0, %v624
      %626 = vmatprep.mubr.f32.mxu0 0.0
      %627 = vmatmul.mubr.f32.gmra.mrb[0].mxu0 %v407
      %v628 = vpop.f32.mrb[0].mxu0
      %v629 = vadd.f32 0.0, %v628
      %v630 = vpop.f32.mrb[0].mxu0
      %v631 = vadd.f32 0.0, %v630
      %632 = vmatprep.mubr.f32.mxu0 0.0
      %633 = vmatmul.mubr.f32.gmra.mrb[0].mxu0 %v410
      %v634 = vpop.f32.mrb[0].mxu0
      %v635 = vadd.f32 0.0, %v634
      %v636 = vpop.f32.mrb[0].mxu0
      %v637 = vadd.f32 0.0, %v636
      %638 = vmatprep.mubr.f32.mxu0 0.0
      %639 = vmatmul.mubr.f32.gmra.mrb[0].mxu0 %v413
      %v640 = vpop.f32.mrb[0].mxu0
      %v641 = vadd.f32 0.0, %v640
      %v642 = vpop.f32.mrb[0].mxu0
      %v643 = vadd.f32 0.0, %v642
      %644 = vmatprep.mubr.f32.mxu0 0.0
      %645 = vmatmul.mubr.f32.gmra.mrb[0].mxu0 %v416
      %v646 = vpop.f32.mrb[0].mxu0
      %v647 = vadd.f32 0.0, %v646
      %v648 = vpop.f32.mrb[0].mxu0
      %v649 = vadd.f32 0.0, %v648
      %650 = vmatprep.mubr.f32.mxu0 0.0
      %651 = vmatmul.mubr.f32.gmra.mrb[0].mxu0 %v419
      %v652 = vpop.f32.mrb[0].mxu0
      %v653 = vadd.f32 0.0, %v652
      %v654 = vpop.f32.mrb[0].mxu0
      %v655 = vadd.f32 0.0, %v654
      %656 = vmatprep.mubr.f32.mxu0 0.0
      %657 = vmatmul.mubr.f32.gmra.mrb[0].mxu0 %v422
      %v658 = vpop.f32.mrb[0].mxu0
      %v659 = vadd.f32 0.0, %v658
      %v660 = vpop.f32.mrb[0].mxu0
      %v661 = vadd.f32 0.0, %v660
      %662 = vmatprep.mubr.f32.mxu0 0.0
      %663 = vmatmul.mubr.f32.gmra.mrb[0].mxu0 %v425
      %v664 = vpop.f32.mrb[0].mxu0
      %v665 = vadd.f32 0.0, %v664
      %v666 = vpop.f32.mrb[0].mxu0
      %v667 = vadd.f32 0.0, %v666
      %668 = vmatprep.mubr.f32.mxu0 0.0
      %669 = vmatmul.mubr.f32.gmra.mrb[0].mxu0 %v428
      %v670 = vpop.f32.mrb[0].mxu0
      %v671 = vadd.f32 0.0, %v670
      %v672 = vpop.f32.mrb[0].mxu0
      %v673 = vadd.f32 0.0, %v672
      %674 = vmatprep.mubr.f32.mxu0 0.0
      %675 = vmatmul.mubr.f32.gmra.mrb[0].mxu0 %v431
      %v676 = vpop.f32.mrb[0].mxu0
      %v677 = vadd.f32 0.0, %v676
      %v678 = vpop.f32.mrb[0].mxu0
      %v679 = vadd.f32 0.0, %v678
      %680 = vmatprep.mubr.f32.mxu0 0.0
      %681 = vmatmul.mubr.f32.gmra.mrb[0].mxu0 %v434
      %v682 = vpop.f32.mrb[0].mxu0
      %v683 = vadd.f32 0.0, %v682
      %v684 = vpop.f32.mrb[0].mxu0
      %v685 = vadd.f32 0.0, %v684
      %686 = vmatprep.mubr.f32.mxu0 0.0
      %687 = vmatmul.mubr.f32.gmra.mrb[0].mxu0 %v437
      %v688 = vpop.f32.mrb[0].mxu0
      %v689 = vadd.f32 0.0, %v688
      %v690 = vpop.f32.mrb[0].mxu0
      %v691 = vadd.f32 0.0, %v690
      %692 = vmatprep.mubr.f32.mxu0 0.0
      %693 = vmatmul.mubr.f32.gmra.mrb[0].mxu0 %v440
      %v694 = vpop.f32.mrb[0].mxu0
      %v695 = vadd.f32 0.0, %v694
      %v696 = vpop.f32.mrb[0].mxu0
      %v697 = vadd.f32 0.0, %v696
      %698 = vdwg.mxu0
      %v699 = vmax.f32 %v509, %v511
      %700 = vmax.xlane.f32.xlu0 %v699
      %v701 = vpop.xlane.xlu0 %700
      %v702 = vmax.f32 %v515, %v517
      %703 = vmax.xlane.f32.xlu0 %v702
      %v704 = vpop.xlane.xlu0 %703
      %v705 = vmax.f32 %v521, %v523
      %706 = vmax.xlane.f32.xlu0 %v705
      %v707 = vpop.xlane.xlu0 %706
      %v708 = vmax.f32 %v527, %v529
      %709 = vmax.xlane.f32.xlu0 %v708
      %v710 = vpop.xlane.xlu0 %709
      %v711 = vmax.f32 %v533, %v535
      %712 = vmax.xlane.f32.xlu0 %v711
      %v713 = vpop.xlane.xlu0 %712
      %v714 = vmax.f32 %v539, %v541
      %715 = vmax.xlane.f32.xlu0 %v714
      %v716 = vpop.xlane.xlu0 %715
      %v717 = vmax.f32 %v545, %v547
      %718 = vmax.xlane.f32.xlu0 %v717
      %v719 = vpop.xlane.xlu0 %718
      %v720 = vmax.f32 %v551, %v553
      %721 = vmax.xlane.f32.xlu0 %v720
      %v722 = vpop.xlane.xlu0 %721
      %v723 = vmax.f32 %v557, %v559
      %724 = vmax.xlane.f32.xlu0 %v723
      %v725 = vpop.xlane.xlu0 %724
      %v726 = vmax.f32 %v563, %v565
      %727 = vmax.xlane.f32.xlu0 %v726
      %v728 = vpop.xlane.xlu0 %727
      %v729 = vmax.f32 %v569, %v571
      %730 = vmax.xlane.f32.xlu0 %v729
      %v731 = vpop.xlane.xlu0 %730
      %v732 = vmax.f32 %v575, %v577
      %733 = vmax.xlane.f32.xlu0 %v732
      %v734 = vpop.xlane.xlu0 %733
      %v735 = vmax.f32 %v581, %v583
      %736 = vmax.xlane.f32.xlu0 %v735
      %v737 = vpop.xlane.xlu0 %736
      %v738 = vmax.f32 %v587, %v589
      %739 = vmax.xlane.f32.xlu0 %v738
      %v740 = vpop.xlane.xlu0 %739
      %v741 = vmax.f32 %v593, %v595
      %742 = vmax.xlane.f32.xlu0 %v741
      %v743 = vpop.xlane.xlu0 %742
      %v744 = vmax.f32 %v599, %v601
      %745 = vmax.xlane.f32.xlu0 %v744
      %v746 = vpop.xlane.xlu0 %745
      %v747 = vmax.f32 %v605, %v607
      %748 = vmax.xlane.f32.xlu0 %v747
      %v749 = vpop.xlane.xlu0 %748
      %v750 = vmax.f32 %v611, %v613
      %751 = vmax.xlane.f32.xlu0 %v750
      %v752 = vpop.xlane.xlu0 %751
      %v753 = vmax.f32 %v617, %v619
      %754 = vmax.xlane.f32.xlu0 %v753
      %v755 = vpop.xlane.xlu0 %754
      %v756 = vmax.f32 %v623, %v625
      %757 = vmax.xlane.f32.xlu0 %v756
      %v758 = vpop.xlane.xlu0 %757
      %v759 = vmax.f32 %v629, %v631
      %760 = vmax.xlane.f32.xlu0 %v759
      %v761 = vpop.xlane.xlu0 %760
      %v762 = vmax.f32 %v635, %v637
      %763 = vmax.xlane.f32.xlu0 %v762
      %v764 = vpop.xlane.xlu0 %763
      %v765 = vmax.f32 %v641, %v643
      %766 = vmax.xlane.f32.xlu0 %v765
      %v767 = vpop.xlane.xlu0 %766
      %v768 = vmax.f32 %v647, %v649
      %769 = vmax.xlane.f32.xlu0 %v768
      %v770 = vpop.xlane.xlu0 %769
      %v771 = vmax.f32 %v653, %v655
      %772 = vmax.xlane.f32.xlu0 %v771
      %v773 = vpop.xlane.xlu0 %772
      %v774 = vmax.f32 %v659, %v661
      %775 = vmax.xlane.f32.xlu0 %v774
      %v776 = vpop.xlane.xlu0 %775
      %v777 = vmax.f32 %v665, %v667
      %778 = vmax.xlane.f32.xlu0 %v777
      %v779 = vpop.xlane.xlu0 %778
      %v780 = vmax.f32 %v671, %v673
      %781 = vmax.xlane.f32.xlu0 %v780
      %v782 = vpop.xlane.xlu0 %781
      %v783 = vmax.f32 %v677, %v679
      %784 = vmax.xlane.f32.xlu0 %v783
      %v785 = vpop.xlane.xlu0 %784
      %v786 = vmax.f32 %v683, %v685
      %787 = vmax.xlane.f32.xlu0 %v786
      %v788 = vpop.xlane.xlu0 %787
      %v789 = vmax.f32 %v689, %v691
      %790 = vmax.xlane.f32.xlu0 %v789
      %v791 = vpop.xlane.xlu0 %790
      %v792 = vmax.f32 %v695, %v697
      %793 = vmax.xlane.f32.xlu0 %v792
      %v794 = vpop.xlane.xlu0 %793
      %v795 = vsub.f32 %v509, %v701
      %v796 = vsub.f32 %v511, %v701
      %v797 = vsub.f32 %v515, %v704
      %v798 = vsub.f32 %v517, %v704
      %v799 = vsub.f32 %v521, %v707
      %v800 = vsub.f32 %v523, %v707
      %v801 = vsub.f32 %v527, %v710
      %v802 = vsub.f32 %v529, %v710
      %v803 = vsub.f32 %v533, %v713
      %v804 = vsub.f32 %v535, %v713
      %v805 = vsub.f32 %v539, %v716
      %v806 = vsub.f32 %v541, %v716
      %v807 = vsub.f32 %v545, %v719
      %v808 = vsub.f32 %v547, %v719
      %v809 = vsub.f32 %v551, %v722
      %v810 = vsub.f32 %v553, %v722
      %v811 = vsub.f32 %v557, %v725
      %v812 = vsub.f32 %v559, %v725
      %v813 = vsub.f32 %v563, %v728
      %v814 = vsub.f32 %v565, %v728
      %v815 = vsub.f32 %v569, %v731
      %v816 = vsub.f32 %v571, %v731
      %v817 = vsub.f32 %v575, %v734
      %v818 = vsub.f32 %v577, %v734
      %v819 = vsub.f32 %v581, %v737
      %v820 = vsub.f32 %v583, %v737
      %v821 = vsub.f32 %v587, %v740
      %v822 = vsub.f32 %v589, %v740
      %v823 = vsub.f32 %v593, %v743
      %v824 = vsub.f32 %v595, %v743
      %v825 = vsub.f32 %v599, %v746
      %v826 = vsub.f32 %v601, %v746
      %v827 = vsub.f32 %v605, %v749
      %v828 = vsub.f32 %v607, %v749
      %v829 = vsub.f32 %v611, %v752
      %v830 = vsub.f32 %v613, %v752
      %v831 = vsub.f32 %v617, %v755
      %v832 = vsub.f32 %v619, %v755
      %v833 = vsub.f32 %v623, %v758
      %v834 = vsub.f32 %v625, %v758
      %v835 = vsub.f32 %v629, %v761
      %v836 = vsub.f32 %v631, %v761
      %v837 = vsub.f32 %v635, %v764
      %v838 = vsub.f32 %v637, %v764
      %v839 = vsub.f32 %v641, %v767
      %v840 = vsub.f32 %v643, %v767
      %v841 = vsub.f32 %v647, %v770
      %v842 = vsub.f32 %v649, %v770
      %v843 = vsub.f32 %v653, %v773
      %v844 = vsub.f32 %v655, %v773
      %v845 = vsub.f32 %v659, %v776
      %v846 = vsub.f32 %v661, %v776
      %v847 = vsub.f32 %v665, %v779
      %v848 = vsub.f32 %v667, %v779
      %v849 = vsub.f32 %v671, %v782
      %v850 = vsub.f32 %v673, %v782
      %v851 = vsub.f32 %v677, %v785
      %v852 = vsub.f32 %v679, %v785
      %v853 = vsub.f32 %v683, %v788
      %v854 = vsub.f32 %v685, %v788
      %v855 = vsub.f32 %v689, %v791
      %v856 = vsub.f32 %v691, %v791
      %v857 = vsub.f32 %v695, %v794
      %v858 = vsub.f32 %v697, %v794
      %v859 = vmul.f32 %v795, 1.442695
      %v860 = vpow.pop %v859
      %v861 = vmul.f32 %v796, 1.442695
      %v862 = vpow.pop %v861
      %v863 = vmul.f32 %v797, 1.442695
      %v864 = vpow.pop %v863
      %v865 = vmul.f32 %v798, 1.442695
      %v866 = vpow.pop %v865
      %v867 = vmul.f32 %v799, 1.442695
      %v868 = vpow.pop %v867
      %v869 = vmul.f32 %v800, 1.442695
      %v870 = vpow.pop %v869
      %v871 = vmul.f32 %v801, 1.442695
      %v872 = vpow.pop %v871
      %v873 = vmul.f32 %v802, 1.442695
      %v874 = vpow.pop %v873
      %v875 = vmul.f32 %v803, 1.442695
      %v876 = vpow.pop %v875
      %v877 = vmul.f32 %v804, 1.442695
      %v878 = vpow.pop %v877
      %v879 = vmul.f32 %v805, 1.442695
      %v880 = vpow.pop %v879
      %v881 = vmul.f32 %v806, 1.442695
      %v882 = vpow.pop %v881
      %v883 = vmul.f32 %v807, 1.442695
      %v884 = vpow.pop %v883
      %v885 = vmul.f32 %v808, 1.442695
      %v886 = vpow.pop %v885
      %v887 = vmul.f32 %v809, 1.442695
      %v888 = vpow.pop %v887
      %v889 = vmul.f32 %v810, 1.442695
      %v890 = vpow.pop %v889
      %v891 = vmul.f32 %v811, 1.442695
      %v892 = vpow.pop %v891
      %v893 = vmul.f32 %v812, 1.442695
      %v894 = vpow.pop %v893
      %v895 = vmul.f32 %v813, 1.442695
      %v896 = vpow.pop %v895
      %v897 = vmul.f32 %v814, 1.442695
      %v898 = vpow.pop %v897
      %v899 = vmul.f32 %v815, 1.442695
      %v900 = vpow.pop %v899
      %v901 = vmul.f32 %v816, 1.442695
      %v902 = vpow.pop %v901
      %v903 = vmul.f32 %v817, 1.442695
      %v904 = vpow.pop %v903
      %v905 = vmul.f32 %v818, 1.442695
      %v906 = vpow.pop %v905
      %v907 = vmul.f32 %v819, 1.442695
      %v908 = vpow.pop %v907
      %v909 = vmul.f32 %v820, 1.442695
      %v910 = vpow.pop %v909
      %v911 = vmul.f32 %v821, 1.442695
      %v912 = vpow.pop %v911
      %v913 = vmul.f32 %v822, 1.442695
      %v914 = vpow.pop %v913
      %v915 = vmul.f32 %v823, 1.442695
      %v916 = vpow.pop %v915
      %v917 = vmul.f32 %v824, 1.442695
      %v918 = vpow.pop %v917
      %v919 = vmul.f32 %v825, 1.442695
      %v920 = vpow.pop %v919
      %v921 = vmul.f32 %v826, 1.442695
      %v922 = vpow.pop %v921
      %v923 = vmul.f32 %v827, 1.442695
      %v924 = vpow.pop %v923
      %v925 = vmul.f32 %v828, 1.442695
      %v926 = vpow.pop %v925
      %v927 = vmul.f32 %v829, 1.442695
      %v928 = vpow.pop %v927
      %v929 = vmul.f32 %v830, 1.442695
      %v930 = vpow.pop %v929
      %v931 = vmul.f32 %v831, 1.442695
      %v932 = vpow.pop %v931
      %v933 = vmul.f32 %v832, 1.442695
      %v934 = vpow.pop %v933
      %v935 = vmul.f32 %v833, 1.442695
      %v936 = vpow.pop %v935
      %v937 = vmul.f32 %v834, 1.442695
      %v938 = vpow.pop %v937
      %v939 = vmul.f32 %v835, 1.442695
      %v940 = vpow.pop %v939
      %v941 = vmul.f32 %v836, 1.442695
      %v942 = vpow.pop %v941
      %v943 = vmul.f32 %v837, 1.442695
      %v944 = vpow.pop %v943
      %v945 = vmul.f32 %v838, 1.442695
      %v946 = vpow.pop %v945
      %v947 = vmul.f32 %v839, 1.442695
      %v948 = vpow.pop %v947
      %v949 = vmul.f32 %v840, 1.442695
      %v950 = vpow.pop %v949
      %v951 = vmul.f32 %v841, 1.442695
      %v952 = vpow.pop %v951
      %v953 = vmul.f32 %v842, 1.442695
      %v954 = vpow.pop %v953
      %v955 = vmul.f32 %v843, 1.442695
      %v956 = vpow.pop %v955
      %v957 = vmul.f32 %v844, 1.442695
      %v958 = vpow.pop %v957
      %v959 = vmul.f32 %v845, 1.442695
      %v960 = vpow.pop %v959
      %v961 = vmul.f32 %v846, 1.442695
      %v962 = vpow.pop %v961
      %v963 = vmul.f32 %v847, 1.442695
      %v964 = vpow.pop %v963
      %v965 = vmul.f32 %v848, 1.442695
      %v966 = vpow.pop %v965
      %v967 = vmul.f32 %v849, 1.442695
      %v968 = vpow.pop %v967
      %v969 = vmul.f32 %v850, 1.442695
      %v970 = vpow.pop %v969
      %v971 = vmul.f32 %v851, 1.442695
      %v972 = vpow.pop %v971
      %v973 = vmul.f32 %v852, 1.442695
      %v974 = vpow.pop %v973
      %v975 = vmul.f32 %v853, 1.442695
      %v976 = vpow.pop %v975
      %v977 = vmul.f32 %v854, 1.442695
      %v978 = vpow.pop %v977
      %v979 = vmul.f32 %v855, 1.442695
      %v980 = vpow.pop %v979
      %v981 = vmul.f32 %v856, 1.442695
      %v982 = vpow.pop %v981
      %v983 = vmul.f32 %v857, 1.442695
      %v984 = vpow.pop %v983
      %v985 = vmul.f32 %v858, 1.442695
      %v986 = vpow.pop %v985
      %v987 = vadd.f32 %v860, %v862
      %988 = vadd.xlane.f32.xlu0 %v987
      %v989 = vpop.xlane.xlu0 %988
      %v990 = vadd.f32 %v864, %v866
      %991 = vadd.xlane.f32.xlu0 %v990
      %v992 = vpop.xlane.xlu0 %991
      %v993 = vadd.f32 %v868, %v870
      %994 = vadd.xlane.f32.xlu0 %v993
      %v995 = vpop.xlane.xlu0 %994
      %v996 = vadd.f32 %v872, %v874
      %997 = vadd.xlane.f32.xlu0 %v996
      %v998 = vpop.xlane.xlu0 %997
      %v999 = vadd.f32 %v876, %v878
      %1000 = vadd.xlane.f32.xlu0 %v999
      %v1001 = vpop.xlane.xlu0 %1000
      %v1002 = vadd.f32 %v880, %v882
      %1003 = vadd.xlane.f32.xlu0 %v1002
      %v1004 = vpop.xlane.xlu0 %1003
      %v1005 = vadd.f32 %v884, %v886
      %1006 = vadd.xlane.f32.xlu0 %v1005
      %v1007 = vpop.xlane.xlu0 %1006
      %v1008 = vadd.f32 %v888, %v890
      %1009 = vadd.xlane.f32.xlu0 %v1008
      %v1010 = vpop.xlane.xlu0 %1009
      %v1011 = vadd.f32 %v892, %v894
      %1012 = vadd.xlane.f32.xlu0 %v1011
      %v1013 = vpop.xlane.xlu0 %1012
      %v1014 = vadd.f32 %v896, %v898
      %1015 = vadd.xlane.f32.xlu0 %v1014
      %v1016 = vpop.xlane.xlu0 %1015
      %v1017 = vadd.f32 %v900, %v902
      %1018 = vadd.xlane.f32.xlu0 %v1017
      %v1019 = vpop.xlane.xlu0 %1018
      %v1020 = vadd.f32 %v904, %v906
      %1021 = vadd.xlane.f32.xlu0 %v1020
      %v1022 = vpop.xlane.xlu0 %1021
      %v1023 = vadd.f32 %v908, %v910
      %1024 = vadd.xlane.f32.xlu0 %v1023
      %v1025 = vpop.xlane.xlu0 %1024
      %v1026 = vadd.f32 %v912, %v914
      %1027 = vadd.xlane.f32.xlu0 %v1026
      %v1028 = vpop.xlane.xlu0 %1027
      %v1029 = vadd.f32 %v916, %v918
      %1030 = vadd.xlane.f32.xlu0 %v1029
      %v1031 = vpop.xlane.xlu0 %1030
      %v1032 = vadd.f32 %v920, %v922
      %1033 = vadd.xlane.f32.xlu0 %v1032
      %v1034 = vpop.xlane.xlu0 %1033
      %v1035 = vadd.f32 %v924, %v926
      %1036 = vadd.xlane.f32.xlu0 %v1035
      %v1037 = vpop.xlane.xlu0 %1036
      %v1038 = vadd.f32 %v928, %v930
      %1039 = vadd.xlane.f32.xlu0 %v1038
      %v1040 = vpop.xlane.xlu0 %1039
      %v1041 = vadd.f32 %v932, %v934
      %1042 = vadd.xlane.f32.xlu0 %v1041
      %v1043 = vpop.xlane.xlu0 %1042
      %v1044 = vadd.f32 %v936, %v938
      %1045 = vadd.xlane.f32.xlu0 %v1044
      %v1046 = vpop.xlane.xlu0 %1045
      %v1047 = vadd.f32 %v940, %v942
      %1048 = vadd.xlane.f32.xlu0 %v1047
      %v1049 = vpop.xlane.xlu0 %1048
      %v1050 = vadd.f32 %v944, %v946
      %1051 = vadd.xlane.f32.xlu0 %v1050
      %v1052 = vpop.xlane.xlu0 %1051
      %v1053 = vadd.f32 %v948, %v950
      %1054 = vadd.xlane.f32.xlu0 %v1053
      %v1055 = vpop.xlane.xlu0 %1054
      %v1056 = vadd.f32 %v952, %v954
      %1057 = vadd.xlane.f32.xlu0 %v1056
      %v1058 = vpop.xlane.xlu0 %1057
      %v1059 = vadd.f32 %v956, %v958
      %1060 = vadd.xlane.f32.xlu0 %v1059
      %v1061 = vpop.xlane.xlu0 %1060
      %v1062 = vadd.f32 %v960, %v962
      %1063 = vadd.xlane.f32.xlu0 %v1062
      %v1064 = vpop.xlane.xlu0 %1063
      %v1065 = vadd.f32 %v964, %v966
      %1066 = vadd.xlane.f32.xlu0 %v1065
      %v1067 = vpop.xlane.xlu0 %1066
      %v1068 = vadd.f32 %v968, %v970
      %1069 = vadd.xlane.f32.xlu0 %v1068
      %v1070 = vpop.xlane.xlu0 %1069
      %v1071 = vadd.f32 %v972, %v974
      %1072 = vadd.xlane.f32.xlu0 %v1071
      %v1073 = vpop.xlane.xlu0 %1072
      %v1074 = vadd.f32 %v976, %v978
      %1075 = vadd.xlane.f32.xlu0 %v1074
      %v1076 = vpop.xlane.xlu0 %1075
      %v1077 = vadd.f32 %v980, %v982
      %1078 = vadd.xlane.f32.xlu0 %v1077
      %v1079 = vpop.xlane.xlu0 %1078
      %v1080 = vadd.f32 %v984, %v986
      %1081 = vadd.xlane.f32.xlu0 %v1080
      %v1082 = vpop.xlane.xlu0 %1081
      %v1083 = vrcp.pop %v989
      %v1084 = vmul.f32 %v860, %v1083
      %v1085 = vmul.f32 %v862, %v1083
      %v1086 = vrcp.pop %v992
      %v1087 = vmul.f32 %v864, %v1086
      %v1088 = vmul.f32 %v866, %v1086
      %v1089 = vrcp.pop %v995
      %v1090 = vmul.f32 %v868, %v1089
      %v1091 = vmul.f32 %v870, %v1089
      %v1092 = vrcp.pop %v998
      %v1093 = vmul.f32 %v872, %v1092
      %v1094 = vmul.f32 %v874, %v1092
      %v1095 = vrcp.pop %v1001
      %v1096 = vmul.f32 %v876, %v1095
      %v1097 = vmul.f32 %v878, %v1095
      %v1098 = vrcp.pop %v1004
      %v1099 = vmul.f32 %v880, %v1098
      %v1100 = vmul.f32 %v882, %v1098
      %v1101 = vrcp.pop %v1007
      %v1102 = vmul.f32 %v884, %v1101
      %v1103 = vmul.f32 %v886, %v1101
      %v1104 = vrcp.pop %v1010
      %v1105 = vmul.f32 %v888, %v1104
      %v1106 = vmul.f32 %v890, %v1104
      %v1107 = vrcp.pop %v1013
      %v1108 = vmul.f32 %v892, %v1107
      %v1109 = vmul.f32 %v894, %v1107
      %v1110 = vrcp.pop %v1016
      %v1111 = vmul.f32 %v896, %v1110
      %v1112 = vmul.f32 %v898, %v1110
      %v1113 = vrcp.pop %v1019
      %v1114 = vmul.f32 %v900, %v1113
      %v1115 = vmul.f32 %v902, %v1113
      %v1116 = vrcp.pop %v1022
      %v1117 = vmul.f32 %v904, %v1116
      %v1118 = vmul.f32 %v906, %v1116
      %v1119 = vrcp.pop %v1025
      %v1120 = vmul.f32 %v908, %v1119
      %v1121 = vmul.f32 %v910, %v1119
      %v1122 = vrcp.pop %v1028
      %v1123 = vmul.f32 %v912, %v1122
      %v1124 = vmul.f32 %v914, %v1122
      %v1125 = vrcp.pop %v1031
      %v1126 = vmul.f32 %v916, %v1125
      %v1127 = vmul.f32 %v918, %v1125
      %v1128 = vrcp.pop %v1034
      %v1129 = vmul.f32 %v920, %v1128
      %v1130 = vmul.f32 %v922, %v1128
      %v1131 = vrcp.pop %v1037
      %v1132 = vmul.f32 %v924, %v1131
      %v1133 = vmul.f32 %v926, %v1131
      %v1134 = vrcp.pop %v1040
      %v1135 = vmul.f32 %v928, %v1134
      %v1136 = vmul.f32 %v930, %v1134
      %v1137 = vrcp.pop %v1043
      %v1138 = vmul.f32 %v932, %v1137
      %v1139 = vmul.f32 %v934, %v1137
      %v1140 = vrcp.pop %v1046
      %v1141 = vmul.f32 %v936, %v1140
      %v1142 = vmul.f32 %v938, %v1140
      %v1143 = vrcp.pop %v1049
      %v1144 = vmul.f32 %v940, %v1143
      %v1145 = vmul.f32 %v942, %v1143
      %v1146 = vrcp.pop %v1052
      %v1147 = vmul.f32 %v944, %v1146
      %v1148 = vmul.f32 %v946, %v1146
      %v1149 = vrcp.pop %v1055
      %v1150 = vmul.f32 %v948, %v1149
      %v1151 = vmul.f32 %v950, %v1149
      %v1152 = vrcp.pop %v1058
      %v1153 = vmul.f32 %v952, %v1152
      %v1154 = vmul.f32 %v954, %v1152
      %v1155 = vrcp.pop %v1061
      %v1156 = vmul.f32 %v956, %v1155
      %v1157 = vmul.f32 %v958, %v1155
      %v1158 = vrcp.pop %v1064
      %v1159 = vmul.f32 %v960, %v1158
      %v1160 = vmul.f32 %v962, %v1158
      %v1161 = vrcp.pop %v1067
      %v1162 = vmul.f32 %v964, %v1161
      %v1163 = vmul.f32 %v966, %v1161
      %v1164 = vrcp.pop %v1070
      %v1165 = vmul.f32 %v968, %v1164
      %v1166 = vmul.f32 %v970, %v1164
      %v1167 = vrcp.pop %v1073
      %v1168 = vmul.f32 %v972, %v1167
      %v1169 = vmul.f32 %v974, %v1167
      %v1170 = vrcp.pop %v1076
      %v1171 = vmul.f32 %v976, %v1170
      %v1172 = vmul.f32 %v978, %v1170
      %v1173 = vrcp.pop %v1079
      %v1174 = vmul.f32 %v980, %v1173
      %v1175 = vmul.f32 %v982, %v1173
      %v1176 = vrcp.pop %v1082
      %v1177 = vmul.f32 %v984, %v1176
      %v1178 = vmul.f32 %v986, %v1176
      %1179 = vmatprep.subr.mxu0 %v1085
      %1180 = vmatpush1.xpose.msra.mxu0 %v1084
      %1181 = vmatprep.subr.mxu0 %v1088
      %1182 = vmatpush1.xpose.msra.mxu0 %v1087
      %1183 = vmatprep.subr.mxu0 %v1091
      %1184 = vmatpush1.xpose.msra.mxu0 %v1090
      %1185 = vmatprep.subr.mxu0 %v1094
      %1186 = vmatpush1.xpose.msra.mxu0 %v1093
      %1187 = vmatprep.subr.mxu0 %v1097
      %1188 = vmatpush1.xpose.msra.mxu0 %v1096
      %1189 = vmatprep.subr.mxu0 %v1100
      %1190 = vmatpush1.xpose.msra.mxu0 %v1099
      %1191 = vmatprep.subr.mxu0 %v1103
      %1192 = vmatpush1.xpose.msra.mxu0 %v1102
      %1193 = vmatprep.subr.mxu0 %v1106
      %1194 = vmatpush1.xpose.msra.mxu0 %v1105
      %1195 = vmatprep.subr.mxu0 %v1109
      %1196 = vmatpush1.xpose.msra.mxu0 %v1108
      %1197 = vmatprep.subr.mxu0 %v1112
      %1198 = vmatpush1.xpose.msra.mxu0 %v1111
      %1199 = vmatprep.subr.mxu0 %v1115
      %1200 = vmatpush1.xpose.msra.mxu0 %v1114
      %1201 = vmatprep.subr.mxu0 %v1118
      %1202 = vmatpush1.xpose.msra.mxu0 %v1117
      %1203 = vmatprep.subr.mxu0 %v1121
      %1204 = vmatpush1.xpose.msra.mxu0 %v1120
      %1205 = vmatprep.subr.mxu0 %v1124
      %1206 = vmatpush1.xpose.msra.mxu0 %v1123
      %1207 = vmatprep.subr.mxu0 %v1127
      %1208 = vmatpush1.xpose.msra.mxu0 %v1126
      %1209 = vmatprep.subr.mxu0 %v1130
      %1210 = vmatpush1.xpose.msra.mxu0 %v1129
      %1211 = vmatprep.subr.mxu0 %v1133
      %1212 = vmatpush1.xpose.msra.mxu0 %v1132
      %1213 = vmatprep.subr.mxu0 %v1136
      %1214 = vmatpush1.xpose.msra.mxu0 %v1135
      %1215 = vmatprep.subr.mxu0 %v1139
      %1216 = vmatpush1.xpose.msra.mxu0 %v1138
      %1217 = vmatprep.subr.mxu0 %v1142
      %1218 = vmatpush1.xpose.msra.mxu0 %v1141
      %1219 = vmatprep.subr.mxu0 %v1145
      %1220 = vmatpush1.xpose.msra.mxu0 %v1144
      %1221 = vmatprep.subr.mxu0 %v1148
      %1222 = vmatpush1.xpose.msra.mxu0 %v1147
      %1223 = vmatprep.subr.mxu0 %v1151
      %1224 = vmatpush1.xpose.msra.mxu0 %v1150
      %1225 = vmatprep.subr.mxu0 %v1154
      %1226 = vmatpush1.xpose.msra.mxu0 %v1153
      %1227 = vmatprep.subr.mxu0 %v1157
      %1228 = vmatpush1.xpose.msra.mxu0 %v1156
      %1229 = vmatprep.subr.mxu0 %v1160
      %1230 = vmatpush1.xpose.msra.mxu0 %v1159
      %1231 = vmatprep.subr.mxu0 %v1163
      %1232 = vmatpush1.xpose.msra.mxu0 %v1162
      %1233 = vmatprep.subr.mxu0 %v1166
      %1234 = vmatpush1.xpose.msra.mxu0 %v1165
      %1235 = vmatprep.subr.mxu0 %v1169
      %1236 = vmatpush1.xpose.msra.mxu0 %v1168
      %1237 = vmatprep.subr.mxu0 %v1172
      %1238 = vmatpush1.xpose.msra.mxu0 %v1171
      %1239 = vmatprep.subr.mxu0 %v1175
      %1240 = vmatpush1.xpose.msra.mxu0 %v1174
      %1241 = vmatprep.subr.mxu0 %v1178
      %1242 = vmatpush1.xpose.msra.mxu0 %v1177
      %1243 = vmatprep.mubr.f32.mxu0 %v280
      %1244 = vmatmul.mubr.f32.gmra.mrb[0].mxu0 %v279
      %v1245 = vpop.f32.mrb[0].mxu0
      %v1246 = vadd.f32 0.0, %v1245
      %v1247 = vpop.f32.mrb[0].mxu0
      %v1248 = vadd.f32 0.0, %v1247
      %1249 = vdwg.mxu0
      %1250 = vst [vmem:[%s274] sm:$0xff] %v1246
      %1251 = vst [vmem:[%s274 + $0x8] sm:$0xff] %v1248
      %p1252 = scmp.lt.s32.totalorder %s18, 1
      %s1253 = scalar_select %p1252, %s18, 1
      %p1254 = scmp.lt.s32.totalorder %s19, 3
      %s1255 = scalar_select %p1254, %s19, 3
      %s1256 = smul.addr %s1255, 2
      %s1257 = smul.addr %s1253, 8
      %s1258 = sadd.s32 %s1256, %s1257
      %s1259 = smul.addr %s1258, 8
      %s1260 = scalar_lea.vmem %s3, %s1259
      // Predicated region
      $region33: #{csp_layer_mhsa1_forward.16} parent=31 // pred_check
        %p1261 = pneg %p130
      $region34: #{csp_layer_mhsa1_forward.16} parent=31 // pred_check_branch
        %1263 = sbr.rel (%p1261) target = $region36
      $region35: #{csp_layer_mhsa1_forward.16} parent=31 // pred_region
        _
      $region36: #{csp_layer_mhsa1_forward.16} parent=31 // pred_fallthru
        _
    $region32: #{csp_layer_mhsa1_forward.16} parent=5 // pred_fallthru
      _
    %p1264 = scmp.le.s32.totalorder 2, %s9
    // Predicated region
    $region37: #{csp_layer_mhsa1_forward.16} parent=5 // pred_check
      %p1265 = pneg %p1264
    $region38: #{csp_layer_mhsa1_forward.16} parent=5 // pred_check_branch
      %1267 = sbr.rel (%p1265) target = $region40
    $region39: #{csp_layer_mhsa1_forward.16} parent=5 // pred_region
      %s1268 = ssub.s32 %s9, 2
      // Predicated region
      $region41: #{csp_layer_mhsa1_forward.16} parent=39 // pred_check
        %p1269 = pneg %p136
      $region42: #{csp_layer_mhsa1_forward.16} parent=39 // pred_check_branch
        %1271 = sbr.rel (%p1269) target = $region44
      $region43: #{csp_layer_mhsa1_forward.16} parent=39 // pred_region
        %p1272 = scmp.lt.s32.totalorder %s20, 1
        %s1273 = scalar_select %p1272, %s20, 1
        %p1274 = scmp.lt.s32.totalorder %s21, 3
        %s1275 = scalar_select %p1274, %s21, 3
        %s1276 = smul.addr %s1275, 2
        %s1277 = smul.addr %s1273, 8
        %s1278 = sadd.s32 %s1276, %s1277
        %s1279 = smul.addr %s1278, 8
        %s1280 = scalar_lea.vmem %s3, %s1279
      $region44: #{csp_layer_mhsa1_forward.16} parent=39 // pred_fallthru
        _
    $region40: #{csp_layer_mhsa1_forward.16} parent=5 // pred_fallthru
      _
  $region6: #{csp_layer_mhsa1_forward.16} parent=0 // loop_footer
    %s13 = sadd.s32 1, %s9
  $region7: #{csp_layer_mhsa1_forward.16} parent=0 // loop_footer_branch
    %8 = sbr.rel target = $region3
  $region8: #{csp_layer_mhsa1_forward.16} parent=0 // loop_exit
    _

// kernel: csp_layer_mhsa1_forward.17
$region0: #{csp_layer_mhsa1_forward.17}
  #allocation0 [shape = 'u32[]', space=smem, size = 0x4, offset = 0x4, fixed_abs, tag = 'smem constant byte address 0x4 - core index']
  #allocation1 [shape = 'u32[144,128]{1,0:T(1,128)}', space=vmem, size = 0x12000, scoped, tag = 'internal scratch']
  %s0 = inlined_call_operand.vmem [shape: f32[2,72,256], index: 0, kind: input, shape index: {}]
  %s1 = inlined_call_operand.vmem [shape: f32[8,72], index: 1, kind: input, shape index: {}]
  %s2 = inlined_call_operand.vmem [shape: f32[8,1], index: 2, kind: input, shape index: {}]
  %s3 = inlined_call_operand.vmem [shape: f32[2,8,256], index: 3, kind: input, shape index: {}]
  %s4 = inlined_call_operand.vmem [shape: f32[2,8,256], index: 4, kind: output, shape index: {}]
  %s5 = sld [smem:[#allocation0]]
  $region49: #{csp_layer_mhsa1_forward.17} parent=0
    _
  %s7 = ssub.s32 1, %s5
  %s8 = scalar_select 0, %s7, %s5
  loop: start=0, step=1, limit=4
  $region2: #{csp_layer_mhsa1_forward.17} parent=0 // loop_pre_header
    _
  $region3: #{csp_layer_mhsa1_forward.17} parent=0 // loop_header
    %s10 = sphi 0, %s14
    %p11 = scmp.ge.s32.totalorder %s10, 4
    %s17 = sphi 0, %s29
    %s18 = sphi 0, %s25
    %s19 = sphi 0, %s17
    %s20 = sphi 0, %s18
    %s21 = sphi 0, %s19
    %s22 = sphi 0, %s20
    %s34 = sphi 0, %s36
    %s37 = sphi 0, %s34
    %s38 = sphi 0, %s37
    %s54 = sphi 0, %s38
    %s58 = sphi 0, %s58
    %s60 = sphi 0, %s58
    %s61 = sphi 0, %s60
    %s75 = sphi 0, %s61
    %s79 = sphi 0, %s79
    %s81 = sphi 0, %s79
    %s82 = sphi 0, %s81
    %s96 = sphi 0, %s82
    %s104 = sphi 0, %s106
    %s107 = sphi 0, %s104
    %s108 = sphi 0, %s107
    %s124 = sphi 0, %s108
    %s132 = sphi 0, %s134
    %s135 = sphi 0, %s132
    %s136 = sphi 0, %s135
    %s152 = sphi 0, %s136
  $region4: #{csp_layer_mhsa1_forward.17} parent=0 // loop_header_branch
    %13 = sbr.rel (%p11) target = $region8
  $region5: #{csp_layer_mhsa1_forward.17} parent=0 // loop_body
    %s15 = ssub.s32 %s10, 1
    %s16 = ssub.s32 %s10, 2
    %s23 = sadd.s32 1, %s18
    %p24 = scmp.ge.s32.totalorder %s23, 1
    %s25 = scalar_select %p24, 0, %s23
    %s26 = sadd.s32 1, %s17
    %s27 = scalar_select %p24, %s26, %s17
    %p28 = scmp.ge.s32.totalorder %s27, 2
    %s29 = scalar_select %p28, 0, %s27
    %s30 = ssub.s32 %s17, %s29
    %s31 = ssub.s32 %s18, %s25
    %s32 = sor.u32 %s30, %s31
    %p33 = scmp.eq.s32.totalorder %s32, 0
    %s35 = sadd.s32 %s34, 1
    %s36 = scalar_select %p33, %s34, %s35
    %p39 = pneg %p33
    %p40 = scmp.eq.s32.totalorder %s10, 1
    %p41 = por %p39, %p40
    %p42 = scmp.ne.s32.totalorder %s34, %s37
    %p43 = scmp.eq.s32.totalorder %s10, 0
    %p44 = por %p42, %p43
    %p45 = scmp.ne.s32.totalorder %s34, %s37
    %p46 = scmp.eq.s32.totalorder %s15, 1
    %p47 = por %p45, %p46
    %p48 = scmp.ne.s32.totalorder %s37, %s38
    %p49 = scmp.eq.s32.totalorder %s15, 0
    %p50 = por %p48, %p49
    %p51 = scmp.ne.s32.totalorder %s37, %s38
    %p52 = scmp.eq.s32.totalorder %s16, 1
    %p53 = por %p51, %p52
    %p55 = scmp.ne.s32.totalorder %s38, %s54
    %p56 = scmp.eq.s32.totalorder %s16, 0
    %p57 = por %p55, %p56
    %s59 = sadd.s32 %s58, 1
    %p62 = scmp.eq.s32.totalorder %s10, 1
    %p63 = scmp.ne.s32.totalorder %s58, %s60
    %p64 = scmp.eq.s32.totalorder %s10, 0
    %p65 = por %p63, %p64
    %p66 = scmp.ne.s32.totalorder %s58, %s60
    %p67 = scmp.eq.s32.totalorder %s15, 1
    %p68 = por %p66, %p67
    %p69 = scmp.ne.s32.totalorder %s60, %s61
    %p70 = scmp.eq.s32.totalorder %s15, 0
    %p71 = por %p69, %p70
    %p72 = scmp.ne.s32.totalorder %s60, %s61
    %p73 = scmp.eq.s32.totalorder %s16, 1
    %p74 = por %p72, %p73
    %p76 = scmp.ne.s32.totalorder %s61, %s75
    %p77 = scmp.eq.s32.totalorder %s16, 0
    %p78 = por %p76, %p77
    %s80 = sadd.s32 %s79, 1
    %p83 = scmp.eq.s32.totalorder %s10, 1
    %p84 = scmp.ne.s32.totalorder %s79, %s81
    %p85 = scmp.eq.s32.totalorder %s10, 0
    %p86 = por %p84, %p85
    %p87 = scmp.ne.s32.totalorder %s79, %s81
    %p88 = scmp.eq.s32.totalorder %s15, 1
    %p89 = por %p87, %p88
    %p90 = scmp.ne.s32.totalorder %s81, %s82
    %p91 = scmp.eq.s32.totalorder %s15, 0
    %p92 = por %p90, %p91
    %p93 = scmp.ne.s32.totalorder %s81, %s82
    %p94 = scmp.eq.s32.totalorder %s16, 1
    %p95 = por %p93, %p94
    %p97 = scmp.ne.s32.totalorder %s82, %s96
    %p98 = scmp.eq.s32.totalorder %s16, 0
    %p99 = por %p97, %p98
    %s100 = ssub.s32 %s17, %s29
    %s101 = ssub.s32 %s18, %s25
    %s102 = sor.u32 %s100, %s101
    %p103 = scmp.eq.s32.totalorder %s102, 0
    %s105 = sadd.s32 %s104, 1
    %s106 = scalar_select %p103, %s104, %s105
    %p109 = pneg %p103
    %p110 = scmp.eq.s32.totalorder %s10, 1
    %p111 = por %p109, %p110
    %p112 = scmp.ne.s32.totalorder %s104, %s107
    %p113 = scmp.eq.s32.totalorder %s10, 0
    %p114 = por %p112, %p113
    %p115 = scmp.ne.s32.totalorder %s104, %s107
    %p116 = scmp.eq.s32.totalorder %s15, 1
    %p117 = por %p115, %p116
    %p118 = scmp.ne.s32.totalorder %s107, %s108
    %p119 = scmp.eq.s32.totalorder %s15, 0
    %p120 = por %p118, %p119
    %p121 = scmp.ne.s32.totalorder %s107, %s108
    %p122 = scmp.eq.s32.totalorder %s16, 1
    %p123 = por %p121, %p122
    %p125 = scmp.ne.s32.totalorder %s108, %s124
    %p126 = scmp.eq.s32.totalorder %s16, 0
    %p127 = por %p125, %p126
    %s128 = ssub.s32 %s17, %s29
    %s129 = ssub.s32 %s18, %s25
    %s130 = sor.u32 %s128, %s129
    %p131 = scmp.eq.s32.totalorder %s130, 0
    %s133 = sadd.s32 %s132, 1
    %s134 = scalar_select %p131, %s132, %s133
    %p137 = pneg %p131
    %p138 = scmp.eq.s32.totalorder %s10, 1
    %p139 = por %p137, %p138
    %p140 = scmp.ne.s32.totalorder %s132, %s135
    %p141 = scmp.eq.s32.totalorder %s10, 0
    %p142 = por %p140, %p141
    %p143 = scmp.ne.s32.totalorder %s132, %s135
    %p144 = scmp.eq.s32.totalorder %s15, 1
    %p145 = por %p143, %p144
    %p146 = scmp.ne.s32.totalorder %s135, %s136
    %p147 = scmp.eq.s32.totalorder %s15, 0
    %p148 = por %p146, %p147
    %p149 = scmp.ne.s32.totalorder %s135, %s136
    %p150 = scmp.eq.s32.totalorder %s16, 1
    %p151 = por %p149, %p150
    %p153 = scmp.ne.s32.totalorder %s136, %s152
    %p154 = scmp.eq.s32.totalorder %s16, 0
    %p155 = por %p153, %p154
    %p156 = scmp.le.s32.totalorder 1, %s10
    %p157 = scmp.lt.s32.totalorder %s10, 3
    %p158 = pnand %p156, %p157
    %p159 = pneg %p158
    // Predicated region
    $region9: #{csp_layer_mhsa1_forward.17} parent=5 // pred_check
      _
    $region10: #{csp_layer_mhsa1_forward.17} parent=5 // pred_check_branch
      %161 = sbr.rel (%p158) target = $region12
    $region11: #{csp_layer_mhsa1_forward.17} parent=5 // pred_region
      %s162 = ssub.s32 %s10, 1
      // Predicated region
      $region13: #{csp_layer_mhsa1_forward.17} parent=11 // pred_check
        %p163 = pneg %p71
      $region14: #{csp_layer_mhsa1_forward.17} parent=11 // pred_check_branch
        %165 = sbr.rel (%p163) target = $region16
      $region15: #{csp_layer_mhsa1_forward.17} parent=11 // pred_region
        _
      $region16: #{csp_layer_mhsa1_forward.17} parent=11 // pred_fallthru
        _
      // Predicated region
      $region17: #{csp_layer_mhsa1_forward.17} parent=11 // pred_check
        %p166 = pneg %p92
      $region18: #{csp_layer_mhsa1_forward.17} parent=11 // pred_check_branch
        %168 = sbr.rel (%p166) target = $region20
      $region19: #{csp_layer_mhsa1_forward.17} parent=11 // pred_region
        _
      $region20: #{csp_layer_mhsa1_forward.17} parent=11 // pred_fallthru
        _
    $region12: #{csp_layer_mhsa1_forward.17} parent=5 // pred_fallthru
      _
    %p169 = scmp.lt.s32.totalorder %s10, 2
    // Predicated region
    $region21: #{csp_layer_mhsa1_forward.17} parent=5 // pred_check
      %p170 = pneg %p169
    $region22: #{csp_layer_mhsa1_forward.17} parent=5 // pred_check_branch
      %172 = sbr.rel (%p170) target = $region24
    $region23: #{csp_layer_mhsa1_forward.17} parent=5 // pred_region
      // Predicated region
      $region25: #{csp_layer_mhsa1_forward.17} parent=23 // pred_check
        %p173 = pneg %p44
      $region26: #{csp_layer_mhsa1_forward.17} parent=23 // pred_check_branch
        %175 = sbr.rel (%p173) target = $region28
      $region27: #{csp_layer_mhsa1_forward.17} parent=23 // pred_region
        %s176 = smul.u32 2, %s18
        %p177 = scmp.lt.s32.totalorder %s17, 1
        %s178 = scalar_select %p177, %s17, 1
        %p179 = scmp.lt.s32.totalorder %s176, 1
        %s180 = scalar_select %p179, %s176, 1
        %s181 = smul.addr %s178, 18
        %s182 = sadd.s32 %s180, %s181
        %s183 = smul.addr %s182, 8
        %s184 = scalar_lea.vmem %s0, %s183
        %s185 = smul.u32 2, %s18
      $region28: #{csp_layer_mhsa1_forward.17} parent=23 // pred_fallthru
        _
      // Predicated region
      $region29: #{csp_layer_mhsa1_forward.17} parent=23 // pred_check
        %p186 = pneg %p114
      $region30: #{csp_layer_mhsa1_forward.17} parent=23 // pred_check_branch
        %188 = sbr.rel (%p186) target = $region32
      $region31: #{csp_layer_mhsa1_forward.17} parent=23 // pred_region
        %s189 = smul.u32 2, %s18
        %p190 = scmp.lt.s32.totalorder %s17, 1
        %s191 = scalar_select %p190, %s17, 1
        %p192 = scmp.lt.s32.totalorder %s189, 1
        %s193 = scalar_select %p192, %s189, 1
        %s194 = smul.addr %s191, 2
        %s195 = sadd.s32 %s193, %s194
        %s196 = smul.addr %s195, 8
        %s197 = scalar_lea.vmem %s3, %s196
        %s198 = smul.u32 2, %s18
      $region32: #{csp_layer_mhsa1_forward.17} parent=23 // pred_fallthru
        _
    $region24: #{csp_layer_mhsa1_forward.17} parent=5 // pred_fallthru
      _
    %p199 = scmp.le.s32.totalorder 1, %s10
    %p200 = scmp.lt.s32.totalorder %s10, 3
    %p201 = pnand %p199, %p200
    %p202 = pneg %p201
    // Predicated region
    $region33: #{csp_layer_mhsa1_forward.17} parent=5 // pred_check
      _
    $region34: #{csp_layer_mhsa1_forward.17} parent=5 // pred_check_branch
      %204 = sbr.rel (%p201) target = $region36
    $region35: #{csp_layer_mhsa1_forward.17} parent=5 // pred_region
      %s205 = ssub.s32 %s10, 1
      %s206 = smul.u32 2, %s20
      %p207 = scmp.lt.s32.totalorder %s19, 1
      %s208 = scalar_select %p207, %s19, 1
      %p209 = scmp.lt.s32.totalorder %s206, 1
      %s210 = scalar_select %p209, %s206, 1
      %s211 = smul.addr %s208, 18
      %s212 = sadd.s32 %s210, %s211
      %s213 = smul.addr %s212, 8
      %s214 = scalar_lea.vmem %s0, %s213
      %p215 = pneg %p50
      %p216 = pneg %p47
      %p217 = pneg %p71
      %p218 = pneg %p68
      %p219 = pneg %p92
      %p220 = pneg %p89
      %s221 = smul.u32 2, %s20
      %p222 = scmp.lt.s32.totalorder %s19, 1
      %s223 = scalar_select %p222, %s19, 1
      %p224 = scmp.lt.s32.totalorder %s221, 1
      %s225 = scalar_select %p224, %s221, 1
      %s226 = smul.addr %s223, 2
      %s227 = sadd.s32 %s225, %s226
      %s228 = smul.addr %s227, 8
      %s229 = scalar_lea.vmem %s3, %s228
      %p230 = pneg %p120
      %p231 = pneg %p117
      %p232 = pneg %p148
      %p233 = pneg %p145
      %s234 = smul.u32 2, %s20
      %p235 = scmp.lt.s32.totalorder %s19, 1
      %s236 = scalar_select %p235, %s19, 1
      %p237 = scmp.lt.s32.totalorder %s234, 1
      %s238 = scalar_select %p237, %s234, 1
      %s239 = smul.addr %s236, 2
      %s240 = sadd.s32 %s238, %s239
      %s241 = smul.addr %s240, 8
      %s242 = scalar_lea.vmem %s4, %s241
      %s243 = smul.u32 2, %s20
      %p244 = scmp.lt.s32.totalorder %s19, 1
      %s245 = scalar_select %p244, %s19, 1
      %p246 = scmp.lt.s32.totalorder %s243, 1
      %s247 = scalar_select %p246, %s243, 1
      %s248 = smul.addr %s245, 18
      %s249 = sadd.s32 %s247, %s248
      %s250 = smul.addr %s249, 8
      %s251 = scalar_lea.vmem %s0, %s250
      %s252 = smul.u32 2, %s20
      %s253 = smul.u32 2, %s20
      %p254 = scmp.lt.s32.totalorder %s19, 1
      %s255 = scalar_select %p254, %s19, 1
      %p256 = scmp.lt.s32.totalorder %s253, 1
      %s257 = scalar_select %p256, %s253, 1
      %s258 = smul.addr %s255, 2
      %s259 = sadd.s32 %s257, %s258
      %s260 = smul.addr %s259, 8
      %s261 = scalar_lea.vmem %s3, %s260
      %s262 = smul.u32 2, %s20
      %s263 = smul.u32 2, %s20
      %p264 = scmp.lt.s32.totalorder %s19, 1
      %s265 = scalar_select %p264, %s19, 1
      %p266 = scmp.lt.s32.totalorder %s263, 1
      %s267 = scalar_select %p266, %s263, 1
      %s268 = smul.addr %s265, 2
      %s269 = sadd.s32 %s267, %s268
      %s270 = smul.addr %s269, 8
      %s271 = scalar_lea.vmem %s4, %s270
      %s272 = smul.u32 2, %s20
      %v273 = vld [vmem:[%s1] sm:$0xff]
      %v274 = vld [vmem:[%s251] sm:$0xff]
      %v275 = vld [vmem:[%s251 + $0x8] sm:$0xff]
      %v276 = vld [vmem:[%s251 + $0x10] sm:$0xff]
      %v277 = vld [vmem:[%s251 + $0x18] sm:$0xff]
      %v278 = vld [vmem:[%s251 + $0x20] sm:$0xff]
      %v279 = vld [vmem:[%s251 + $0x28] sm:$0xff]
      %v280 = vld [vmem:[%s251 + $0x30] sm:$0xff]
      %v281 = vld [vmem:[%s251 + $0x38] sm:$0xff]
      %v282 = vld [vmem:[%s251 + $0x40] sm:$0xff]
      %v283 = vld [vmem:[%s251 + $0x48] sm:$0xff]
      %v284 = vld [vmem:[%s251 + $0x50] sm:$0xff]
      %v285 = vld [vmem:[%s251 + $0x58] sm:$0xff]
      %v286 = vld [vmem:[%s251 + $0x60] sm:$0xff]
      %v287 = vld [vmem:[%s251 + $0x68] sm:$0xff]
      %v288 = vld [vmem:[%s251 + $0x70] sm:$0xff]
      %v289 = vld [vmem:[%s251 + $0x78] sm:$0xff]
      %v290 = vld [vmem:[%s251 + $0x80] sm:$0xff]
      %v291 = vld [vmem:[%s251 + $0x88] sm:$0xff]
      %v292 = vld [vmem:[%s2] sm:$0xff]
      %294 = vset.pattern.permute.xlu0 0
      %295 = vperm.xlu0 %294, %v292
      %v296 = vpop.permute.xlu0 %295
      %vm298 = vcmask 588800
      %v300 = vsel %vm298, %v273, 0
      %302 = vmatprep.subr.mxu0 %v275
      %303 = vmatpush1.msra.mxu0 %v274
      %304 = vmatprep.subr.mxu0 %v277
      %305 = vmatpush1.msra.mxu0 %v276
      %306 = vmatprep.subr.mxu0 %v279
      %307 = vmatpush1.msra.mxu0 %v278
      %308 = vmatprep.subr.mxu0 %v281
      %309 = vmatpush1.msra.mxu0 %v280
      %310 = vmatprep.subr.mxu0 %v283
      %311 = vmatpush1.msra.mxu0 %v282
      %312 = vmatprep.subr.mxu0 %v285
      %313 = vmatpush1.msra.mxu0 %v284
      %314 = vmatprep.subr.mxu0 %v287
      %315 = vmatpush1.msra.mxu0 %v286
      %316 = vmatprep.subr.mxu0 %v289
      %317 = vmatpush1.msra.mxu0 %v288
      %318 = vmatprep.subr.mxu0 %v291
      %319 = vmatpush1.msra.mxu0 %v290
      %320 = vmatprep.subr.mxu0 0.0
      %321 = vmatpush1.msra.mxu0 0.0
      %322 = vmatprep.subr.mxu0 0.0
      %323 = vmatpush1.msra.mxu0 0.0
      %324 = vmatprep.subr.mxu0 0.0
      %325 = vmatpush1.msra.mxu0 0.0
      %326 = vmatprep.subr.mxu0 0.0
      %327 = vmatpush1.msra.mxu0 0.0
      %328 = vmatprep.subr.mxu0 0.0
      %329 = vmatpush1.msra.mxu0 0.0
      %330 = vmatprep.subr.mxu0 0.0
      %331 = vmatpush1.msra.mxu0 0.0
      %332 = vmatprep.subr.mxu0 0.0
      %333 = vmatpush1.msra.mxu0 0.0
      %334 = vmatprep.subr.mxu0 0.0
      %335 = vmatpush1.msra.mxu0 0.0
      %336 = vmatprep.subr.mxu0 0.0
      %337 = vmatpush1.msra.mxu0 0.0
      %338 = vmatprep.subr.mxu0 0.0
      %339 = vmatpush1.msra.mxu0 0.0
      %340 = vmatprep.subr.mxu0 0.0
      %341 = vmatpush1.msra.mxu0 0.0
      %342 = vmatprep.subr.mxu0 0.0
      %343 = vmatpush1.msra.mxu0 0.0
      %344 = vmatprep.subr.mxu0 0.0
      %345 = vmatpush1.msra.mxu0 0.0
      %346 = vmatprep.subr.mxu0 0.0
      %347 = vmatpush1.msra.mxu0 0.0
      %348 = vmatprep.subr.mxu0 0.0
      %349 = vmatpush1.msra.mxu0 0.0
      %350 = vmatprep.subr.mxu0 0.0
      %351 = vmatpush1.msra.mxu0 0.0
      %352 = vmatprep.subr.mxu0 0.0
      %353 = vmatpush1.msra.mxu0 0.0
      %354 = vmatprep.subr.mxu0 0.0
      %355 = vmatpush1.msra.mxu0 0.0
      %356 = vmatprep.subr.mxu0 0.0
      %357 = vmatpush1.msra.mxu0 0.0
      %358 = vmatprep.subr.mxu0 0.0
      %359 = vmatpush1.msra.mxu0 0.0
      %360 = vmatprep.subr.mxu0 0.0
      %361 = vmatpush1.msra.mxu0 0.0
      %362 = vmatprep.subr.mxu0 0.0
      %363 = vmatpush1.msra.mxu0 0.0
      %364 = vmatprep.subr.mxu0 0.0
      %365 = vmatpush1.msra.mxu0 0.0
      %366 = vmatprep.mubr.f32.mxu0 0.0
      %367 = vmatmul.mubr.f32.gmra.mrb[0].mxu0 %v300
      %v368 = vpop.f32.mrb[0].mxu0
      %v369 = vadd.f32 %v296, %v368
      %v370 = vpop.f32.mrb[0].mxu0
      %v371 = vadd.f32 %v296, %v370
      %372 = vdwg.mxu0
      %v373 = vsub.f32 0.0, %v369
      %v374 = vsub.f32 0.0, %v371
      %v375 = vmul.f32 %v373, 1.442695
      %v376 = vpow.pop %v375
      %v377 = vmul.f32 %v374, 1.442695
      %v378 = vpow.pop %v377
      %v379 = vadd.f32 %v376, 1.0
      %v380 = vadd.f32 %v378, 1.0
      %v381 = vrcp.pop %v379
      %v382 = vmul.f32 1.0, %v381
      %v383 = vrcp.pop %v380
      %v384 = vmul.f32 1.0, %v383
      %v385 = vmul.f32 %v369, %v382
      %v386 = vmul.f32 %v371, %v384
      %v387 = vld [vmem:[%s261] sm:$0xff]
      %v388 = vld [vmem:[%s261 + $0x8] sm:$0xff]
      %v389 = vadd.f32 %v385, %v387
      %v390 = vadd.f32 %v386, %v388
      %391 = vst [vmem:[%s271] sm:$0xff] %v389
      %392 = vst [vmem:[%s271 + $0x8] sm:$0xff] %v390
      %s393 = smul.u32 2, %s20
      %p394 = scmp.lt.s32.totalorder %s19, 1
      %s395 = scalar_select %p394, %s19, 1
      %p396 = scmp.lt.s32.totalorder %s393, 1
      %s397 = scalar_select %p396, %s393, 1
      %s398 = smul.addr %s395, 2
      %s399 = sadd.s32 %s397, %s398
      %s400 = smul.addr %s399, 8
      %s401 = scalar_lea.vmem %s4, %s400
      // Predicated region
      $region37: #{csp_layer_mhsa1_forward.17} parent=35 // pred_check
        %p402 = pneg %p145
      $region38: #{csp_layer_mhsa1_forward.17} parent=35 // pred_check_branch
        %404 = sbr.rel (%p402) target = $region40
      $region39: #{csp_layer_mhsa1_forward.17} parent=35 // pred_region
        %s405 = smul.u32 2, %s20
      $region40: #{csp_layer_mhsa1_forward.17} parent=35 // pred_fallthru
        _
    $region36: #{csp_layer_mhsa1_forward.17} parent=5 // pred_fallthru
      _
    %p406 = scmp.le.s32.totalorder 2, %s10
    // Predicated region
    $region41: #{csp_layer_mhsa1_forward.17} parent=5 // pred_check
      %p407 = pneg %p406
    $region42: #{csp_layer_mhsa1_forward.17} parent=5 // pred_check_branch
      %409 = sbr.rel (%p407) target = $region44
    $region43: #{csp_layer_mhsa1_forward.17} parent=5 // pred_region
      %s410 = ssub.s32 %s10, 2
      // Predicated region
      $region45: #{csp_layer_mhsa1_forward.17} parent=43 // pred_check
        %p411 = pneg %p151
      $region46: #{csp_layer_mhsa1_forward.17} parent=43 // pred_check_branch
        %413 = sbr.rel (%p411) target = $region48
      $region47: #{csp_layer_mhsa1_forward.17} parent=43 // pred_region
        %s414 = smul.u32 2, %s22
        %p415 = scmp.lt.s32.totalorder %s21, 1
        %s416 = scalar_select %p415, %s21, 1
        %p417 = scmp.lt.s32.totalorder %s414, 1
        %s418 = scalar_select %p417, %s414, 1
        %s419 = smul.addr %s416, 2
        %s420 = sadd.s32 %s418, %s419
        %s421 = smul.addr %s420, 8
        %s422 = scalar_lea.vmem %s4, %s421
      $region48: #{csp_layer_mhsa1_forward.17} parent=43 // pred_fallthru
        _
    $region44: #{csp_layer_mhsa1_forward.17} parent=5 // pred_fallthru
      _
  $region6: #{csp_layer_mhsa1_forward.17} parent=0 // loop_footer
    %s14 = sadd.s32 1, %s10
  $region7: #{csp_layer_mhsa1_forward.17} parent=0 // loop_footer_branch
    %9 = sbr.rel target = $region3
  $region8: #{csp_layer_mhsa1_forward.17} parent=0 // loop_exit
    _

// kernel: csp_layer_mhsa1_forward.18
$region0: #{csp_layer_mhsa1_forward.18}
  #allocation0 [shape = 'u32[]', space=smem, size = 0x4, offset = 0x4, fixed_abs, tag = 'smem constant byte address 0x4 - core index']
  #allocation1 [shape = 'u32[144,128]{1,0:T(1,128)}', space=vmem, size = 0x12000, scoped, tag = 'internal scratch']
  %s0 = inlined_call_operand.vmem [shape: f32[2,8,256], index: 0, kind: input, shape index: {}]
  %s1 = inlined_call_operand.vmem [shape: f32[8,8], index: 1, kind: input, shape index: {}]
  %s2 = inlined_call_operand.vmem [shape: f32[2,8,1], index: 2, kind: output, shape index: {}]
  %s3 = sld [smem:[#allocation0]]
  $region41: #{csp_layer_mhsa1_forward.18} parent=0
    _
  %s5 = ssub.s32 1, %s3
  %s6 = scalar_select 0, %s5, %s3
  loop: start=0, step=1, limit=4
  $region2: #{csp_layer_mhsa1_forward.18} parent=0 // loop_pre_header
    _
  $region3: #{csp_layer_mhsa1_forward.18} parent=0 // loop_header
    %s8 = sphi 0, %s12
    %p9 = scmp.ge.s32.totalorder %s8, 4
    %s18 = sphi 0, %s20
    %s21 = sphi 0, %s18
    %s22 = sphi 0, %s21
    %s38 = sphi 0, %s22
    %s42 = sphi 0, %s42
    %s44 = sphi 0, %s42
    %s45 = sphi 0, %s44
    %s59 = sphi 0, %s45
    %s65 = sphi 0, %s67
    %s68 = sphi 0, %s65
    %s69 = sphi 0, %s68
    %s85 = sphi 0, %s69
  $region4: #{csp_layer_mhsa1_forward.18} parent=0 // loop_header_branch
    %11 = sbr.rel (%p9) target = $region8
  $region5: #{csp_layer_mhsa1_forward.18} parent=0 // loop_body
    %s13 = ssub.s32 %s8, 1
    %s14 = ssub.s32 %s8, 2
    %s15 = sadd.s32 %s8, 1
    %s16 = ssub.s32 %s8, %s15
    %p17 = scmp.eq.s32.totalorder %s16, 0
    %s19 = sadd.s32 %s18, 1
    %s20 = scalar_select %p17, %s18, %s19
    %p23 = pneg %p17
    %p24 = scmp.eq.s32.totalorder %s8, 1
    %p25 = por %p23, %p24
    %p26 = scmp.ne.s32.totalorder %s18, %s21
    %p27 = scmp.eq.s32.totalorder %s8, 0
    %p28 = por %p26, %p27
    %p29 = scmp.ne.s32.totalorder %s18, %s21
    %p30 = scmp.eq.s32.totalorder %s13, 1
    %p31 = por %p29, %p30
    %p32 = scmp.ne.s32.totalorder %s21, %s22
    %p33 = scmp.eq.s32.totalorder %s13, 0
    %p34 = por %p32, %p33
    %p35 = scmp.ne.s32.totalorder %s21, %s22
    %p36 = scmp.eq.s32.totalorder %s14, 1
    %p37 = por %p35, %p36
    %p39 = scmp.ne.s32.totalorder %s22, %s38
    %p40 = scmp.eq.s32.totalorder %s14, 0
    %p41 = por %p39, %p40
    %s43 = sadd.s32 %s42, 1
    %p46 = scmp.eq.s32.totalorder %s8, 1
    %p47 = scmp.ne.s32.totalorder %s42, %s44
    %p48 = scmp.eq.s32.totalorder %s8, 0
    %p49 = por %p47, %p48
    %p50 = scmp.ne.s32.totalorder %s42, %s44
    %p51 = scmp.eq.s32.totalorder %s13, 1
    %p52 = por %p50, %p51
    %p53 = scmp.ne.s32.totalorder %s44, %s45
    %p54 = scmp.eq.s32.totalorder %s13, 0
    %p55 = por %p53, %p54
    %p56 = scmp.ne.s32.totalorder %s44, %s45
    %p57 = scmp.eq.s32.totalorder %s14, 1
    %p58 = por %p56, %p57
    %p60 = scmp.ne.s32.totalorder %s45, %s59
    %p61 = scmp.eq.s32.totalorder %s14, 0
    %p62 = por %p60, %p61
    %s63 = ssub.s32 %s8, %s15
    %p64 = scmp.eq.s32.totalorder %s63, 0
    %s66 = sadd.s32 %s65, 1
    %s67 = scalar_select %p64, %s65, %s66
    %p70 = pneg %p64
    %p71 = scmp.eq.s32.totalorder %s8, 1
    %p72 = por %p70, %p71
    %p73 = scmp.ne.s32.totalorder %s65, %s68
    %p74 = scmp.eq.s32.totalorder %s8, 0
    %p75 = por %p73, %p74
    %p76 = scmp.ne.s32.totalorder %s65, %s68
    %p77 = scmp.eq.s32.totalorder %s13, 1
    %p78 = por %p76, %p77
    %p79 = scmp.ne.s32.totalorder %s68, %s69
    %p80 = scmp.eq.s32.totalorder %s13, 0
    %p81 = por %p79, %p80
    %p82 = scmp.ne.s32.totalorder %s68, %s69
    %p83 = scmp.eq.s32.totalorder %s14, 1
    %p84 = por %p82, %p83
    %p86 = scmp.ne.s32.totalorder %s69, %s85
    %p87 = scmp.eq.s32.totalorder %s14, 0
    %p88 = por %p86, %p87
    %p89 = scmp.le.s32.totalorder 1, %s8
    %p90 = scmp.lt.s32.totalorder %s8, 3
    %p91 = pnand %p89, %p90
    %p92 = pneg %p91
    // Predicated region
    $region9: #{csp_layer_mhsa1_forward.18} parent=5 // pred_check
      _
    $region10: #{csp_layer_mhsa1_forward.18} parent=5 // pred_check_branch
      %94 = sbr.rel (%p91) target = $region12
    $region11: #{csp_layer_mhsa1_forward.18} parent=5 // pred_region
      %s95 = ssub.s32 %s8, 1
      // Predicated region
      $region13: #{csp_layer_mhsa1_forward.18} parent=11 // pred_check
        %p96 = pneg %p55
      $region14: #{csp_layer_mhsa1_forward.18} parent=11 // pred_check_branch
        %98 = sbr.rel (%p96) target = $region16
      $region15: #{csp_layer_mhsa1_forward.18} parent=11 // pred_region
        _
      $region16: #{csp_layer_mhsa1_forward.18} parent=11 // pred_fallthru
        _
    $region12: #{csp_layer_mhsa1_forward.18} parent=5 // pred_fallthru
      _
    %p99 = scmp.lt.s32.totalorder %s8, 2
    // Predicated region
    $region17: #{csp_layer_mhsa1_forward.18} parent=5 // pred_check
      %p100 = pneg %p99
    $region18: #{csp_layer_mhsa1_forward.18} parent=5 // pred_check_branch
      %102 = sbr.rel (%p100) target = $region20
    $region19: #{csp_layer_mhsa1_forward.18} parent=5 // pred_region
      // Predicated region
      $region21: #{csp_layer_mhsa1_forward.18} parent=19 // pred_check
        %p103 = pneg %p28
      $region22: #{csp_layer_mhsa1_forward.18} parent=19 // pred_check_branch
        %105 = sbr.rel (%p103) target = $region24
      $region23: #{csp_layer_mhsa1_forward.18} parent=19 // pred_region
        %p106 = scmp.lt.s32.totalorder %s8, 1
        %s107 = scalar_select %p106, %s8, 1
        %s108 = smul.addr %s107, 2
        %s109 = smul.addr %s108, 8
        %s110 = scalar_lea.vmem %s0, %s109
      $region24: #{csp_layer_mhsa1_forward.18} parent=19 // pred_fallthru
        _
    $region20: #{csp_layer_mhsa1_forward.18} parent=5 // pred_fallthru
      _
    %p111 = scmp.le.s32.totalorder 1, %s8
    %p112 = scmp.lt.s32.totalorder %s8, 3
    %p113 = pnand %p111, %p112
    %p114 = pneg %p113
    // Predicated region
    $region25: #{csp_layer_mhsa1_forward.18} parent=5 // pred_check
      _
    $region26: #{csp_layer_mhsa1_forward.18} parent=5 // pred_check_branch
      %116 = sbr.rel (%p113) target = $region28
    $region27: #{csp_layer_mhsa1_forward.18} parent=5 // pred_region
      %s117 = ssub.s32 %s8, 1
      %p118 = scmp.lt.s32.totalorder %s13, 1
      %s119 = scalar_select %p118, %s13, 1
      %s120 = smul.addr %s119, 2
      %s121 = smul.addr %s120, 8
      %s122 = scalar_lea.vmem %s0, %s121
      %p123 = pneg %p34
      %p124 = pneg %p31
      %p125 = pneg %p55
      %p126 = pneg %p52
      %p127 = pneg %p81
      %p128 = pneg %p78
      %p129 = scmp.lt.s32.totalorder %s13, 1
      %s130 = scalar_select %p129, %s13, 1
      %s131 = smul.addr %s130, 8
      %s132 = scalar_lea.vmem %s2, %s131
      %p133 = scmp.lt.s32.totalorder %s13, 1
      %s134 = scalar_select %p133, %s13, 1
      %s135 = smul.addr %s134, 2
      %s136 = smul.addr %s135, 8
      %s137 = scalar_lea.vmem %s0, %s136
      %p138 = scmp.lt.s32.totalorder %s13, 1
      %s139 = scalar_select %p138, %s13, 1
      %s140 = smul.addr %s139, 8
      %s141 = scalar_lea.vmem %s2, %s140
      %v142 = vld [vmem:[%s137] sm:$0xff]
      %v143 = vld [vmem:[%s137 + $0x8] sm:$0xff]
      %v144 = vadd.f32 %v142, %v143
      %145 = vadd.xlane.f32.xlu0 %v144
      %v146 = vpop.xlane.xlu0 %145
      %v147 = vmul.f32 %v146, 0.00390625
      %v148 = vld [vmem:[%s1] sm:$0xff]
      %vm149 = vcmask 64512
      %v151 = vsel %vm149, %v148, 0
      %153 = vmatprep.subr.mxu0 0.0
      %154 = vmatpush1.msra.mxu0 %v147
      %155 = vmatprep.subr.mxu0 0.0
      %156 = vmatpush1.msra.mxu0 0.0
      %157 = vmatprep.subr.mxu0 0.0
      %158 = vmatpush1.msra.mxu0 0.0
      %159 = vmatprep.subr.mxu0 0.0
      %160 = vmatpush1.msra.mxu0 0.0
      %161 = vmatprep.subr.mxu0 0.0
      %162 = vmatpush1.msra.mxu0 0.0
      %163 = vmatprep.subr.mxu0 0.0
      %164 = vmatpush1.msra.mxu0 0.0
      %165 = vmatprep.subr.mxu0 0.0
      %166 = vmatpush1.msra.mxu0 0.0
      %167 = vmatprep.subr.mxu0 0.0
      %168 = vmatpush1.msra.mxu0 0.0
      %169 = vmatprep.subr.mxu0 0.0
      %170 = vmatpush1.msra.mxu0 0.0
      %171 = vmatprep.subr.mxu0 0.0
      %172 = vmatpush1.msra.mxu0 0.0
      %173 = vmatprep.subr.mxu0 0.0
      %174 = vmatpush1.msra.mxu0 0.0
      %175 = vmatprep.subr.mxu0 0.0
      %176 = vmatpush1.msra.mxu0 0.0
      %177 = vmatprep.subr.mxu0 0.0
      %178 = vmatpush1.msra.mxu0 0.0
      %179 = vmatprep.subr.mxu0 0.0
      %180 = vmatpush1.msra.mxu0 0.0
      %181 = vmatprep.subr.mxu0 0.0
      %182 = vmatpush1.msra.mxu0 0.0
      %183 = vmatprep.subr.mxu0 0.0
      %184 = vmatpush1.msra.mxu0 0.0
      %185 = vmatprep.subr.mxu0 0.0
      %186 = vmatpush1.msra.mxu0 0.0
      %187 = vmatprep.subr.mxu0 0.0
      %188 = vmatpush1.msra.mxu0 0.0
      %189 = vmatprep.subr.mxu0 0.0
      %190 = vmatpush1.msra.mxu0 0.0
      %191 = vmatprep.subr.mxu0 0.0
      %192 = vmatpush1.msra.mxu0 0.0
      %193 = vmatprep.subr.mxu0 0.0
      %194 = vmatpush1.msra.mxu0 0.0
      %195 = vmatprep.subr.mxu0 0.0
      %196 = vmatpush1.msra.mxu0 0.0
      %197 = vmatprep.subr.mxu0 0.0
      %198 = vmatpush1.msra.mxu0 0.0
      %199 = vmatprep.subr.mxu0 0.0
      %200 = vmatpush1.msra.mxu0 0.0
      %201 = vmatprep.subr.mxu0 0.0
      %202 = vmatpush1.msra.mxu0 0.0
      %203 = vmatprep.subr.mxu0 0.0
      %204 = vmatpush1.msra.mxu0 0.0
      %205 = vmatprep.subr.mxu0 0.0
      %206 = vmatpush1.msra.mxu0 0.0
      %207 = vmatprep.subr.mxu0 0.0
      %208 = vmatpush1.msra.mxu0 0.0
      %209 = vmatprep.subr.mxu0 0.0
      %210 = vmatpush1.msra.mxu0 0.0
      %211 = vmatprep.subr.mxu0 0.0
      %212 = vmatpush1.msra.mxu0 0.0
      %213 = vmatprep.subr.mxu0 0.0
      %214 = vmatpush1.msra.mxu0 0.0
      %215 = vmatprep.subr.mxu0 0.0
      %216 = vmatpush1.msra.mxu0 0.0
      %217 = vmatprep.mubr.f32.mxu0 0.0
      %218 = vmatmul.mubr.f32.gmra.mrb[0].mxu0 %v151
      %v219 = vpop.f32.mrb[0].mxu0
      %v220 = vadd.f32 0.0, %v219
      %v221 = vpop.f32.mrb[0].mxu0
      %222 = vdwg.mxu0
      %v223 = vsub.f32 0.0, %v220
      %v224 = vmul.f32 %v223, 1.442695
      %v225 = vpow.pop %v224
      %v226 = vadd.f32 %v225, 1.0
      %v227 = vrcp.pop %v226
      %v228 = vmul.f32 1.0, %v227
      %vm229 = vcmask 7168
      %230 = vst.msk [vmem:[%s141] sm:$0xff] %vm229, %v228
      %p231 = scmp.lt.s32.totalorder %s13, 1
      %s232 = scalar_select %p231, %s13, 1
      %s233 = smul.addr %s232, 8
      %s234 = scalar_lea.vmem %s2, %s233
      // Predicated region
      $region29: #{csp_layer_mhsa1_forward.18} parent=27 // pred_check
        %p235 = pneg %p78
      $region30: #{csp_layer_mhsa1_forward.18} parent=27 // pred_check_branch
        %237 = sbr.rel (%p235) target = $region32
      $region31: #{csp_layer_mhsa1_forward.18} parent=27 // pred_region
        _
      $region32: #{csp_layer_mhsa1_forward.18} parent=27 // pred_fallthru
        _
    $region28: #{csp_layer_mhsa1_forward.18} parent=5 // pred_fallthru
      _
    %p238 = scmp.le.s32.totalorder 2, %s8
    // Predicated region
    $region33: #{csp_layer_mhsa1_forward.18} parent=5 // pred_check
      %p239 = pneg %p238
    $region34: #{csp_layer_mhsa1_forward.18} parent=5 // pred_check_branch
      %241 = sbr.rel (%p239) target = $region36
    $region35: #{csp_layer_mhsa1_forward.18} parent=5 // pred_region
      %s242 = ssub.s32 %s8, 2
      // Predicated region
      $region37: #{csp_layer_mhsa1_forward.18} parent=35 // pred_check
        %p243 = pneg %p84
      $region38: #{csp_layer_mhsa1_forward.18} parent=35 // pred_check_branch
        %245 = sbr.rel (%p243) target = $region40
      $region39: #{csp_layer_mhsa1_forward.18} parent=35 // pred_region
        %p246 = scmp.lt.s32.totalorder %s14, 1
        %s247 = scalar_select %p246, %s14, 1
        %s248 = smul.addr %s247, 8
        %s249 = scalar_lea.vmem %s2, %s248
      $region40: #{csp_layer_mhsa1_forward.18} parent=35 // pred_fallthru
        _
    $region36: #{csp_layer_mhsa1_forward.18} parent=5 // pred_fallthru
      _
  $region6: #{csp_layer_mhsa1_forward.18} parent=0 // loop_footer
    %s12 = sadd.s32 1, %s8
  $region7: #{csp_layer_mhsa1_forward.18} parent=0 // loop_footer_branch
    %7 = sbr.rel target = $region3
  $region8: #{csp_layer_mhsa1_forward.18} parent=0 // loop_exit
    _

// kernel: csp_layer_mhsa1_forward.19
$region0: #{csp_layer_mhsa1_forward.19}
  #allocation0 [shape = 'u32[]', space=smem, size = 0x4, offset = 0x4, fixed_abs, tag = 'smem constant byte address 0x4 - core index']
  #allocation1 [shape = 'u32[144,128]{1,0:T(1,128)}', space=vmem, size = 0x12000, scoped, tag = 'internal scratch']
  %s0 = inlined_call_operand.vmem [shape: f32[2,8,256], index: 0, kind: input, shape index: {}]
  %s1 = inlined_call_operand.vmem [shape: f32[2,8,256], index: 1, kind: input, shape index: {}]
  %s2 = inlined_call_operand.vmem [shape: f32[2,8,1], index: 2, kind: input, shape index: {}]
  %s3 = inlined_call_operand.vmem [shape: f32[16,8], index: 3, kind: input, shape index: {}]
  %s4 = inlined_call_operand.vmem [shape: f32[16,8], index: 4, kind: input, shape index: {}]
  %s5 = inlined_call_operand.vmem [shape: f32[16,1], index: 5, kind: input, shape index: {}]
  %s6 = inlined_call_operand.vmem [shape: f32[2,16,256], index: 6, kind: output, shape index: {}]
  %s7 = sld [smem:[#allocation0]]
  $region57: #{csp_layer_mhsa1_forward.19} parent=0
    _
  %s9 = ssub.s32 1, %s7
  %s10 = scalar_select 0, %s9, %s7
  loop: start=0, step=1, limit=4
  $region2: #{csp_layer_mhsa1_forward.19} parent=0 // loop_pre_header
    _
  $region3: #{csp_layer_mhsa1_forward.19} parent=0 // loop_header
    %s12 = sphi 0, %s16
    %p13 = scmp.ge.s32.totalorder %s12, 4
    %s19 = sphi 0, %s31
    %s20 = sphi 0, %s27
    %s21 = sphi 0, %s19
    %s22 = sphi 0, %s20
    %s23 = sphi 0, %s21
    %s24 = sphi 0, %s22
    %s36 = sphi 0, %s38
    %s39 = sphi 0, %s36
    %s40 = sphi 0, %s39
    %s56 = sphi 0, %s40
    %s64 = sphi 0, %s66
    %s67 = sphi 0, %s64
    %s68 = sphi 0, %s67
    %s84 = sphi 0, %s68
    %s90 = sphi 0, %s92
    %s93 = sphi 0, %s90
    %s94 = sphi 0, %s93
    %s110 = sphi 0, %s94
    %s114 = sphi 0, %s114
    %s116 = sphi 0, %s114
    %s117 = sphi 0, %s116
    %s131 = sphi 0, %s117
    %s135 = sphi 0, %s135
    %s137 = sphi 0, %s135
    %s138 = sphi 0, %s137
    %s152 = sphi 0, %s138
    %s156 = sphi 0, %s156
    %s158 = sphi 0, %s156
    %s159 = sphi 0, %s158
    %s173 = sphi 0, %s159
    %s181 = sphi 0, %s183
    %s184 = sphi 0, %s181
    %s185 = sphi 0, %s184
    %s201 = sphi 0, %s185
  $region4: #{csp_layer_mhsa1_forward.19} parent=0 // loop_header_branch
    %15 = sbr.rel (%p13) target = $region8
  $region5: #{csp_layer_mhsa1_forward.19} parent=0 // loop_body
    %s17 = ssub.s32 %s12, 1
    %s18 = ssub.s32 %s12, 2
    %s25 = sadd.s32 1, %s20
    %p26 = scmp.ge.s32.totalorder %s25, 1
    %s27 = scalar_select %p26, 0, %s25
    %s28 = sadd.s32 1, %s19
    %s29 = scalar_select %p26, %s28, %s19
    %p30 = scmp.ge.s32.totalorder %s29, 2
    %s31 = scalar_select %p30, 0, %s29
    %s32 = ssub.s32 %s19, %s31
    %s33 = ssub.s32 %s20, %s27
    %s34 = sor.u32 %s32, %s33
    %p35 = scmp.eq.s32.totalorder %s34, 0
    %s37 = sadd.s32 %s36, 1
    %s38 = scalar_select %p35, %s36, %s37
    %p41 = pneg %p35
    %p42 = scmp.eq.s32.totalorder %s12, 1
    %p43 = por %p41, %p42
    %p44 = scmp.ne.s32.totalorder %s36, %s39
    %p45 = scmp.eq.s32.totalorder %s12, 0
    %p46 = por %p44, %p45
    %p47 = scmp.ne.s32.totalorder %s36, %s39
    %p48 = scmp.eq.s32.totalorder %s17, 1
    %p49 = por %p47, %p48
    %p50 = scmp.ne.s32.totalorder %s39, %s40
    %p51 = scmp.eq.s32.totalorder %s17, 0
    %p52 = por %p50, %p51
    %p53 = scmp.ne.s32.totalorder %s39, %s40
    %p54 = scmp.eq.s32.totalorder %s18, 1
    %p55 = por %p53, %p54
    %p57 = scmp.ne.s32.totalorder %s40, %s56
    %p58 = scmp.eq.s32.totalorder %s18, 0
    %p59 = por %p57, %p58
    %s60 = ssub.s32 %s19, %s31
    %s61 = ssub.s32 %s20, %s27
    %s62 = sor.u32 %s60, %s61
    %p63 = scmp.eq.s32.totalorder %s62, 0
    %s65 = sadd.s32 %s64, 1
    %s66 = scalar_select %p63, %s64, %s65
    %p69 = pneg %p63
    %p70 = scmp.eq.s32.totalorder %s12, 1
    %p71 = por %p69, %p70
    %p72 = scmp.ne.s32.totalorder %s64, %s67
    %p73 = scmp.eq.s32.totalorder %s12, 0
    %p74 = por %p72, %p73
    %p75 = scmp.ne.s32.totalorder %s64, %s67
    %p76 = scmp.eq.s32.totalorder %s17, 1
    %p77 = por %p75, %p76
    %p78 = scmp.ne.s32.totalorder %s67, %s68
    %p79 = scmp.eq.s32.totalorder %s17, 0
    %p80 = por %p78, %p79
    %p81 = scmp.ne.s32.totalorder %s67, %s68
    %p82 = scmp.eq.s32.totalorder %s18, 1
    %p83 = por %p81, %p82
    %p85 = scmp.ne.s32.totalorder %s68, %s84
    %p86 = scmp.eq.s32.totalorder %s18, 0
    %p87 = por %p85, %p86
    %s88 = ssub.s32 %s19, %s31
    %p89 = scmp.eq.s32.totalorder %s88, 0
    %s91 = sadd.s32 %s90, 1
    %s92 = scalar_select %p89, %s90, %s91
    %p95 = pneg %p89
    %p96 = scmp.eq.s32.totalorder %s12, 1
    %p97 = por %p95, %p96
    %p98 = scmp.ne.s32.totalorder %s90, %s93
    %p99 = scmp.eq.s32.totalorder %s12, 0
    %p100 = por %p98, %p99
    %p101 = scmp.ne.s32.totalorder %s90, %s93
    %p102 = scmp.eq.s32.totalorder %s17, 1
    %p103 = por %p101, %p102
    %p104 = scmp.ne.s32.totalorder %s93, %s94
    %p105 = scmp.eq.s32.totalorder %s17, 0
    %p106 = por %p104, %p105
    %p107 = scmp.ne.s32.totalorder %s93, %s94
    %p108 = scmp.eq.s32.totalorder %s18, 1
    %p109 = por %p107, %p108
    %p111 = scmp.ne.s32.totalorder %s94, %s110
    %p112 = scmp.eq.s32.totalorder %s18, 0
    %p113 = por %p111, %p112
    %s115 = sadd.s32 %s114, 1
    %p118 = scmp.eq.s32.totalorder %s12, 1
    %p119 = scmp.ne.s32.totalorder %s114, %s116
    %p120 = scmp.eq.s32.totalorder %s12, 0
    %p121 = por %p119, %p120
    %p122 = scmp.ne.s32.totalorder %s114, %s116
    %p123 = scmp.eq.s32.totalorder %s17, 1
    %p124 = por %p122, %p123
    %p125 = scmp.ne.s32.totalorder %s116, %s117
    %p126 = scmp.eq.s32.totalorder %s17, 0
    %p127 = por %p125, %p126
    %p128 = scmp.ne.s32.totalorder %s116, %s117
    %p129 = scmp.eq.s32.totalorder %s18, 1
    %p130 = por %p128, %p129
    %p132 = scmp.ne.s32.totalorder %s117, %s131
    %p133 = scmp.eq.s32.totalorder %s18, 0
    %p134 = por %p132, %p133
    %s136 = sadd.s32 %s135, 1
    %p139 = scmp.eq.s32.totalorder %s12, 1
    %p140 = scmp.ne.s32.totalorder %s135, %s137
    %p141 = scmp.eq.s32.totalorder %s12, 0
    %p142 = por %p140, %p141
    %p143 = scmp.ne.s32.totalorder %s135, %s137
    %p144 = scmp.eq.s32.totalorder %s17, 1
    %p145 = por %p143, %p144
    %p146 = scmp.ne.s32.totalorder %s137, %s138
    %p147 = scmp.eq.s32.totalorder %s17, 0
    %p148 = por %p146, %p147
    %p149 = scmp.ne.s32.totalorder %s137, %s138
    %p150 = scmp.eq.s32.totalorder %s18, 1
    %p151 = por %p149, %p150
    %p153 = scmp.ne.s32.totalorder %s138, %s152
    %p154 = scmp.eq.s32.totalorder %s18, 0
    %p155 = por %p153, %p154
    %s157 = sadd.s32 %s156, 1
    %p160 = scmp.eq.s32.totalorder %s12, 1
    %p161 = scmp.ne.s32.totalorder %s156, %s158
    %p162 = scmp.eq.s32.totalorder %s12, 0
    %p163 = por %p161, %p162
    %p164 = scmp.ne.s32.totalorder %s156, %s158
    %p165 = scmp.eq.s32.totalorder %s17, 1
    %p166 = por %p164, %p165
    %p167 = scmp.ne.s32.totalorder %s158, %s159
    %p168 = scmp.eq.s32.totalorder %s17, 0
    %p169 = por %p167, %p168
    %p170 = scmp.ne.s32.totalorder %s158, %s159
    %p171 = scmp.eq.s32.totalorder %s18, 1
    %p172 = por %p170, %p171
    %p174 = scmp.ne.s32.totalorder %s159, %s173
    %p175 = scmp.eq.s32.totalorder %s18, 0
    %p176 = por %p174, %p175
    %s177 = ssub.s32 %s19, %s31
    %s178 = ssub.s32 %s20, %s27
    %s179 = sor.u32 %s177, %s178
    %p180 = scmp.eq.s32.totalorder %s179, 0
    %s182 = sadd.s32 %s181, 1
    %s183 = scalar_select %p180, %s181, %s182
    %p186 = pneg %p180
    %p187 = scmp.eq.s32.totalorder %s12, 1
    %p188 = por %p186, %p187
    %p189 = scmp.ne.s32.totalorder %s181, %s184
    %p190 = scmp.eq.s32.totalorder %s12, 0
    %p191 = por %p189, %p190
    %p192 = scmp.ne.s32.totalorder %s181, %s184
    %p193 = scmp.eq.s32.totalorder %s17, 1
    %p194 = por %p192, %p193
    %p195 = scmp.ne.s32.totalorder %s184, %s185
    %p196 = scmp.eq.s32.totalorder %s17, 0
    %p197 = por %p195, %p196
    %p198 = scmp.ne.s32.totalorder %s184, %s185
    %p199 = scmp.eq.s32.totalorder %s18, 1
    %p200 = por %p198, %p199
    %p202 = scmp.ne.s32.totalorder %s185, %s201
    %p203 = scmp.eq.s32.totalorder %s18, 0
    %p204 = por %p202, %p203
    %p205 = scmp.le.s32.totalorder 1, %s12
    %p206 = scmp.lt.s32.totalorder %s12, 3
    %p207 = pnand %p205, %p206
    %p208 = pneg %p207
    // Predicated region
    $region9: #{csp_layer_mhsa1_forward.19} parent=5 // pred_check
      _
    $region10: #{csp_layer_mhsa1_forward.19} parent=5 // pred_check_branch
      %210 = sbr.rel (%p207) target = $region12
    $region11: #{csp_layer_mhsa1_forward.19} parent=5 // pred_region
      %s211 = ssub.s32 %s12, 1
      // Predicated region
      $region13: #{csp_layer_mhsa1_forward.19} parent=11 // pred_check
        %p212 = pneg %p127
      $region14: #{csp_layer_mhsa1_forward.19} parent=11 // pred_check_branch
        %214 = sbr.rel (%p212) target = $region16
      $region15: #{csp_layer_mhsa1_forward.19} parent=11 // pred_region
        _
      $region16: #{csp_layer_mhsa1_forward.19} parent=11 // pred_fallthru
        _
      // Predicated region
      $region17: #{csp_layer_mhsa1_forward.19} parent=11 // pred_check
        %p215 = pneg %p148
      $region18: #{csp_layer_mhsa1_forward.19} parent=11 // pred_check_branch
        %217 = sbr.rel (%p215) target = $region20
      $region19: #{csp_layer_mhsa1_forward.19} parent=11 // pred_region
        _
      $region20: #{csp_layer_mhsa1_forward.19} parent=11 // pred_fallthru
        _
      // Predicated region
      $region21: #{csp_layer_mhsa1_forward.19} parent=11 // pred_check
        %p218 = pneg %p169
      $region22: #{csp_layer_mhsa1_forward.19} parent=11 // pred_check_branch
        %220 = sbr.rel (%p218) target = $region24
      $region23: #{csp_layer_mhsa1_forward.19} parent=11 // pred_region
        _
      $region24: #{csp_layer_mhsa1_forward.19} parent=11 // pred_fallthru
        _
    $region12: #{csp_layer_mhsa1_forward.19} parent=5 // pred_fallthru
      _
    %p221 = scmp.lt.s32.totalorder %s12, 2
    // Predicated region
    $region25: #{csp_layer_mhsa1_forward.19} parent=5 // pred_check
      %p222 = pneg %p221
    $region26: #{csp_layer_mhsa1_forward.19} parent=5 // pred_check_branch
      %224 = sbr.rel (%p222) target = $region28
    $region27: #{csp_layer_mhsa1_forward.19} parent=5 // pred_region
      // Predicated region
      $region29: #{csp_layer_mhsa1_forward.19} parent=27 // pred_check
        %p225 = pneg %p46
      $region30: #{csp_layer_mhsa1_forward.19} parent=27 // pred_check_branch
        %227 = sbr.rel (%p225) target = $region32
      $region31: #{csp_layer_mhsa1_forward.19} parent=27 // pred_region
        %s228 = smul.u32 2, %s20
        %p229 = scmp.lt.s32.totalorder %s19, 1
        %s230 = scalar_select %p229, %s19, 1
        %p231 = scmp.lt.s32.totalorder %s228, 1
        %s232 = scalar_select %p231, %s228, 1
        %s233 = smul.addr %s230, 2
        %s234 = sadd.s32 %s232, %s233
        %s235 = smul.addr %s234, 8
        %s236 = scalar_lea.vmem %s0, %s235
        %s237 = smul.u32 2, %s20
      $region32: #{csp_layer_mhsa1_forward.19} parent=27 // pred_fallthru
        _
      // Predicated region
      $region33: #{csp_layer_mhsa1_forward.19} parent=27 // pred_check
        %p238 = pneg %p74
      $region34: #{csp_layer_mhsa1_forward.19} parent=27 // pred_check_branch
        %240 = sbr.rel (%p238) target = $region36
      $region35: #{csp_layer_mhsa1_forward.19} parent=27 // pred_region
        %s241 = smul.u32 2, %s20
        %p242 = scmp.lt.s32.totalorder %s19, 1
        %s243 = scalar_select %p242, %s19, 1
        %p244 = scmp.lt.s32.totalorder %s241, 1
        %s245 = scalar_select %p244, %s241, 1
        %s246 = smul.addr %s243, 2
        %s247 = sadd.s32 %s245, %s246
        %s248 = smul.addr %s247, 8
        %s249 = scalar_lea.vmem %s1, %s248
        %s250 = smul.u32 2, %s20
      $region36: #{csp_layer_mhsa1_forward.19} parent=27 // pred_fallthru
        _
      // Predicated region
      $region37: #{csp_layer_mhsa1_forward.19} parent=27 // pred_check
        %p251 = pneg %p100
      $region38: #{csp_layer_mhsa1_forward.19} parent=27 // pred_check_branch
        %253 = sbr.rel (%p251) target = $region40
      $region39: #{csp_layer_mhsa1_forward.19} parent=27 // pred_region
        %p254 = scmp.lt.s32.totalorder %s19, 1
        %s255 = scalar_select %p254, %s19, 1
        %s256 = smul.addr %s255, 8
        %s257 = scalar_lea.vmem %s2, %s256
      $region40: #{csp_layer_mhsa1_forward.19} parent=27 // pred_fallthru
        _
    $region28: #{csp_layer_mhsa1_forward.19} parent=5 // pred_fallthru
      _
    %p258 = scmp.le.s32.totalorder 1, %s12
    %p259 = scmp.lt.s32.totalorder %s12, 3
    %p260 = pnand %p258, %p259
    %p261 = pneg %p260
    // Predicated region
    $region41: #{csp_layer_mhsa1_forward.19} parent=5 // pred_check
      _
    $region42: #{csp_layer_mhsa1_forward.19} parent=5 // pred_check_branch
      %263 = sbr.rel (%p260) target = $region44
    $region43: #{csp_layer_mhsa1_forward.19} parent=5 // pred_region
      %s264 = ssub.s32 %s12, 1
      %s265 = smul.u32 2, %s22
      %p266 = scmp.lt.s32.totalorder %s21, 1
      %s267 = scalar_select %p266, %s21, 1
      %p268 = scmp.lt.s32.totalorder %s265, 1
      %s269 = scalar_select %p268, %s265, 1
      %s270 = smul.addr %s267, 2
      %s271 = sadd.s32 %s269, %s270
      %s272 = smul.addr %s271, 8
      %s273 = scalar_lea.vmem %s0, %s272
      %p274 = pneg %p52
      %p275 = pneg %p49
      %s276 = smul.u32 2, %s22
      %p277 = scmp.lt.s32.totalorder %s21, 1
      %s278 = scalar_select %p277, %s21, 1
      %p279 = scmp.lt.s32.totalorder %s276, 1
      %s280 = scalar_select %p279, %s276, 1
      %s281 = smul.addr %s278, 2
      %s282 = sadd.s32 %s280, %s281
      %s283 = smul.addr %s282, 8
      %s284 = scalar_lea.vmem %s1, %s283
      %p285 = pneg %p80
      %p286 = pneg %p77
      %p287 = scmp.lt.s32.totalorder %s21, 1
      %s288 = scalar_select %p287, %s21, 1
      %s289 = smul.addr %s288, 8
      %s290 = scalar_lea.vmem %s2, %s289
      %p291 = pneg %p106
      %p292 = pneg %p103
      %p293 = pneg %p127
      %p294 = pneg %p124
      %p295 = pneg %p148
      %p296 = pneg %p145
      %p297 = pneg %p169
      %p298 = pneg %p166
      %p299 = pneg %p197
      %p300 = pneg %p194
      %s301 = smul.u32 2, %s22
      %p302 = scmp.lt.s32.totalorder %s21, 1
      %s303 = scalar_select %p302, %s21, 1
      %p304 = scmp.lt.s32.totalorder %s301, 1
      %s305 = scalar_select %p304, %s301, 1
      %s306 = smul.addr %s303, 4
      %s307 = sadd.s32 %s305, %s306
      %s308 = smul.addr %s307, 8
      %s309 = scalar_lea.vmem %s6, %s308
      %s310 = smul.u32 2, %s22
      %p311 = scmp.lt.s32.totalorder %s21, 1
      %s312 = scalar_select %p311, %s21, 1
      %p313 = scmp.lt.s32.totalorder %s310, 1
      %s314 = scalar_select %p313, %s310, 1
      %s315 = smul.addr %s312, 2
      %s316 = sadd.s32 %s314, %s315
      %s317 = smul.addr %s316, 8
      %s318 = scalar_lea.vmem %s0, %s317
      %s319 = smul.u32 2, %s22
      %s320 = smul.u32 2, %s22
      %p321 = scmp.lt.s32.totalorder %s21, 1
      %s322 = scalar_select %p321, %s21, 1
      %p323 = scmp.lt.s32.totalorder %s320, 1
      %s324 = scalar_select %p323, %s320, 1
      %s325 = smul.addr %s322, 2
      %s326 = sadd.s32 %s324, %s325
      %s327 = smul.addr %s326, 8
      %s328 = scalar_lea.vmem %s1, %s327
      %s329 = smul.u32 2, %s22
      %p330 = scmp.lt.s32.totalorder %s21, 1
      %s331 = scalar_select %p330, %s21, 1
      %s332 = smul.addr %s331, 8
      %s333 = scalar_lea.vmem %s2, %s332
      %s334 = smul.u32 2, %s22
      %p335 = scmp.lt.s32.totalorder %s21, 1
      %s336 = scalar_select %p335, %s21, 1
      %p337 = scmp.lt.s32.totalorder %s334, 1
      %s338 = scalar_select %p337, %s334, 1
      %s339 = smul.addr %s336, 4
      %s340 = sadd.s32 %s338, %s339
      %s341 = smul.addr %s340, 8
      %s342 = scalar_lea.vmem %s6, %s341
      %s343 = smul.u32 2, %s22
      %v344 = vld [vmem:[%s318] sm:$0xff]
      %v345 = vld [vmem:[%s318 + $0x8] sm:$0xff]
      %v346 = vld [vmem:[%s333] sm:$0xff]
      %348 = vset.pattern.permute.xlu0 0
      %349 = vperm.xlu0 %348, %v346
      %v350 = vpop.permute.xlu0 %349
      %v352 = vmul.f32 %v344, %v350
      %v353 = vmul.f32 %v345, %v350
      %v354 = vld [vmem:[%s3] sm:$0xff]
      %v355 = vld [vmem:[%s3 + $0x8] sm:$0xff]
      %v356 = vld [vmem:[%s4] sm:$0xff]
      %v357 = vld [vmem:[%s4 + $0x8] sm:$0xff]
      %v358 = vld [vmem:[%s328] sm:$0xff]
      %v359 = vld [vmem:[%s328 + $0x8] sm:$0xff]
      %vm360 = vcmask 64512
      %v362 = vsel %vm360, %v356, 0
      %v365 = vsel %vm360, %v357, 0
      %367 = vmatprep.subr.mxu0 %v359
      %368 = vmatpush1.msra.mxu0 %v358
      %369 = vmatprep.subr.mxu0 0.0
      %370 = vmatpush1.msra.mxu0 0.0
      %371 = vmatprep.subr.mxu0 0.0
      %372 = vmatpush1.msra.mxu0 0.0
      %373 = vmatprep.subr.mxu0 0.0
      %374 = vmatpush1.msra.mxu0 0.0
      %375 = vmatprep.subr.mxu0 0.0
      %376 = vmatpush1.msra.mxu0 0.0
      %377 = vmatprep.subr.mxu0 0.0
      %378 = vmatpush1.msra.mxu0 0.0
      %379 = vmatprep.subr.mxu0 0.0
      %380 = vmatpush1.msra.mxu0 0.0
      %381 = vmatprep.subr.mxu0 0.0
      %382 = vmatpush1.msra.mxu0 0.0
      %383 = vmatprep.subr.mxu0 0.0
      %384 = vmatpush1.msra.mxu0 0.0
      %385 = vmatprep.subr.mxu0 0.0
      %386 = vmatpush1.msra.mxu0 0.0
      %387 = vmatprep.subr.mxu0 0.0
      %388 = vmatpush1.msra.mxu0 0.0
      %389 = vmatprep.subr.mxu0 0.0
      %390 = vmatpush1.msra.mxu0 0.0
      %391 = vmatprep.subr.mxu0 0.0
      %392 = vmatpush1.msra.mxu0 0.0
      %393 = vmatprep.subr.mxu0 0.0
      %394 = vmatpush1.msra.mxu0 0.0
      %395 = vmatprep.subr.mxu0 0.0
      %396 = vmatpush1.msra.mxu0 0.0
      %397 = vmatprep.subr.mxu0 0.0
      %398 = vmatpush1.msra.mxu0 0.0
      %399 = vmatprep.subr.mxu0 0.0
      %400 = vmatpush1.msra.mxu0 0.0
      %401 = vmatprep.subr.mxu0 0.0
      %402 = vmatpush1.msra.mxu0 0.0
      %403 = vmatprep.subr.mxu0 0.0
      %404 = vmatpush1.msra.mxu0 0.0
      %405 = vmatprep.subr.mxu0 0.0
      %406 = vmatpush1.msra.mxu0 0.0
      %407 = vmatprep.subr.mxu0 0.0
      %408 = vmatpush1.msra.mxu0 0.0
      %409 = vmatprep.subr.mxu0 0.0
      %410 = vmatpush1.msra.mxu0 0.0
      %411 = vmatprep.subr.mxu0 0.0
      %412 = vmatpush1.msra.mxu0 0.0
      %413 = vmatprep.subr.mxu0 0.0
      %414 = vmatpush1.msra.mxu0 0.0
      %415 = vmatprep.subr.mxu0 0.0
      %416 = vmatpush1.msra.mxu0 0.0
      %417 = vmatprep.subr.mxu0 0.0
      %418 = vmatpush1.msra.mxu0 0.0
      %419 = vmatprep.subr.mxu0 0.0
      %420 = vmatpush1.msra.mxu0 0.0
      %421 = vmatprep.subr.mxu0 0.0
      %422 = vmatpush1.msra.mxu0 0.0
      %423 = vmatprep.subr.mxu0 0.0
      %424 = vmatpush1.msra.mxu0 0.0
      %425 = vmatprep.subr.mxu0 0.0
      %426 = vmatpush1.msra.mxu0 0.0
      %427 = vmatprep.subr.mxu0 0.0
      %428 = vmatpush1.msra.mxu0 0.0
      %429 = vmatprep.subr.mxu0 0.0
      %430 = vmatpush1.msra.mxu0 0.0
      %431 = vmatprep.mubr.f32.mxu0 0.0
      %432 = vmatmul.mubr.f32.gmra.mrb[0].mxu0 %v362
      %v433 = vpop.f32.mrb[0].mxu0
      %v434 = vadd.f32 0.0, %v433
      %v435 = vpop.f32.mrb[0].mxu0
      %v436 = vadd.f32 0.0, %v435
      %437 = vmatprep.mubr.f32.mxu0 0.0
      %438 = vmatmul.mubr.f32.gmra.mrb[0].mxu0 %v365
      %v439 = vpop.f32.mrb[0].mxu0
      %v440 = vadd.f32 0.0, %v439
      %v441 = vpop.f32.mrb[0].mxu0
      %v442 = vadd.f32 0.0, %v441
      %443 = vdwg.mxu0
      %v445 = vsel %vm360, %v354, 0
      %v448 = vsel %vm360, %v355, 0
      %450 = vmatprep.subr.mxu0 %v353
      %451 = vmatpush1.msra.mxu0 %v352
      %452 = vmatprep.subr.mxu0 0.0
      %453 = vmatpush1.msra.mxu0 0.0
      %454 = vmatprep.subr.mxu0 0.0
      %455 = vmatpush1.msra.mxu0 0.0
      %456 = vmatprep.subr.mxu0 0.0
      %457 = vmatpush1.msra.mxu0 0.0
      %458 = vmatprep.subr.mxu0 0.0
      %459 = vmatpush1.msra.mxu0 0.0
      %460 = vmatprep.subr.mxu0 0.0
      %461 = vmatpush1.msra.mxu0 0.0
      %462 = vmatprep.subr.mxu0 0.0
      %463 = vmatpush1.msra.mxu0 0.0
      %464 = vmatprep.subr.mxu0 0.0
      %465 = vmatpush1.msra.mxu0 0.0
      %466 = vmatprep.subr.mxu0 0.0
      %467 = vmatpush1.msra.mxu0 0.0
      %468 = vmatprep.subr.mxu0 0.0
      %469 = vmatpush1.msra.mxu0 0.0
      %470 = vmatprep.subr.mxu0 0.0
      %471 = vmatpush1.msra.mxu0 0.0
      %472 = vmatprep.subr.mxu0 0.0
      %473 = vmatpush1.msra.mxu0 0.0
      %474 = vmatprep.subr.mxu0 0.0
      %475 = vmatpush1.msra.mxu0 0.0
      %476 = vmatprep.subr.mxu0 0.0
      %477 = vmatpush1.msra.mxu0 0.0
      %478 = vmatprep.subr.mxu0 0.0
      %479 = vmatpush1.msra.mxu0 0.0
      %480 = vmatprep.subr.mxu0 0.0
      %481 = vmatpush1.msra.mxu0 0.0
      %482 = vmatprep.subr.mxu0 0.0
      %483 = vmatpush1.msra.mxu0 0.0
      %484 = vmatprep.subr.mxu0 0.0
      %485 = vmatpush1.msra.mxu0 0.0
      %486 = vmatprep.subr.mxu0 0.0
      %487 = vmatpush1.msra.mxu0 0.0
      %488 = vmatprep.subr.mxu0 0.0
      %489 = vmatpush1.msra.mxu0 0.0
      %490 = vmatprep.subr.mxu0 0.0
      %491 = vmatpush1.msra.mxu0 0.0
      %492 = vmatprep.subr.mxu0 0.0
      %493 = vmatpush1.msra.mxu0 0.0
      %494 = vmatprep.subr.mxu0 0.0
      %495 = vmatpush1.msra.mxu0 0.0
      %496 = vmatprep.subr.mxu0 0.0
      %497 = vmatpush1.msra.mxu0 0.0
      %498 = vmatprep.subr.mxu0 0.0
      %499 = vmatpush1.msra.mxu0 0.0
      %500 = vmatprep.subr.mxu0 0.0
      %501 = vmatpush1.msra.mxu0 0.0
      %502 = vmatprep.subr.mxu0 0.0
      %503 = vmatpush1.msra.mxu0 0.0
      %504 = vmatprep.subr.mxu0 0.0
      %505 = vmatpush1.msra.mxu0 0.0
      %506 = vmatprep.subr.mxu0 0.0
      %507 = vmatpush1.msra.mxu0 0.0
      %508 = vmatprep.subr.mxu0 0.0
      %509 = vmatpush1.msra.mxu0 0.0
      %510 = vmatprep.subr.mxu0 0.0
      %511 = vmatpush1.msra.mxu0 0.0
      %512 = vmatprep.subr.mxu0 0.0
      %513 = vmatpush1.msra.mxu0 0.0
      %514 = vmatprep.mubr.f32.mxu0 0.0
      %515 = vmatmul.mubr.f32.gmra.mrb[0].mxu0 %v445
      %v516 = vpop.f32.mrb[0].mxu0
      %v517 = vadd.f32 %v434, %v516
      %v518 = vpop.f32.mrb[0].mxu0
      %v519 = vadd.f32 %v436, %v518
      %520 = vmatprep.mubr.f32.mxu0 0.0
      %521 = vmatmul.mubr.f32.gmra.mrb[0].mxu0 %v448
      %v522 = vpop.f32.mrb[0].mxu0
      %v523 = vadd.f32 %v440, %v522
      %v524 = vpop.f32.mrb[0].mxu0
      %v525 = vadd.f32 %v442, %v524
      %526 = vdwg.mxu0
      %v527 = vld [vmem:[%s5] sm:$0xff]
      %v528 = vld [vmem:[%s5 + $0x8] sm:$0xff]
      %530 = vset.pattern.permute.xlu0 0
      %531 = vperm.xlu0 %530, %v527
      %v532 = vpop.permute.xlu0 %531
      %535 = vset.pattern.permute.xlu0 0
      %536 = vperm.xlu0 %535, %v528
      %v537 = vpop.permute.xlu0 %536
      %v539 = vadd.f32 %v517, %v532
      %v540 = vadd.f32 %v519, %v532
      %v541 = vadd.f32 %v523, %v537
      %v542 = vadd.f32 %v525, %v537
      %v543 = vsub.f32 0.0, %v539
      %v544 = vsub.f32 0.0, %v540
      %v545 = vsub.f32 0.0, %v541
      %v546 = vsub.f32 0.0, %v542
      %v547 = vmul.f32 %v543, 1.442695
      %v548 = vpow.pop %v547
      %v549 = vmul.f32 %v544, 1.442695
      %v550 = vpow.pop %v549
      %v551 = vmul.f32 %v545, 1.442695
      %v552 = vpow.pop %v551
      %v553 = vmul.f32 %v546, 1.442695
      %v554 = vpow.pop %v553
      %v555 = vadd.f32 %v548, 1.0
      %v556 = vadd.f32 %v550, 1.0
      %v557 = vadd.f32 %v552, 1.0
      %v558 = vadd.f32 %v554, 1.0
      %v559 = vrcp.pop %v555
      %v560 = vmul.f32 1.0, %v559
      %v561 = vrcp.pop %v556
      %v562 = vmul.f32 1.0, %v561
      %v563 = vrcp.pop %v557
      %v564 = vmul.f32 1.0, %v563
      %v565 = vrcp.pop %v558
      %v566 = vmul.f32 1.0, %v565
      %v567 = vmul.f32 %v539, %v560
      %v568 = vmul.f32 %v540, %v562
      %v569 = vmul.f32 %v541, %v564
      %v570 = vmul.f32 %v542, %v566
      %571 = vst [vmem:[%s342] sm:$0xff] %v567
      %572 = vst [vmem:[%s342 + $0x8] sm:$0xff] %v568
      %573 = vst [vmem:[%s342 + $0x10] sm:$0xff] %v569
      %574 = vst [vmem:[%s342 + $0x18] sm:$0xff] %v570
      %s575 = smul.u32 2, %s22
      %p576 = scmp.lt.s32.totalorder %s21, 1
      %s577 = scalar_select %p576, %s21, 1
      %p578 = scmp.lt.s32.totalorder %s575, 1
      %s579 = scalar_select %p578, %s575, 1
      %s580 = smul.addr %s577, 4
      %s581 = sadd.s32 %s579, %s580
      %s582 = smul.addr %s581, 8
      %s583 = scalar_lea.vmem %s6, %s582
      // Predicated region
      $region45: #{csp_layer_mhsa1_forward.19} parent=43 // pred_check
        %p584 = pneg %p194
      $region46: #{csp_layer_mhsa1_forward.19} parent=43 // pred_check_branch
        %586 = sbr.rel (%p584) target = $region48
      $region47: #{csp_layer_mhsa1_forward.19} parent=43 // pred_region
        %s587 = smul.u32 2, %s22
      $region48: #{csp_layer_mhsa1_forward.19} parent=43 // pred_fallthru
        _
    $region44: #{csp_layer_mhsa1_forward.19} parent=5 // pred_fallthru
      _
    %p588 = scmp.le.s32.totalorder 2, %s12
    // Predicated region
    $region49: #{csp_layer_mhsa1_forward.19} parent=5 // pred_check
      %p589 = pneg %p588
    $region50: #{csp_layer_mhsa1_forward.19} parent=5 // pred_check_branch
      %591 = sbr.rel (%p589) target = $region52
    $region51: #{csp_layer_mhsa1_forward.19} parent=5 // pred_region
      %s592 = ssub.s32 %s12, 2
      // Predicated region
      $region53: #{csp_layer_mhsa1_forward.19} parent=51 // pred_check
        %p593 = pneg %p200
      $region54: #{csp_layer_mhsa1_forward.19} parent=51 // pred_check_branch
        %595 = sbr.rel (%p593) target = $region56
      $region55: #{csp_layer_mhsa1_forward.19} parent=51 // pred_region
        %s596 = smul.u32 2, %s24
        %p597 = scmp.lt.s32.totalorder %s23, 1
        %s598 = scalar_select %p597, %s23, 1
        %p599 = scmp.lt.s32.totalorder %s596, 1
        %s600 = scalar_select %p599, %s596, 1
        %s601 = smul.addr %s598, 4
        %s602 = sadd.s32 %s600, %s601
        %s603 = smul.addr %s602, 8
        %s604 = scalar_lea.vmem %s6, %s603
      $region56: #{csp_layer_mhsa1_forward.19} parent=51 // pred_fallthru
        _
    $region52: #{csp_layer_mhsa1_forward.19} parent=5 // pred_fallthru
      _
  $region6: #{csp_layer_mhsa1_forward.19} parent=0 // loop_footer
    %s16 = sadd.s32 1, %s12
  $region7: #{csp_layer_mhsa1_forward.19} parent=0 // loop_footer_branch
    %11 = sbr.rel target = $region3
  $region8: #{csp_layer_mhsa1_forward.19} parent=0 // loop_exit
    _

</llo_original>
